<compile_context>
chip_gen: v6e
topology: v6e:2x2x1
jax: 0.10.0
libtpu: 0.0.40
codegen_flags: <defaults>
</compile_context>

<pallas_src>
import functools
import math

import jax
import jax.numpy as jnp
from jax import lax
from jax.experimental import pallas as pl
from jax.experimental.pallas import tpu as pltpu


def _round_up(v, m):
    return (v + m - 1) // m * m


# ---------------------------------------------------------------------------
# Fused Pallas kernel: 2x tap-folded conv matmuls + 4x GroupNorm(1) + GRU gating
# ---------------------------------------------------------------------------
def _gru_cell_kernel(mask_ref, x_ref, h_ref, hf_ref, wx_ref, wh_ref, gbx_ref, gbh_ref,
                     out_ref, imx_ref, imh_ref, gx_ref, gh_ref,
                     *, hid, c_x, c_h, shifts, p_pad, n_valid, eps, block_b, chunk):
    f32 = jnp.float32
    mask = mask_ref[...]                                 # (1, P) f32, 1.0 on real pixels

    gamma_x, beta_x = gbx_ref[0], gbx_ref[1]             # (3h, 1) f32
    gamma_h, beta_h = gbh_ref[0], gbh_ref[1]
    h2, h3 = 2 * hid, 3 * hid
    n_chunks = p_pad // chunk

    def sigmoid(v):
        # EUP tanh form: no f32 divide, no exp overflow for large |v|.
        return 0.5 * jnp.tanh(0.5 * v) + 0.5

    def gn_scale_shift(g_ref, r0, r1, gamma, beta):
        # GroupNorm(num_groups=1): masked two-pass mean/var over the valid (C, H, W)
        # elements, folded into per-channel scale/shift (normalize becomes one FMA).
        cnt = float((r1 - r0) * n_valid)
        mean = jnp.sum(g_ref[r0:r1, :] * mask) / cnt
        d = (g_ref[r0:r1, :] - mean) * mask
        var = jnp.sum(d * d) / cnt
        inv = lax.rsqrt(var + eps)
        scale = gamma[r0:r1] * inv                       # (n_ch, 1)
        shift = beta[r0:r1] - mean * scale
        return scale, shift

    for bb in range(block_b):                            # static per-grid-step batch block
        # ---- im2col: fold the 9 conv taps into the MXU contraction dim -------------
        for t, start in enumerate(shifts):               # static, always in-bounds slices
            imx_ref[t * c_x:(t + 1) * c_x, :] = x_ref[bb, :, start:start + p_pad]
            imh_ref[t * c_h:(t + 1) * c_h, :] = h_ref[bb, :, start:start + p_pad]

        # ---- one MXU matmul per path (bf16 operands, f32 accumulation) -------------
        gx_ref[...] = jnp.dot(wx_ref[...], imx_ref[...],
                              preferred_element_type=jnp.float32)   # rows [0:2h)=i2h, [2h:3h)=i2c
        gh_ref[...] = jnp.dot(wh_ref[...], imh_ref[...],
                              preferred_element_type=jnp.float32)   # rows [0:2h)=h2h, [2h:3h)=h2c

        # ---- GroupNorm(1) stats -> per-channel scale/shift --------------------------
        sc_ih, sh_ih = gn_scale_shift(gx_ref, 0, h2, gamma_x, beta_x)
        sc_hh, sh_hh = gn_scale_shift(gh_ref, 0, h2, gamma_h, beta_h)
        sc_c, sh_c = gn_scale_shift(gx_ref, h2, h3, gamma_x, beta_x)
        sc_u, sh_u = gn_scale_shift(gh_ref, h2, h3, gamma_h, beta_h)
        sh_zr = sh_ih + sh_hh                            # fold the "norm_ih + norm_hh" add

        # ---- normalize + GRU gating + store, in 128-lane chunks ---------------------
        @pl.loop(0, n_chunks)
        def _(ci):
            off = pl.multiple_of(ci * chunk, chunk)
            zr = (gx_ref[0:h2, pl.ds(off, chunk)] * sc_ih
                  + gh_ref[0:h2, pl.ds(off, chunk)] * sc_hh + sh_zr)   # (2h, chunk)
            z = zr[0:hid]
            r = zr[hid:h2]
            n_c = gx_ref[h2:h3, pl.ds(off, chunk)] * sc_c + sh_c
            n_u = gh_ref[h2:h3, pl.ds(off, chunk)] * sc_u + sh_u
            c = jnp.tanh(n_c + sigmoid(r) * n_u)
            sz = sigmoid(z)
            h_prev = hf_ref[bb, :, pl.ds(off, chunk)]    # original f32 h for the state blend
            out_ref[bb, :, pl.ds(off, chunk)] = ((1.0 - sz) * h_prev + sz * c).astype(f32)


# ---------------------------------------------------------------------------
# Wrapper: layout prep (flat padded activations, folded weights) + pallas_call
# ---------------------------------------------------------------------------
def conv_layernorm_gru_cell(x, h, params, *, eps=1e-5, conv_dtype=jnp.bfloat16, block_b=None):
    B, c_in, H, W = x.shape
    _, hid, _, _ = h.shape
    assert h.shape == (B, hid, H, W)
    assert hid % 8 == 0, "hidden_size must be a multiple of 8 for sublane-aligned slicing"

    k, pad = 3, 1
    kk = k * k
    hp, wp = H + 2 * pad, W + 2 * pad
    p_flat = hp * wp
    p_pad = _round_up(p_flat, 128)           # lane-dense working / output width
    margin = pad * wp + pad                  # max |flat shift| of any conv tap
    ext = _round_up(2 * margin + p_pad, 128)  # flat activation length incl. shift margin
    c_in_pad = _round_up(c_in, 16)           # bf16 sublane-tile alignment for im2col writes
    hid_in_pad = _round_up(hid, 16)
    chunk = 128

    if block_b is None:
        block_b = 1 if B < 4 else (4 if B % 4 == 0 else (2 if B % 2 == 0 else 1))
    assert B % block_b == 0

    # ---- weights: fuse the two x-convs / h-convs along output channels, fold taps ---
    def fold_weight(w, c_pad):
        c_out, c_inn = w.shape[0], w.shape[1]
        wp_ = jnp.pad(w, ((0, 0), (0, c_pad - c_inn), (0, 0), (0, 0)))
        # W[o, t*c_pad + cin] = w[o, cin, dh, dw] with t = dh*k + dw
        return jnp.transpose(wp_, (0, 2, 3, 1)).reshape(c_out, kk * c_pad).astype(conv_dtype)

    w_x = jnp.concatenate([params['w_i2h'], params['w_i2c']], axis=0)   # (3h, c_in, 3, 3)
    w_h = jnp.concatenate([params['w_h2h'], params['w_h2c']], axis=0)   # (3h, hid, 3, 3)
    wx = fold_weight(w_x, c_in_pad)                                     # (3h, kk*c_in_pad)
    wh = fold_weight(w_h, hid_in_pad)                                   # (3h, kk*hid_in_pad)

    gb_x = jnp.stack([jnp.concatenate([params['g_ih'], params['g_c']]),
                      jnp.concatenate([params['b_ih'], params['b_c']])]
                     ).reshape(2, 3 * hid, 1).astype(jnp.float32)
    gb_h = jnp.stack([jnp.concatenate([params['g_hh'], params['g_u']]),
                      jnp.concatenate([params['b_hh'], params['b_u']])]
                     ).reshape(2, 3 * hid, 1).astype(jnp.float32)

    # ---- activations: channel-pad, spatial zero-pad, flatten, add shift margin ------
    def pad_ext(a, c_pad):
        b_, c_ = a.shape[0], a.shape[1]
        ap = jnp.pad(a, ((0, 0), (0, c_pad - c_), (pad, pad), (pad, pad)))
        ap = ap.reshape(b_, c_pad, p_flat)
        ap = jnp.pad(ap, ((0, 0), (0, 0), (margin, ext - margin - p_flat)))
        return ap.astype(conv_dtype)

    x_ext = pad_ext(x, c_in_pad)                          # (B, c_in_pad, ext) bf16
    h_ext = pad_ext(h, hid_in_pad)                        # (B, hid_in_pad, ext) bf16

    # Original f32 h on the padded flat grid (for the state blend).
    hf = jnp.pad(h, ((0, 0), (0, 0), (pad, pad), (pad, pad))).reshape(B, hid, p_flat)
    hf = jnp.pad(hf, ((0, 0), (0, 0), (0, p_pad - p_flat))).astype(jnp.float32)

    # Validity mask (1 on real pixels, 0 on halo and lane padding).
    idx = jnp.arange(p_pad)
    rows, cols = idx // wp, idx % wp
    mask = ((idx < p_flat) & (rows >= pad) & (rows < pad + H)
            & (cols >= pad) & (cols < pad + W))
    mask = mask.astype(jnp.float32).reshape(1, p_pad)

    shifts = tuple(margin + (dh - pad) * wp + (dw - pad)
                   for dh in range(k) for dw in range(k))

    kernel = functools.partial(
        _gru_cell_kernel, hid=hid, c_x=c_in_pad, c_h=hid_in_pad, shifts=shifts,
        p_pad=p_pad, n_valid=H * W, eps=eps, block_b=block_b, chunk=chunk)

    out_flat = pl.pallas_call(
        kernel,
        out_shape=jax.ShapeDtypeStruct((B, hid, p_pad), jnp.float32),
        grid_spec=pltpu.PrefetchScalarGridSpec(
            num_scalar_prefetch=0,
            grid=(B // block_b,),
            in_specs=[
                pl.BlockSpec((1, p_pad), lambda b: (0, 0)),                      # mask
                pl.BlockSpec((block_b, c_in_pad, ext), lambda b: (b, 0, 0)),     # x (bf16, flat+margin)
                pl.BlockSpec((block_b, hid_in_pad, ext), lambda b: (b, 0, 0)),   # h (bf16, flat+margin)
                pl.BlockSpec((block_b, hid, p_pad), lambda b: (b, 0, 0)),        # h (f32, for blend)
                pl.BlockSpec((3 * hid, kk * c_in_pad), lambda b: (0, 0)),        # folded x-path weights
                pl.BlockSpec((3 * hid, kk * hid_in_pad), lambda b: (0, 0)),      # folded h-path weights
                pl.BlockSpec((2, 3 * hid, 1), lambda b: (0, 0, 0)),              # gamma/beta (x path)
                pl.BlockSpec((2, 3 * hid, 1), lambda b: (0, 0, 0)),              # gamma/beta (h path)
            ],
            out_specs=pl.BlockSpec((block_b, hid, p_pad), lambda b: (b, 0, 0)),
            scratch_shapes=[
                pltpu.VMEM((kk * c_in_pad, p_pad), conv_dtype),     # im2col (x path)
                pltpu.VMEM((kk * hid_in_pad, p_pad), conv_dtype),   # im2col (h path)
                pltpu.VMEM((3 * hid, p_pad), jnp.float32),          # gx conv output
                pltpu.VMEM((3 * hid, p_pad), jnp.float32),          # gh conv output
            ]),
        compiler_params=pltpu.CompilerParams(
            dimension_semantics=("parallel",)),
    )(mask, x_ext, h_ext, hf, wx, wh, gb_x, gb_h)

    # (B, hid, P) is NCHW on the padded spatial grid -> drop the lane pad and halo.
    # TODO(synk): if downstream can consume the padded NCHW-flat layout, skip this crop.
    return out_flat[:, :, :p_flat].reshape(B, hid, hp, wp)[:, :, pad:pad + H, pad:pad + W]


# ---------------------------------------------------------------------------
# Pure-JAX reference (conv_dtype lets us match the kernel's bf16 matmul inputs)
# ---------------------------------------------------------------------------
def conv_layernorm_gru_cell_ref(x, h, params, *, eps=1e-5, conv_dtype=jnp.float32):
    cast = lambda a: a.astype(conv_dtype)

    def conv(inp, w):
        return lax.conv_general_dilated(
            cast(inp), cast(w), window_strides=(1, 1), padding=[(1, 1), (1, 1)],
            dimension_numbers=('NCHW', 'OIHW', 'NCHW'),
            preferred_element_type=jnp.float32)

    def gn(o, gamma, beta):
        b = o.shape[0]
        flat = o.reshape(b, -1)
        m = flat.mean(axis=1)
        v = ((flat - m[:, None]) ** 2).mean(axis=1)
        m = m.reshape(b, 1, 1, 1)
        v = v.reshape(b, 1, 1, 1)
        return ((o - m) * lax.rsqrt(v + eps) * gamma.reshape(1, -1, 1, 1)
                + beta.reshape(1, -1, 1, 1))

    i2h = conv(x, params['w_i2h'])
    h2h = conv(h, params['w_h2h'])
    i2c = conv(x, params['w_i2c'])
    h2c = conv(h, params['w_h2c'])
    zr = gn(i2h, params['g_ih'], params['b_ih']) + gn(h2h, params['g_hh'], params['b_hh'])
    hid = h.shape[1]
    z, r = zr[:, :hid], zr[:, hid:]
    c = jnp.tanh(gn(i2c, params['g_c'], params['b_c'])
                 + jax.nn.sigmoid(r) * gn(h2c, params['g_u'], params['b_u']))
    sz = jax.nn.sigmoid(z)
    return (1.0 - sz) * h + sz * c          # state blend always in f32 (matches PyTorch)


if __name__ == "__main__":
    # Shapes implied by the module: x (B, input_size, H, W), h (B, hidden_size, H, W).
    B, c_in, hid, H, W = 2, 4, 32, 16, 16
    key = jax.random.PRNGKey(0)
    ks = jax.random.split(key, 6)

    x = jax.random.normal(ks[0], (B, c_in, H, W), jnp.float32)
    h = jax.random.normal(ks[1], (B, hid, H, W), jnp.float32)

    def xavier_conv(k_, c_out, c_inn, ksz):
        bound = math.sqrt(6.0 / (c_inn * ksz * ksz + c_out * ksz * ksz))
        return jax.random.uniform(k_, (c_out, c_inn, ksz, ksz), jnp.float32, -bound, bound)

    def orthogonal_conv(k_, c_out, c_inn, ksz):
        a = jax.random.normal(k_, (c_inn * ksz * ksz, c_out), jnp.float32)
        q, _ = jnp.linalg.qr(a)                    # orthonormal columns
        return q.T.reshape(c_out, c_inn, ksz, ksz)

    params = dict(
        w_i2h=xavier_conv(ks[2], 2 * hid, c_in, 3),
        w_i2c=xavier_conv(ks[3], hid, c_in, 3),
        w_h2h=orthogonal_conv(ks[4], 2 * hid, hid, 3),
        w_h2c=orthogonal_conv(ks[5], hid, hid, 3),
        # GroupNorm affine params at PyTorch defaults (weight=1, bias=0).
        g_ih=jnp.ones((2 * hid,), jnp.float32), b_ih=jnp.zeros((2 * hid,), jnp.float32),
        g_hh=jnp.ones((2 * hid,), jnp.float32), b_hh=jnp.zeros((2 * hid,), jnp.float32),
        g_c=jnp.ones((hid,), jnp.float32), b_c=jnp.zeros((hid,), jnp.float32),
        g_u=jnp.ones((hid,), jnp.float32), b_u=jnp.zeros((hid,), jnp.float32),
    )

    out = conv_layernorm_gru_cell(x, h, params)
    out = jax.block_until_ready(out)
    assert out.shape == (B, hid, H, W)

    # Tight check vs a reference that uses the same bf16 conv operands (blend in f32).
    ref_bf16 = conv_layernorm_gru_cell_ref(x, h, params, conv_dtype=jnp.bfloat16)
    assert jnp.allclose(out, ref_bf16, rtol=2e-2, atol=2e-2), "mismatch vs bf16-matched reference"

    # Loose check vs the pure-f32 reference (bounds the bf16 precision tradeoff).
    ref_f32 = conv_layernorm_gru_cell_ref(x, h, params, conv_dtype=jnp.float32)
    assert jnp.allclose(out, ref_f32, rtol=1e-1, atol=1e-1), "mismatch vs f32 reference"

    print("KERNEL_OK")
</pallas_src>

<mosaic_0001>
module attributes {stable_mosaic.version = 11 : i64} {
  func.func @_gru_cell_kernel(%arg0: i32, %arg1: memref<1x384xf32, #tpu.memory_space<vmem>>, %arg2: memref<1x16x512xbf16, #tpu.memory_space<vmem>>, %arg3: memref<1x32x512xbf16, #tpu.memory_space<vmem>>, %arg4: memref<1x32x384xf32, #tpu.memory_space<vmem>>, %arg5: memref<96x144xbf16, #tpu.memory_space<vmem>>, %arg6: memref<96x288xbf16, #tpu.memory_space<vmem>>, %arg7: memref<2x96x1xf32, #tpu.memory_space<vmem>>, %arg8: memref<2x96x1xf32, #tpu.memory_space<vmem>>, %arg9: memref<1x32x384xf32, #tpu.memory_space<vmem>>, %arg10: memref<144x384xbf16, #tpu.memory_space<vmem>>, %arg11: memref<288x384xbf16, #tpu.memory_space<vmem>>, %arg12: memref<96x384xf32, #tpu.memory_space<vmem>>, %arg13: memref<96x384xf32, #tpu.memory_space<vmem>>) attributes {dimension_semantics = [#tpu.dimension_semantics<parallel>], iteration_bounds = array<i64: 2>, scalar_prefetch = 0 : i64, scratch_operands = 4 : i64, tpu.core_type = #tpu.core_type<tc>, window_params = [{pipeline_mode = #tpu.pipeline_mode<synchronous>, transform_indices = @transform_0, window_bounds = array<i64: 1, 384>}, {transform_indices = @transform_1, window_bounds = array<i64: 1, 16, 512>}, {transform_indices = @transform_2, window_bounds = array<i64: 1, 32, 512>}, {transform_indices = @transform_3, window_bounds = array<i64: 1, 32, 384>}, {pipeline_mode = #tpu.pipeline_mode<synchronous>, transform_indices = @transform_4, window_bounds = array<i64: 96, 144>}, {pipeline_mode = #tpu.pipeline_mode<synchronous>, transform_indices = @transform_5, window_bounds = array<i64: 96, 288>}, {pipeline_mode = #tpu.pipeline_mode<synchronous>, transform_indices = @transform_6, window_bounds = array<i64: 2, 96, 1>}, {pipeline_mode = #tpu.pipeline_mode<synchronous>, transform_indices = @transform_7, window_bounds = array<i64: 2, 96, 1>}, {transform_indices = @transform_8, window_bounds = array<i64: 1, 32, 384>}]} {
    %c0 = arith.constant 0 : index
    %c0_0 = arith.constant 0 : index
    %0 = vector.load %arg1[%c0, %c0_0] : memref<1x384xf32, #tpu.memory_space<vmem>>, vector<1x384xf32>
    %c0_1 = arith.constant 0 : index
    %c0_2 = arith.constant 0 : index
    %c0_3 = arith.constant 0 : index
    %1 = vector.load %arg7[%c0_1, %c0_2, %c0_3] : memref<2x96x1xf32, #tpu.memory_space<vmem>>, vector<1x96x1xf32>
    %2 = vector.shape_cast %1 : vector<1x96x1xf32> to vector<96x1xf32>
    %c1 = arith.constant 1 : index
    %c0_4 = arith.constant 0 : index
    %c0_5 = arith.constant 0 : index
    %3 = vector.load %arg7[%c1, %c0_4, %c0_5] : memref<2x96x1xf32, #tpu.memory_space<vmem>>, vector<1x96x1xf32>
    %4 = vector.shape_cast %3 : vector<1x96x1xf32> to vector<96x1xf32>
    %c0_6 = arith.constant 0 : index
    %c0_7 = arith.constant 0 : index
    %c0_8 = arith.constant 0 : index
    %5 = vector.load %arg8[%c0_6, %c0_7, %c0_8] : memref<2x96x1xf32, #tpu.memory_space<vmem>>, vector<1x96x1xf32>
    %6 = vector.shape_cast %5 : vector<1x96x1xf32> to vector<96x1xf32>
    %c1_9 = arith.constant 1 : index
    %c0_10 = arith.constant 0 : index
    %c0_11 = arith.constant 0 : index
    %7 = vector.load %arg8[%c1_9, %c0_10, %c0_11] : memref<2x96x1xf32, #tpu.memory_space<vmem>>, vector<1x96x1xf32>
    %8 = vector.shape_cast %7 : vector<1x96x1xf32> to vector<96x1xf32>
    %c0_12 = arith.constant 0 : index
    %c0_13 = arith.constant 0 : index
    %c0_14 = arith.constant 0 : index
    %9 = vector.load %arg2[%c0_12, %c0_13, %c0_14] : memref<1x16x512xbf16, #tpu.memory_space<vmem>>, vector<1x16x384xbf16>
    %10 = vector.shape_cast %9 : vector<1x16x384xbf16> to vector<16x384xbf16>
    %c0_15 = arith.constant 0 : index
    %c0_16 = arith.constant 0 : index
    %11 = vector.load %arg10[%c0_15, %c0_16] : memref<144x384xbf16, #tpu.memory_space<vmem>>, vector<16x384xbf16>
    tpu.vector_store %arg10[%c0_15, %c0_16], %10 {strides = array<i32>} : memref<144x384xbf16, #tpu.memory_space<vmem>>, vector<16x384xbf16>,
    %c0_17 = arith.constant 0 : index
    %c0_18 = arith.constant 0 : index
    %c0_19 = arith.constant 0 : index
    %12 = vector.load %arg3[%c0_17, %c0_18, %c0_19] : memref<1x32x512xbf16, #tpu.memory_space<vmem>>, vector<1x32x384xbf16>
    %13 = vector.shape_cast %12 : vector<1x32x384xbf16> to vector<32x384xbf16>
    %c0_20 = arith.constant 0 : index
    %c0_21 = arith.constant 0 : index
    %14 = vector.load %arg11[%c0_20, %c0_21] : memref<288x384xbf16, #tpu.memory_space<vmem>>, vector<32x384xbf16>
    tpu.vector_store %arg11[%c0_20, %c0_21], %13 {strides = array<i32>} : memref<288x384xbf16, #tpu.memory_space<vmem>>, vector<32x384xbf16>,
    %c0_22 = arith.constant 0 : index
    %c0_23 = arith.constant 0 : index
    %c1_24 = arith.constant 1 : index
    %15 = vector.load %arg2[%c0_22, %c0_23, %c1_24] : memref<1x16x512xbf16, #tpu.memory_space<vmem>>, vector<1x16x384xbf16>
    %16 = vector.shape_cast %15 : vector<1x16x384xbf16> to vector<16x384xbf16>
    %c16 = arith.constant 16 : index
    %c0_25 = arith.constant 0 : index
    %17 = vector.load %arg10[%c16, %c0_25] : memref<144x384xbf16, #tpu.memory_space<vmem>>, vector<16x384xbf16>
    tpu.vector_store %arg10[%c16, %c0_25], %16 {strides = array<i32>} : memref<144x384xbf16, #tpu.memory_space<vmem>>, vector<16x384xbf16>,
    %c0_26 = arith.constant 0 : index
    %c0_27 = arith.constant 0 : index
    %c1_28 = arith.constant 1 : index
    %18 = vector.load %arg3[%c0_26, %c0_27, %c1_28] : memref<1x32x512xbf16, #tpu.memory_space<vmem>>, vector<1x32x384xbf16>
    %19 = vector.shape_cast %18 : vector<1x32x384xbf16> to vector<32x384xbf16>
    %c32 = arith.constant 32 : index
    %c0_29 = arith.constant 0 : index
    %20 = vector.load %arg11[%c32, %c0_29] : memref<288x384xbf16, #tpu.memory_space<vmem>>, vector<32x384xbf16>
    tpu.vector_store %arg11[%c32, %c0_29], %19 {strides = array<i32>} : memref<288x384xbf16, #tpu.memory_space<vmem>>, vector<32x384xbf16>,
    %c0_30 = arith.constant 0 : index
    %c0_31 = arith.constant 0 : index
    %c2 = arith.constant 2 : index
    %21 = vector.load %arg2[%c0_30, %c0_31, %c2] : memref<1x16x512xbf16, #tpu.memory_space<vmem>>, vector<1x16x384xbf16>
    %22 = vector.shape_cast %21 : vector<1x16x384xbf16> to vector<16x384xbf16>
    %c32_32 = arith.constant 32 : index
    %c0_33 = arith.constant 0 : index
    %23 = vector.load %arg10[%c32_32, %c0_33] : memref<144x384xbf16, #tpu.memory_space<vmem>>, vector<16x384xbf16>
    tpu.vector_store %arg10[%c32_32, %c0_33], %22 {strides = array<i32>} : memref<144x384xbf16, #tpu.memory_space<vmem>>, vector<16x384xbf16>,
    %c0_34 = arith.constant 0 : index
    %c0_35 = arith.constant 0 : index
    %c2_36 = arith.constant 2 : index
    %24 = vector.load %arg3[%c0_34, %c0_35, %c2_36] : memref<1x32x512xbf16, #tpu.memory_space<vmem>>, vector<1x32x384xbf16>
    %25 = vector.shape_cast %24 : vector<1x32x384xbf16> to vector<32x384xbf16>
    %c64 = arith.constant 64 : index
    %c0_37 = arith.constant 0 : index
    %26 = vector.load %arg11[%c64, %c0_37] : memref<288x384xbf16, #tpu.memory_space<vmem>>, vector<32x384xbf16>
    tpu.vector_store %arg11[%c64, %c0_37], %25 {strides = array<i32>} : memref<288x384xbf16, #tpu.memory_space<vmem>>, vector<32x384xbf16>,
    %c0_38 = arith.constant 0 : index
    %c0_39 = arith.constant 0 : index
    %c18 = arith.constant 18 : index
    %27 = vector.load %arg2[%c0_38, %c0_39, %c18] : memref<1x16x512xbf16, #tpu.memory_space<vmem>>, vector<1x16x384xbf16>
    %28 = vector.shape_cast %27 : vector<1x16x384xbf16> to vector<16x384xbf16>
    %c48 = arith.constant 48 : index
    %c0_40 = arith.constant 0 : index
    %29 = vector.load %arg10[%c48, %c0_40] : memref<144x384xbf16, #tpu.memory_space<vmem>>, vector<16x384xbf16>
    tpu.vector_store %arg10[%c48, %c0_40], %28 {strides = array<i32>} : memref<144x384xbf16, #tpu.memory_space<vmem>>, vector<16x384xbf16>,
    %c0_41 = arith.constant 0 : index
    %c0_42 = arith.constant 0 : index
    %c18_43 = arith.constant 18 : index
    %30 = vector.load %arg3[%c0_41, %c0_42, %c18_43] : memref<1x32x512xbf16, #tpu.memory_space<vmem>>, vector<1x32x384xbf16>
    %31 = vector.shape_cast %30 : vector<1x32x384xbf16> to vector<32x384xbf16>
    %c96 = arith.constant 96 : index
    %c0_44 = arith.constant 0 : index
    %32 = vector.load %arg11[%c96, %c0_44] : memref<288x384xbf16, #tpu.memory_space<vmem>>, vector<32x384xbf16>
    tpu.vector_store %arg11[%c96, %c0_44], %31 {strides = array<i32>} : memref<288x384xbf16, #tpu.memory_space<vmem>>, vector<32x384xbf16>,
    %c0_45 = arith.constant 0 : index
    %c0_46 = arith.constant 0 : index
    %c19 = arith.constant 19 : index
    %33 = vector.load %arg2[%c0_45, %c0_46, %c19] : memref<1x16x512xbf16, #tpu.memory_space<vmem>>, vector<1x16x384xbf16>
    %34 = vector.shape_cast %33 : vector<1x16x384xbf16> to vector<16x384xbf16>
    %c64_47 = arith.constant 64 : index
    %c0_48 = arith.constant 0 : index
    %35 = vector.load %arg10[%c64_47, %c0_48] : memref<144x384xbf16, #tpu.memory_space<vmem>>, vector<16x384xbf16>
    tpu.vector_store %arg10[%c64_47, %c0_48], %34 {strides = array<i32>} : memref<144x384xbf16, #tpu.memory_space<vmem>>, vector<16x384xbf16>,
    %c0_49 = arith.constant 0 : index
    %c0_50 = arith.constant 0 : index
    %c19_51 = arith.constant 19 : index
    %36 = vector.load %arg3[%c0_49, %c0_50, %c19_51] : memref<1x32x512xbf16, #tpu.memory_space<vmem>>, vector<1x32x384xbf16>
    %37 = vector.shape_cast %36 : vector<1x32x384xbf16> to vector<32x384xbf16>
    %c128 = arith.constant 128 : index
    %c0_52 = arith.constant 0 : index
    %38 = vector.load %arg11[%c128, %c0_52] : memref<288x384xbf16, #tpu.memory_space<vmem>>, vector<32x384xbf16>
    tpu.vector_store %arg11[%c128, %c0_52], %37 {strides = array<i32>} : memref<288x384xbf16, #tpu.memory_space<vmem>>, vector<32x384xbf16>,
    %c0_53 = arith.constant 0 : index
    %c0_54 = arith.constant 0 : index
    %c20 = arith.constant 20 : index
    %39 = vector.load %arg2[%c0_53, %c0_54, %c20] : memref<1x16x512xbf16, #tpu.memory_space<vmem>>, vector<1x16x384xbf16>
    %40 = vector.shape_cast %39 : vector<1x16x384xbf16> to vector<16x384xbf16>
    %c80 = arith.constant 80 : index
    %c0_55 = arith.constant 0 : index
    %41 = vector.load %arg10[%c80, %c0_55] : memref<144x384xbf16, #tpu.memory_space<vmem>>, vector<16x384xbf16>
    tpu.vector_store %arg10[%c80, %c0_55], %40 {strides = array<i32>} : memref<144x384xbf16, #tpu.memory_space<vmem>>, vector<16x384xbf16>,
    %c0_56 = arith.constant 0 : index
    %c0_57 = arith.constant 0 : index
    %c20_58 = arith.constant 20 : index
    %42 = vector.load %arg3[%c0_56, %c0_57, %c20_58] : memref<1x32x512xbf16, #tpu.memory_space<vmem>>, vector<1x32x384xbf16>
    %43 = vector.shape_cast %42 : vector<1x32x384xbf16> to vector<32x384xbf16>
    %c160 = arith.constant 160 : index
    %c0_59 = arith.constant 0 : index
    %44 = vector.load %arg11[%c160, %c0_59] : memref<288x384xbf16, #tpu.memory_space<vmem>>, vector<32x384xbf16>
    tpu.vector_store %arg11[%c160, %c0_59], %43 {strides = array<i32>} : memref<288x384xbf16, #tpu.memory_space<vmem>>, vector<32x384xbf16>,
    %c0_60 = arith.constant 0 : index
    %c0_61 = arith.constant 0 : index
    %c36 = arith.constant 36 : index
    %45 = vector.load %arg2[%c0_60, %c0_61, %c36] : memref<1x16x512xbf16, #tpu.memory_space<vmem>>, vector<1x16x384xbf16>
    %46 = vector.shape_cast %45 : vector<1x16x384xbf16> to vector<16x384xbf16>
    %c96_62 = arith.constant 96 : index
    %c0_63 = arith.constant 0 : index
    %47 = vector.load %arg10[%c96_62, %c0_63] : memref<144x384xbf16, #tpu.memory_space<vmem>>, vector<16x384xbf16>
    tpu.vector_store %arg10[%c96_62, %c0_63], %46 {strides = array<i32>} : memref<144x384xbf16, #tpu.memory_space<vmem>>, vector<16x384xbf16>,
    %c0_64 = arith.constant 0 : index
    %c0_65 = arith.constant 0 : index
    %c36_66 = arith.constant 36 : index
    %48 = vector.load %arg3[%c0_64, %c0_65, %c36_66] : memref<1x32x512xbf16, #tpu.memory_space<vmem>>, vector<1x32x384xbf16>
    %49 = vector.shape_cast %48 : vector<1x32x384xbf16> to vector<32x384xbf16>
    %c192 = arith.constant 192 : index
    %c0_67 = arith.constant 0 : index
    %50 = vector.load %arg11[%c192, %c0_67] : memref<288x384xbf16, #tpu.memory_space<vmem>>, vector<32x384xbf16>
    tpu.vector_store %arg11[%c192, %c0_67], %49 {strides = array<i32>} : memref<288x384xbf16, #tpu.memory_space<vmem>>, vector<32x384xbf16>,
    %c0_68 = arith.constant 0 : index
    %c0_69 = arith.constant 0 : index
    %c37 = arith.constant 37 : index
    %51 = vector.load %arg2[%c0_68, %c0_69, %c37] : memref<1x16x512xbf16, #tpu.memory_space<vmem>>, vector<1x16x384xbf16>
    %52 = vector.shape_cast %51 : vector<1x16x384xbf16> to vector<16x384xbf16>
    %c112 = arith.constant 112 : index
    %c0_70 = arith.constant 0 : index
    %53 = vector.load %arg10[%c112, %c0_70] : memref<144x384xbf16, #tpu.memory_space<vmem>>, vector<16x384xbf16>
    tpu.vector_store %arg10[%c112, %c0_70], %52 {strides = array<i32>} : memref<144x384xbf16, #tpu.memory_space<vmem>>, vector<16x384xbf16>,
    %c0_71 = arith.constant 0 : index
    %c0_72 = arith.constant 0 : index
    %c37_73 = arith.constant 37 : index
    %54 = vector.load %arg3[%c0_71, %c0_72, %c37_73] : memref<1x32x512xbf16, #tpu.memory_space<vmem>>, vector<1x32x384xbf16>
    %55 = vector.shape_cast %54 : vector<1x32x384xbf16> to vector<32x384xbf16>
    %c224 = arith.constant 224 : index
    %c0_74 = arith.constant 0 : index
    %56 = vector.load %arg11[%c224, %c0_74] : memref<288x384xbf16, #tpu.memory_space<vmem>>, vector<32x384xbf16>
    tpu.vector_store %arg11[%c224, %c0_74], %55 {strides = array<i32>} : memref<288x384xbf16, #tpu.memory_space<vmem>>, vector<32x384xbf16>,
    %c0_75 = arith.constant 0 : index
    %c0_76 = arith.constant 0 : index
    %c38 = arith.constant 38 : index
    %57 = vector.load %arg2[%c0_75, %c0_76, %c38] : memref<1x16x512xbf16, #tpu.memory_space<vmem>>, vector<1x16x384xbf16>
    %58 = vector.shape_cast %57 : vector<1x16x384xbf16> to vector<16x384xbf16>
    %c128_77 = arith.constant 128 : index
    %c0_78 = arith.constant 0 : index
    %59 = vector.load %arg10[%c128_77, %c0_78] : memref<144x384xbf16, #tpu.memory_space<vmem>>, vector<16x384xbf16>
    tpu.vector_store %arg10[%c128_77, %c0_78], %58 {strides = array<i32>} : memref<144x384xbf16, #tpu.memory_space<vmem>>, vector<16x384xbf16>,
    %c0_79 = arith.constant 0 : index
    %c0_80 = arith.constant 0 : index
    %c38_81 = arith.constant 38 : index
    %60 = vector.load %arg3[%c0_79, %c0_80, %c38_81] : memref<1x32x512xbf16, #tpu.memory_space<vmem>>, vector<1x32x384xbf16>
    %61 = vector.shape_cast %60 : vector<1x32x384xbf16> to vector<32x384xbf16>
    %c256 = arith.constant 256 : index
    %c0_82 = arith.constant 0 : index
    %62 = vector.load %arg11[%c256, %c0_82] : memref<288x384xbf16, #tpu.memory_space<vmem>>, vector<32x384xbf16>
    tpu.vector_store %arg11[%c256, %c0_82], %61 {strides = array<i32>} : memref<288x384xbf16, #tpu.memory_space<vmem>>, vector<32x384xbf16>,
    %c0_83 = arith.constant 0 : index
    %c0_84 = arith.constant 0 : index
    %63 = vector.load %arg5[%c0_83, %c0_84] : memref<96x144xbf16, #tpu.memory_space<vmem>>, vector<96x144xbf16>
    %c0_85 = arith.constant 0 : index
    %c0_86 = arith.constant 0 : index
    %64 = vector.load %arg10[%c0_85, %c0_86] : memref<144x384xbf16, #tpu.memory_space<vmem>>, vector<144x384xbf16>
    %cst = arith.constant dense<0.000000e+00> : vector<96x384xf32>
    %65 = tpu.matmul %63, %64, %cst {dimension_numbers = #tpu.dot_dimension_numbers<[1], [0], [0], [1], [0, 0, 1, 1], [], []>} : vector<96x144xbf16>, vector<144x384xbf16>, vector<96x384xf32> -> vector<96x384xf32>
    %c0_87 = arith.constant 0 : index
    %c0_88 = arith.constant 0 : index
    %66 = vector.load %arg12[%c0_87, %c0_88] : memref<96x384xf32, #tpu.memory_space<vmem>>, vector<96x384xf32>
    tpu.vector_store %arg12[%c0_87, %c0_88], %65 {strides = array<i32>} : memref<96x384xf32, #tpu.memory_space<vmem>>, vector<96x384xf32>,
    %c0_89 = arith.constant 0 : index
    %c0_90 = arith.constant 0 : index
    %67 = vector.load %arg6[%c0_89, %c0_90] : memref<96x288xbf16, #tpu.memory_space<vmem>>, vector<96x288xbf16>
    %c0_91 = arith.constant 0 : index
    %c0_92 = arith.constant 0 : index
    %68 = vector.load %arg11[%c0_91, %c0_92] : memref<288x384xbf16, #tpu.memory_space<vmem>>, vector<288x384xbf16>
    %cst_93 = arith.constant dense<0.000000e+00> : vector<96x384xf32>
    %69 = tpu.matmul %67, %68, %cst_93 {dimension_numbers = #tpu.dot_dimension_numbers<[1], [0], [0], [1], [0, 0, 1, 1], [], []>} : vector<96x288xbf16>, vector<288x384xbf16>, vector<96x384xf32> -> vector<96x384xf32>
    %c0_94 = arith.constant 0 : index
    %c0_95 = arith.constant 0 : index
    %70 = vector.load %arg13[%c0_94, %c0_95] : memref<96x384xf32, #tpu.memory_space<vmem>>, vector<96x384xf32>
    tpu.vector_store %arg13[%c0_94, %c0_95], %69 {strides = array<i32>} : memref<96x384xf32, #tpu.memory_space<vmem>>, vector<96x384xf32>,
    %c0_96 = arith.constant 0 : index
    %c0_97 = arith.constant 0 : index
    %71 = vector.load %arg12[%c0_96, %c0_97] : memref<96x384xf32, #tpu.memory_space<vmem>>, vector<64x384xf32>
    %72 = vector.broadcast %0 : vector<1x384xf32> to vector<64x384xf32>
    %73 = arith.mulf %71, %72 : vector<64x384xf32>
    %74 = vector.shape_cast %73 : vector<64x384xf32> to vector<1x64x384xf32>
    %cst_98 = arith.constant dense<0.000000e+00> : vector<1xf32>
    %75 = vector.multi_reduction <add>, %74, %cst_98 [1, 2] : vector<1x64x384xf32> to vector<1xf32>
    %76 = vector.shape_cast %75 : vector<1xf32> to vector<1x1x1xf32>
    %77 = vector.extract %76[0, 0, 0] : f32 from vector<1x1x1xf32>
    %cst_99 = arith.constant 1.638400e+04 : f32
    %78 = arith.divf %77, %cst_99 : f32
    %c0_100 = arith.constant 0 : index
    %c0_101 = arith.constant 0 : index
    %79 = vector.load %arg12[%c0_100, %c0_101] : memref<96x384xf32, #tpu.memory_space<vmem>>, vector<64x384xf32>
    %80 = vector.broadcast %78 : f32 to vector<64x384xf32>
    %81 = arith.subf %79, %80 : vector<64x384xf32>
    %82 = vector.broadcast %0 : vector<1x384xf32> to vector<64x384xf32>
    %83 = arith.mulf %81, %82 : vector<64x384xf32>
    %84 = arith.mulf %83, %83 : vector<64x384xf32>
    %85 = vector.shape_cast %84 : vector<64x384xf32> to vector<1x64x384xf32>
    %cst_102 = arith.constant dense<0.000000e+00> : vector<1xf32>
    %86 = vector.multi_reduction <add>, %85, %cst_102 [1, 2] : vector<1x64x384xf32> to vector<1xf32>
    %87 = vector.shape_cast %86 : vector<1xf32> to vector<1x1x1xf32>
    %88 = vector.extract %87[0, 0, 0] : f32 from vector<1x1x1xf32>
    %cst_103 = arith.constant 1.638400e+04 : f32
    %89 = arith.divf %88, %cst_103 : f32
    %cst_104 = arith.constant 9.99999974E-6 : f32
    %90 = arith.addf %89, %cst_104 : f32
    %91 = math.rsqrt %90 : f32
    %92 = vector.extract_strided_slice %2 {offsets = [0, 0], sizes = [64, 1], strides = [1, 1]} : vector<96x1xf32> to vector<64x1xf32>
    %93 = vector.broadcast %91 : f32 to vector<64x1xf32>
    %94 = arith.mulf %92, %93 : vector<64x1xf32>
    %95 = vector.extract_strided_slice %4 {offsets = [0, 0], sizes = [64, 1], strides = [1, 1]} : vector<96x1xf32> to vector<64x1xf32>
    %96 = vector.broadcast %78 : f32 to vector<64x1xf32>
    %97 = arith.mulf %96, %94 : vector<64x1xf32>
    %98 = arith.subf %95, %97 : vector<64x1xf32>
    %c0_105 = arith.constant 0 : index
    %c0_106 = arith.constant 0 : index
    %99 = vector.load %arg13[%c0_105, %c0_106] : memref<96x384xf32, #tpu.memory_space<vmem>>, vector<64x384xf32>
    %100 = vector.broadcast %0 : vector<1x384xf32> to vector<64x384xf32>
    %101 = arith.mulf %99, %100 : vector<64x384xf32>
    %102 = vector.shape_cast %101 : vector<64x384xf32> to vector<1x64x384xf32>
    %cst_107 = arith.constant dense<0.000000e+00> : vector<1xf32>
    %103 = vector.multi_reduction <add>, %102, %cst_107 [1, 2] : vector<1x64x384xf32> to vector<1xf32>
    %104 = vector.shape_cast %103 : vector<1xf32> to vector<1x1x1xf32>
    %105 = vector.extract %104[0, 0, 0] : f32 from vector<1x1x1xf32>
    %cst_108 = arith.constant 1.638400e+04 : f32
    %106 = arith.divf %105, %cst_108 : f32
    %c0_109 = arith.constant 0 : index
    %c0_110 = arith.constant 0 : index
    %107 = vector.load %arg13[%c0_109, %c0_110] : memref<96x384xf32, #tpu.memory_space<vmem>>, vector<64x384xf32>
    %108 = vector.broadcast %106 : f32 to vector<64x384xf32>
    %109 = arith.subf %107, %108 : vector<64x384xf32>
    %110 = vector.broadcast %0 : vector<1x384xf32> to vector<64x384xf32>
    %111 = arith.mulf %109, %110 : vector<64x384xf32>
    %112 = arith.mulf %111, %111 : vector<64x384xf32>
    %113 = vector.shape_cast %112 : vector<64x384xf32> to vector<1x64x384xf32>
    %cst_111 = arith.constant dense<0.000000e+00> : vector<1xf32>
    %114 = vector.multi_reduction <add>, %113, %cst_111 [1, 2] : vector<1x64x384xf32> to vector<1xf32>
    %115 = vector.shape_cast %114 : vector<1xf32> to vector<1x1x1xf32>
    %116 = vector.extract %115[0, 0, 0] : f32 from vector<1x1x1xf32>
    %cst_112 = arith.constant 1.638400e+04 : f32
    %117 = arith.divf %116, %cst_112 : f32
    %cst_113 = arith.constant 9.99999974E-6 : f32
    %118 = arith.addf %117, %cst_113 : f32
    %119 = math.rsqrt %118 : f32
    %120 = vector.extract_strided_slice %6 {offsets = [0, 0], sizes = [64, 1], strides = [1, 1]} : vector<96x1xf32> to vector<64x1xf32>
    %121 = vector.broadcast %119 : f32 to vector<64x1xf32>
    %122 = arith.mulf %120, %121 : vector<64x1xf32>
    %123 = vector.extract_strided_slice %8 {offsets = [0, 0], sizes = [64, 1], strides = [1, 1]} : vector<96x1xf32> to vector<64x1xf32>
    %124 = vector.broadcast %106 : f32 to vector<64x1xf32>
    %125 = arith.mulf %124, %122 : vector<64x1xf32>
    %126 = arith.subf %123, %125 : vector<64x1xf32>
    %c64_114 = arith.constant 64 : index
    %c0_115 = arith.constant 0 : index
    %127 = vector.load %arg12[%c64_114, %c0_115] : memref<96x384xf32, #tpu.memory_space<vmem>>, vector<32x384xf32>
    %128 = vector.broadcast %0 : vector<1x384xf32> to vector<32x384xf32>
    %129 = arith.mulf %127, %128 : vector<32x384xf32>
    %130 = vector.shape_cast %129 : vector<32x384xf32> to vector<1x32x384xf32>
    %cst_116 = arith.constant dense<0.000000e+00> : vector<1xf32>
    %131 = vector.multi_reduction <add>, %130, %cst_116 [1, 2] : vector<1x32x384xf32> to vector<1xf32>
    %132 = vector.shape_cast %131 : vector<1xf32> to vector<1x1x1xf32>
    %133 = vector.extract %132[0, 0, 0] : f32 from vector<1x1x1xf32>
    %cst_117 = arith.constant 8.192000e+03 : f32
    %134 = arith.divf %133, %cst_117 : f32
    %c64_118 = arith.constant 64 : index
    %c0_119 = arith.constant 0 : index
    %135 = vector.load %arg12[%c64_118, %c0_119] : memref<96x384xf32, #tpu.memory_space<vmem>>, vector<32x384xf32>
    %136 = vector.broadcast %134 : f32 to vector<32x384xf32>
    %137 = arith.subf %135, %136 : vector<32x384xf32>
    %138 = vector.broadcast %0 : vector<1x384xf32> to vector<32x384xf32>
    %139 = arith.mulf %137, %138 : vector<32x384xf32>
    %140 = arith.mulf %139, %139 : vector<32x384xf32>
    %141 = vector.shape_cast %140 : vector<32x384xf32> to vector<1x32x384xf32>
    %cst_120 = arith.constant dense<0.000000e+00> : vector<1xf32>
    %142 = vector.multi_reduction <add>, %141, %cst_120 [1, 2] : vector<1x32x384xf32> to vector<1xf32>
    %143 = vector.shape_cast %142 : vector<1xf32> to vector<1x1x1xf32>
    %144 = vector.extract %143[0, 0, 0] : f32 from vector<1x1x1xf32>
    %cst_121 = arith.constant 8.192000e+03 : f32
    %145 = arith.divf %144, %cst_121 : f32
    %cst_122 = arith.constant 9.99999974E-6 : f32
    %146 = arith.addf %145, %cst_122 : f32
    %147 = math.rsqrt %146 : f32
    %148 = vector.extract_strided_slice %2 {offsets = [64, 0], sizes = [32, 1], strides = [1, 1]} : vector<96x1xf32> to vector<32x1xf32>
    %149 = vector.broadcast %147 : f32 to vector<32x1xf32>
    %150 = arith.mulf %148, %149 : vector<32x1xf32>
    %151 = vector.extract_strided_slice %4 {offsets = [64, 0], sizes = [32, 1], strides = [1, 1]} : vector<96x1xf32> to vector<32x1xf32>
    %152 = vector.broadcast %134 : f32 to vector<32x1xf32>
    %153 = arith.mulf %152, %150 : vector<32x1xf32>
    %154 = arith.subf %151, %153 : vector<32x1xf32>
    %c64_123 = arith.constant 64 : index
    %c0_124 = arith.constant 0 : index
    %155 = vector.load %arg13[%c64_123, %c0_124] : memref<96x384xf32, #tpu.memory_space<vmem>>, vector<32x384xf32>
    %156 = vector.broadcast %0 : vector<1x384xf32> to vector<32x384xf32>
    %157 = arith.mulf %155, %156 : vector<32x384xf32>
    %158 = vector.shape_cast %157 : vector<32x384xf32> to vector<1x32x384xf32>
    %cst_125 = arith.constant dense<0.000000e+00> : vector<1xf32>
    %159 = vector.multi_reduction <add>, %158, %cst_125 [1, 2] : vector<1x32x384xf32> to vector<1xf32>
    %160 = vector.shape_cast %159 : vector<1xf32> to vector<1x1x1xf32>
    %161 = vector.extract %160[0, 0, 0] : f32 from vector<1x1x1xf32>
    %cst_126 = arith.constant 8.192000e+03 : f32
    %162 = arith.divf %161, %cst_126 : f32
    %c64_127 = arith.constant 64 : index
    %c0_128 = arith.constant 0 : index
    %163 = vector.load %arg13[%c64_127, %c0_128] : memref<96x384xf32, #tpu.memory_space<vmem>>, vector<32x384xf32>
    %164 = vector.broadcast %162 : f32 to vector<32x384xf32>
    %165 = arith.subf %163, %164 : vector<32x384xf32>
    %166 = vector.broadcast %0 : vector<1x384xf32> to vector<32x384xf32>
    %167 = arith.mulf %165, %166 : vector<32x384xf32>
    %168 = arith.mulf %167, %167 : vector<32x384xf32>
    %169 = vector.shape_cast %168 : vector<32x384xf32> to vector<1x32x384xf32>
    %cst_129 = arith.constant dense<0.000000e+00> : vector<1xf32>
    %170 = vector.multi_reduction <add>, %169, %cst_129 [1, 2] : vector<1x32x384xf32> to vector<1xf32>
    %171 = vector.shape_cast %170 : vector<1xf32> to vector<1x1x1xf32>
    %172 = vector.extract %171[0, 0, 0] : f32 from vector<1x1x1xf32>
    %cst_130 = arith.constant 8.192000e+03 : f32
    %173 = arith.divf %172, %cst_130 : f32
    %cst_131 = arith.constant 9.99999974E-6 : f32
    %174 = arith.addf %173, %cst_131 : f32
    %175 = math.rsqrt %174 : f32
    %176 = vector.extract_strided_slice %6 {offsets = [64, 0], sizes = [32, 1], strides = [1, 1]} : vector<96x1xf32> to vector<32x1xf32>
    %177 = vector.broadcast %175 : f32 to vector<32x1xf32>
    %178 = arith.mulf %176, %177 : vector<32x1xf32>
    %179 = vector.extract_strided_slice %8 {offsets = [64, 0], sizes = [32, 1], strides = [1, 1]} : vector<96x1xf32> to vector<32x1xf32>
    %180 = vector.broadcast %162 : f32 to vector<32x1xf32>
    %181 = arith.mulf %180, %178 : vector<32x1xf32>
    %182 = arith.subf %179, %181 : vector<32x1xf32>
    %183 = arith.addf %98, %126 : vector<64x1xf32>
    %c0_i32 = arith.constant 0 : i32
    %c3_i32 = arith.constant 3 : i32
    %184 = arith.addi %c0_i32, %c3_i32 : i32
    %c1_i32 = arith.constant 1 : i32
    scf.for %arg14 = %c0_i32 to %184 step %c1_i32  : i32 {
      %c1_i32_133 = arith.constant 1 : i32
      %185 = arith.muli %arg14, %c1_i32_133 : i32
      %c0_i32_134 = arith.constant 0 : i32
      %186 = arith.addi %c0_i32_134, %185 : i32
      %c128_i32 = arith.constant 128 : i32
      %187 = arith.muli %186, %c128_i32 : i32
      %188 = tpu.assume_multiple %187, 128 : i32
      %c0_135 = arith.constant 0 : index
      %189 = arith.index_cast %188 : i32 to index
      %190 = vector.load %arg12[%c0_135, %189] : memref<96x384xf32, #tpu.memory_space<vmem>>, vector<64x128xf32>
      %191 = vector.broadcast %94 : vector<64x1xf32> to vector<64x128xf32>
      %192 = arith.mulf %190, %191 : vector<64x128xf32>
      %c0_136 = arith.constant 0 : index
      %193 = arith.index_cast %188 : i32 to index
      %194 = vector.load %arg13[%c0_136, %193] : memref<96x384xf32, #tpu.memory_space<vmem>>, vector<64x128xf32>
      %195 = vector.broadcast %122 : vector<64x1xf32> to vector<64x128xf32>
      %196 = arith.mulf %194, %195 : vector<64x128xf32>
      %197 = arith.addf %192, %196 : vector<64x128xf32>
      %198 = vector.broadcast %183 : vector<64x1xf32> to vector<64x128xf32>
      %199 = arith.addf %197, %198 : vector<64x128xf32>
      %200 = vector.extract_strided_slice %199 {offsets = [0, 0], sizes = [32, 128], strides = [1, 1]} : vector<64x128xf32> to vector<32x128xf32>
      %201 = vector.extract_strided_slice %199 {offsets = [32, 0], sizes = [32, 128], strides = [1, 1]} : vector<64x128xf32> to vector<32x128xf32>
      %c64_137 = arith.constant 64 : index
      %202 = arith.index_cast %188 : i32 to index
      %203 = vector.load %arg12[%c64_137, %202] : memref<96x384xf32, #tpu.memory_space<vmem>>, vector<32x128xf32>
      %204 = vector.broadcast %150 : vector<32x1xf32> to vector<32x128xf32>
      %205 = arith.mulf %203, %204 : vector<32x128xf32>
      %206 = vector.broadcast %154 : vector<32x1xf32> to vector<32x128xf32>
      %207 = arith.addf %205, %206 : vector<32x128xf32>
      %c64_138 = arith.constant 64 : index
      %208 = arith.index_cast %188 : i32 to index
      %209 = vector.load %arg13[%c64_138, %208] : memref<96x384xf32, #tpu.memory_space<vmem>>, vector<32x128xf32>
      %210 = vector.broadcast %178 : vector<32x1xf32> to vector<32x128xf32>
      %211 = arith.mulf %209, %210 : vector<32x128xf32>
      %212 = vector.broadcast %182 : vector<32x1xf32> to vector<32x128xf32>
      %213 = arith.addf %211, %212 : vector<32x128xf32>
      %cst_139 = arith.constant 5.000000e-01 : f32
      %214 = vector.broadcast %cst_139 : f32 to vector<32x128xf32>
      %215 = arith.mulf %214, %201 : vector<32x128xf32>
      %216 = math.tanh %215 : vector<32x128xf32>
      %cst_140 = arith.constant 5.000000e-01 : f32
      %217 = vector.broadcast %cst_140 : f32 to vector<32x128xf32>
      %218 = arith.mulf %217, %216 : vector<32x128xf32>
      %cst_141 = arith.constant 5.000000e-01 : f32
      %219 = vector.broadcast %cst_141 : f32 to vector<32x128xf32>
      %220 = arith.addf %218, %219 : vector<32x128xf32>
      %221 = arith.mulf %220, %213 : vector<32x128xf32>
      %222 = arith.addf %207, %221 : vector<32x128xf32>
      %223 = math.tanh %222 : vector<32x128xf32>
      %cst_142 = arith.constant 5.000000e-01 : f32
      %224 = vector.broadcast %cst_142 : f32 to vector<32x128xf32>
      %225 = arith.mulf %224, %200 : vector<32x128xf32>
      %226 = math.tanh %225 : vector<32x128xf32>
      %cst_143 = arith.constant 5.000000e-01 : f32
      %227 = vector.broadcast %cst_143 : f32 to vector<32x128xf32>
      %228 = arith.mulf %227, %226 : vector<32x128xf32>
      %cst_144 = arith.constant 5.000000e-01 : f32
      %229 = vector.broadcast %cst_144 : f32 to vector<32x128xf32>
      %230 = arith.addf %228, %229 : vector<32x128xf32>
      %c0_145 = arith.constant 0 : index
      %c0_146 = arith.constant 0 : index
      %231 = arith.index_cast %188 : i32 to index
      %232 = vector.load %arg4[%c0_145, %c0_146, %231] : memref<1x32x384xf32, #tpu.memory_space<vmem>>, vector<1x32x128xf32>
      %233 = vector.shape_cast %232 : vector<1x32x128xf32> to vector<32x128xf32>
      %cst_147 = arith.constant 1.000000e+00 : f32
      %234 = vector.broadcast %cst_147 : f32 to vector<32x128xf32>
      %235 = arith.subf %234, %230 : vector<32x128xf32>
      %236 = arith.mulf %235, %233 : vector<32x128xf32>
      %237 = arith.mulf %230, %223 : vector<32x128xf32>
      %238 = arith.addf %236, %237 : vector<32x128xf32>
      %c0_148 = arith.constant 0 : index
      %c0_149 = arith.constant 0 : index
      %239 = arith.index_cast %188 : i32 to index
      %240 = vector.load %arg9[%c0_148, %c0_149, %239] : memref<1x32x384xf32, #tpu.memory_space<vmem>>, vector<1x32x128xf32>
      %241 = vector.shape_cast %240 : vector<1x32x128xf32> to vector<32x128xf32>
      %242 = vector.shape_cast %238 : vector<32x128xf32> to vector<1x32x128xf32>
      tpu.vector_store %arg9[%c0_148, %c0_149, %239], %242 {strides = array<i32>} : memref<1x32x384xf32, #tpu.memory_space<vmem>>, vector<1x32x128xf32>,
    }
    %c3_i32_132 = arith.constant 3 : i32
    return
  }
  func.func @transform_0(%arg0: i32) -> (i32, i32) {
    %c0_i32 = arith.constant 0 : i32
    %c0_i32_0 = arith.constant 0 : i32
    %c0_i32_1 = arith.constant 0 : i32
    return %c0_i32, %c0_i32_0 : i32, i32
  }
  func.func @transform_1(%arg0: i32) -> (i32, i32, i32) {
    %c0_i32 = arith.constant 0 : i32
    %c0_i32_0 = arith.constant 0 : i32
    %c0_i32_1 = arith.constant 0 : i32
    return %arg0, %c0_i32, %c0_i32_0 : i32, i32, i32
  }
  func.func @transform_2(%arg0: i32) -> (i32, i32, i32) {
    %c0_i32 = arith.constant 0 : i32
    %c0_i32_0 = arith.constant 0 : i32
    %c0_i32_1 = arith.constant 0 : i32
    return %arg0, %c0_i32, %c0_i32_0 : i32, i32, i32
  }
  func.func @transform_3(%arg0: i32) -> (i32, i32, i32) {
    %c0_i32 = arith.constant 0 : i32
    %c0_i32_0 = arith.constant 0 : i32
    %c0_i32_1 = arith.constant 0 : i32
    return %arg0, %c0_i32, %c0_i32_0 : i32, i32, i32
  }
  func.func @transform_4(%arg0: i32) -> (i32, i32) {
    %c0_i32 = arith.constant 0 : i32
    %c0_i32_0 = arith.constant 0 : i32
    %c0_i32_1 = arith.constant 0 : i32
    return %c0_i32, %c0_i32_0 : i32, i32
  }
  func.func @transform_5(%arg0: i32) -> (i32, i32) {
    %c0_i32 = arith.constant 0 : i32
    %c0_i32_0 = arith.constant 0 : i32
    %c0_i32_1 = arith.constant 0 : i32
    return %c0_i32, %c0_i32_0 : i32, i32
  }
  func.func @transform_6(%arg0: i32) -> (i32, i32, i32) {
    %c0_i32 = arith.constant 0 : i32
    %c0_i32_0 = arith.constant 0 : i32
    %c0_i32_1 = arith.constant 0 : i32
    %c0_i32_2 = arith.constant 0 : i32
    return %c0_i32, %c0_i32_0, %c0_i32_1 : i32, i32, i32
  }
  func.func @transform_7(%arg0: i32) -> (i32, i32, i32) {
    %c0_i32 = arith.constant 0 : i32
    %c0_i32_0 = arith.constant 0 : i32
    %c0_i32_1 = arith.constant 0 : i32
    %c0_i32_2 = arith.constant 0 : i32
    return %c0_i32, %c0_i32_0, %c0_i32_1 : i32, i32, i32
  }
  func.func @transform_8(%arg0: i32) -> (i32, i32, i32) {
    %c0_i32 = arith.constant 0 : i32
    %c0_i32_0 = arith.constant 0 : i32
    %c0_i32_1 = arith.constant 0 : i32
    return %arg0, %c0_i32, %c0_i32_0 : i32, i32, i32
  }
}

</mosaic_0001>

<llo_original>
// kernel: tpu_custom_call.1
$region0: #{tpu_custom_call.1}
  #allocation0 [shape = 'u32[]', space=smem, size = 0x4, offset = 0x4, fixed_abs, tag = 'smem constant byte address 0x4 - core index']
  #allocation1 [shape = 'u32[144,128]{1,0:T(1,128)}', space=vmem, size = 0x12000, scoped, tag = 'internal scratch']
  #allocation2 [shape = 'bf16[144,384]{1,0:T(8,128)(2,1)}', space=vmem, size = 0x1b000, scoped, tag = 'scratch operand']
  #allocation3 [shape = 'bf16[288,384]{1,0:T(8,128)(2,1)}', space=vmem, size = 0x36000, scoped, tag = 'scratch operand']
  #allocation4 [shape = 'f32[96,384]{1,0:T(8,128)}', space=vmem, size = 0x24000, scoped, tag = 'scratch operand']
  #allocation5 [shape = 'f32[96,384]{1,0:T(8,128)}', space=vmem, size = 0x24000, scoped, tag = 'scratch operand']
  %s0 = inlined_call_operand.vmem [shape: f32[1,384], index: 0, kind: input, shape index: {}]
  %s1 = inlined_call_operand.vmem [shape: bf16[2,16,512], index: 1, kind: input, shape index: {}]
  %s2 = inlined_call_operand.vmem [shape: bf16[2,32,512], index: 2, kind: input, shape index: {}]
  %s3 = inlined_call_operand.vmem [shape: f32[2,32,384], index: 3, kind: input, shape index: {}]
  %s4 = inlined_call_operand.vmem [shape: bf16[96,144], index: 4, kind: input, shape index: {}]
  %s5 = inlined_call_operand.vmem [shape: bf16[96,288], index: 5, kind: input, shape index: {}]
  %s6 = inlined_call_operand.vmem [shape: f32[2,96,1], index: 6, kind: input, shape index: {}]
  %s7 = inlined_call_operand.vmem [shape: f32[2,96,1], index: 7, kind: input, shape index: {}]
  %s8 = inlined_call_operand.hbm [shape: f32[2,32,384], index: 8, kind: output, shape index: {}]
  %s9 = sld [smem:[#allocation0]]
  $region72: #{tpu_custom_call.1} parent=0
    _
  %s11 = ssub.s32 1, %s9
  %s12 = scalar_select 0, %s11, %s9
  $region1: #{tpu_custom_call.1} parent=0
    #allocation6 [shape = 'u8[98304]{0}', space=vmem, size = 0x18000, scoped, tag = 'output window, operand 0']
    #allocation7 [shape = 's32[2]{0}', space=sflag, size = 0x8, scoped, tag = 'scoped memory for tpu_custom_call.1']
    %13 = vsyncpa [#allocation7], 0
    %s14 = scalar_lea.sflag [#allocation7], 1
    %15 = vsyncpa %s14, 0
    loop: start=0, step=1, limit=4
    $region2: #{tpu_custom_call.1} parent=1 // loop_pre_header
      _
    $region3: #{tpu_custom_call.1} parent=1 // loop_header
      %s17 = sphi 0, %s21
      %p18 = scmp.ge.s32.totalorder %s17, 4
      %s25 = sphi 0, %s25
      %s27 = sphi 0, %s25
      %s28 = sphi 0, %s27
      %s42 = sphi 0, %s28
      %s48 = sphi 0, %s50
      %s51 = sphi 0, %s48
      %s52 = sphi 0, %s51
      %s68 = sphi 0, %s52
      %s74 = sphi 0, %s76
      %s77 = sphi 0, %s74
      %s78 = sphi 0, %s77
      %s94 = sphi 0, %s78
      %s100 = sphi 0, %s102
      %s103 = sphi 0, %s100
      %s104 = sphi 0, %s103
      %s120 = sphi 0, %s104
      %s124 = sphi 0, %s124
      %s126 = sphi 0, %s124
      %s127 = sphi 0, %s126
      %s141 = sphi 0, %s127
      %s145 = sphi 0, %s145
      %s147 = sphi 0, %s145
      %s148 = sphi 0, %s147
      %s162 = sphi 0, %s148
      %s166 = sphi 0, %s166
      %s168 = sphi 0, %s166
      %s169 = sphi 0, %s168
      %s183 = sphi 0, %s169
      %s187 = sphi 0, %s187
      %s189 = sphi 0, %s187
      %s190 = sphi 0, %s189
      %s204 = sphi 0, %s190
      %s210 = sphi 0, %s212
      %s213 = sphi 0, %s210
      %s214 = sphi 0, %s213
      %s230 = sphi 0, %s214
    $region4: #{tpu_custom_call.1} parent=1 // loop_header_branch
      %20 = sbr.rel (%p18) target = $region8
    $region5: #{tpu_custom_call.1} parent=1 // loop_body
      %s22 = ssub.s32 %s17, 1
      %s23 = ssub.s32 %s17, 2
      %s24 = sadd.s32 %s17, 1
      %s26 = sadd.s32 %s25, 1
      %p29 = scmp.eq.s32.totalorder %s17, 1
      %p30 = scmp.ne.s32.totalorder %s25, %s27
      %p31 = scmp.eq.s32.totalorder %s17, 0
      %p32 = por %p30, %p31
      %p33 = scmp.ne.s32.totalorder %s25, %s27
      %p34 = scmp.eq.s32.totalorder %s22, 1
      %p35 = por %p33, %p34
      %p36 = scmp.ne.s32.totalorder %s27, %s28
      %p37 = scmp.eq.s32.totalorder %s22, 0
      %p38 = por %p36, %p37
      %p39 = scmp.ne.s32.totalorder %s27, %s28
      %p40 = scmp.eq.s32.totalorder %s23, 1
      %p41 = por %p39, %p40
      %p43 = scmp.ne.s32.totalorder %s28, %s42
      %p44 = scmp.eq.s32.totalorder %s23, 0
      %p45 = por %p43, %p44
      %s46 = ssub.s32 %s17, %s24
      %p47 = scmp.eq.s32.totalorder %s46, 0
      %s49 = sadd.s32 %s48, 1
      %s50 = scalar_select %p47, %s48, %s49
      %p53 = pneg %p47
      %p54 = scmp.eq.s32.totalorder %s17, 1
      %p55 = por %p53, %p54
      %p56 = scmp.ne.s32.totalorder %s48, %s51
      %p57 = scmp.eq.s32.totalorder %s17, 0
      %p58 = por %p56, %p57
      %p59 = scmp.ne.s32.totalorder %s48, %s51
      %p60 = scmp.eq.s32.totalorder %s22, 1
      %p61 = por %p59, %p60
      %p62 = scmp.ne.s32.totalorder %s51, %s52
      %p63 = scmp.eq.s32.totalorder %s22, 0
      %p64 = por %p62, %p63
      %p65 = scmp.ne.s32.totalorder %s51, %s52
      %p66 = scmp.eq.s32.totalorder %s23, 1
      %p67 = por %p65, %p66
      %p69 = scmp.ne.s32.totalorder %s52, %s68
      %p70 = scmp.eq.s32.totalorder %s23, 0
      %p71 = por %p69, %p70
      %s72 = ssub.s32 %s17, %s24
      %p73 = scmp.eq.s32.totalorder %s72, 0
      %s75 = sadd.s32 %s74, 1
      %s76 = scalar_select %p73, %s74, %s75
      %p79 = pneg %p73
      %p80 = scmp.eq.s32.totalorder %s17, 1
      %p81 = por %p79, %p80
      %p82 = scmp.ne.s32.totalorder %s74, %s77
      %p83 = scmp.eq.s32.totalorder %s17, 0
      %p84 = por %p82, %p83
      %p85 = scmp.ne.s32.totalorder %s74, %s77
      %p86 = scmp.eq.s32.totalorder %s22, 1
      %p87 = por %p85, %p86
      %p88 = scmp.ne.s32.totalorder %s77, %s78
      %p89 = scmp.eq.s32.totalorder %s22, 0
      %p90 = por %p88, %p89
      %p91 = scmp.ne.s32.totalorder %s77, %s78
      %p92 = scmp.eq.s32.totalorder %s23, 1
      %p93 = por %p91, %p92
      %p95 = scmp.ne.s32.totalorder %s78, %s94
      %p96 = scmp.eq.s32.totalorder %s23, 0
      %p97 = por %p95, %p96
      %s98 = ssub.s32 %s17, %s24
      %p99 = scmp.eq.s32.totalorder %s98, 0
      %s101 = sadd.s32 %s100, 1
      %s102 = scalar_select %p99, %s100, %s101
      %p105 = pneg %p99
      %p106 = scmp.eq.s32.totalorder %s17, 1
      %p107 = por %p105, %p106
      %p108 = scmp.ne.s32.totalorder %s100, %s103
      %p109 = scmp.eq.s32.totalorder %s17, 0
      %p110 = por %p108, %p109
      %p111 = scmp.ne.s32.totalorder %s100, %s103
      %p112 = scmp.eq.s32.totalorder %s22, 1
      %p113 = por %p111, %p112
      %p114 = scmp.ne.s32.totalorder %s103, %s104
      %p115 = scmp.eq.s32.totalorder %s22, 0
      %p116 = por %p114, %p115
      %p117 = scmp.ne.s32.totalorder %s103, %s104
      %p118 = scmp.eq.s32.totalorder %s23, 1
      %p119 = por %p117, %p118
      %p121 = scmp.ne.s32.totalorder %s104, %s120
      %p122 = scmp.eq.s32.totalorder %s23, 0
      %p123 = por %p121, %p122
      %s125 = sadd.s32 %s124, 1
      %p128 = scmp.eq.s32.totalorder %s17, 1
      %p129 = scmp.ne.s32.totalorder %s124, %s126
      %p130 = scmp.eq.s32.totalorder %s17, 0
      %p131 = por %p129, %p130
      %p132 = scmp.ne.s32.totalorder %s124, %s126
      %p133 = scmp.eq.s32.totalorder %s22, 1
      %p134 = por %p132, %p133
      %p135 = scmp.ne.s32.totalorder %s126, %s127
      %p136 = scmp.eq.s32.totalorder %s22, 0
      %p137 = por %p135, %p136
      %p138 = scmp.ne.s32.totalorder %s126, %s127
      %p139 = scmp.eq.s32.totalorder %s23, 1
      %p140 = por %p138, %p139
      %p142 = scmp.ne.s32.totalorder %s127, %s141
      %p143 = scmp.eq.s32.totalorder %s23, 0
      %p144 = por %p142, %p143
      %s146 = sadd.s32 %s145, 1
      %p149 = scmp.eq.s32.totalorder %s17, 1
      %p150 = scmp.ne.s32.totalorder %s145, %s147
      %p151 = scmp.eq.s32.totalorder %s17, 0
      %p152 = por %p150, %p151
      %p153 = scmp.ne.s32.totalorder %s145, %s147
      %p154 = scmp.eq.s32.totalorder %s22, 1
      %p155 = por %p153, %p154
      %p156 = scmp.ne.s32.totalorder %s147, %s148
      %p157 = scmp.eq.s32.totalorder %s22, 0
      %p158 = por %p156, %p157
      %p159 = scmp.ne.s32.totalorder %s147, %s148
      %p160 = scmp.eq.s32.totalorder %s23, 1
      %p161 = por %p159, %p160
      %p163 = scmp.ne.s32.totalorder %s148, %s162
      %p164 = scmp.eq.s32.totalorder %s23, 0
      %p165 = por %p163, %p164
      %s167 = sadd.s32 %s166, 1
      %p170 = scmp.eq.s32.totalorder %s17, 1
      %p171 = scmp.ne.s32.totalorder %s166, %s168
      %p172 = scmp.eq.s32.totalorder %s17, 0
      %p173 = por %p171, %p172
      %p174 = scmp.ne.s32.totalorder %s166, %s168
      %p175 = scmp.eq.s32.totalorder %s22, 1
      %p176 = por %p174, %p175
      %p177 = scmp.ne.s32.totalorder %s168, %s169
      %p178 = scmp.eq.s32.totalorder %s22, 0
      %p179 = por %p177, %p178
      %p180 = scmp.ne.s32.totalorder %s168, %s169
      %p181 = scmp.eq.s32.totalorder %s23, 1
      %p182 = por %p180, %p181
      %p184 = scmp.ne.s32.totalorder %s169, %s183
      %p185 = scmp.eq.s32.totalorder %s23, 0
      %p186 = por %p184, %p185
      %s188 = sadd.s32 %s187, 1
      %p191 = scmp.eq.s32.totalorder %s17, 1
      %p192 = scmp.ne.s32.totalorder %s187, %s189
      %p193 = scmp.eq.s32.totalorder %s17, 0
      %p194 = por %p192, %p193
      %p195 = scmp.ne.s32.totalorder %s187, %s189
      %p196 = scmp.eq.s32.totalorder %s22, 1
      %p197 = por %p195, %p196
      %p198 = scmp.ne.s32.totalorder %s189, %s190
      %p199 = scmp.eq.s32.totalorder %s22, 0
      %p200 = por %p198, %p199
      %p201 = scmp.ne.s32.totalorder %s189, %s190
      %p202 = scmp.eq.s32.totalorder %s23, 1
      %p203 = por %p201, %p202
      %p205 = scmp.ne.s32.totalorder %s190, %s204
      %p206 = scmp.eq.s32.totalorder %s23, 0
      %p207 = por %p205, %p206
      %s208 = ssub.s32 %s17, %s24
      %p209 = scmp.eq.s32.totalorder %s208, 0
      %s211 = sadd.s32 %s210, 1
      %s212 = scalar_select %p209, %s210, %s211
      %p215 = pneg %p209
      %p216 = scmp.eq.s32.totalorder %s17, 1
      %p217 = por %p215, %p216
      %p218 = scmp.ne.s32.totalorder %s210, %s213
      %p219 = scmp.eq.s32.totalorder %s17, 0
      %p220 = por %p218, %p219
      %p221 = scmp.ne.s32.totalorder %s210, %s213
      %p222 = scmp.eq.s32.totalorder %s22, 1
      %p223 = por %p221, %p222
      %p224 = scmp.ne.s32.totalorder %s213, %s214
      %p225 = scmp.eq.s32.totalorder %s22, 0
      %p226 = por %p224, %p225
      %p227 = scmp.ne.s32.totalorder %s213, %s214
      %p228 = scmp.eq.s32.totalorder %s23, 1
      %p229 = por %p227, %p228
      %p231 = scmp.ne.s32.totalorder %s214, %s230
      %p232 = scmp.eq.s32.totalorder %s23, 0
      %p233 = por %p231, %p232
      %p234 = scmp.le.s32.totalorder 1, %s17
      %p235 = scmp.lt.s32.totalorder %s17, 3
      %p236 = pnand %p234, %p235
      %p237 = pneg %p236
      // Predicated region
      $region9: #{tpu_custom_call.1} parent=5 // pred_check
        _
      $region10: #{tpu_custom_call.1} parent=5 // pred_check_branch
        %239 = sbr.rel (%p236) target = $region12
      $region11: #{tpu_custom_call.1} parent=5 // pred_region
        %s240 = ssub.s32 %s17, 1
        // Predicated region
        $region13: #{tpu_custom_call.1} parent=11 // pred_check
          %p241 = pneg %p38
        $region14: #{tpu_custom_call.1} parent=11 // pred_check_branch
          %243 = sbr.rel (%p241) target = $region16
        $region15: #{tpu_custom_call.1} parent=11 // pred_region
          _
        $region16: #{tpu_custom_call.1} parent=11 // pred_fallthru
          _
        // Predicated region
        $region17: #{tpu_custom_call.1} parent=11 // pred_check
          %p244 = pneg %p137
        $region18: #{tpu_custom_call.1} parent=11 // pred_check_branch
          %246 = sbr.rel (%p244) target = $region20
        $region19: #{tpu_custom_call.1} parent=11 // pred_region
          _
        $region20: #{tpu_custom_call.1} parent=11 // pred_fallthru
          _
        // Predicated region
        $region21: #{tpu_custom_call.1} parent=11 // pred_check
          %p247 = pneg %p158
        $region22: #{tpu_custom_call.1} parent=11 // pred_check_branch
          %249 = sbr.rel (%p247) target = $region24
        $region23: #{tpu_custom_call.1} parent=11 // pred_region
          _
        $region24: #{tpu_custom_call.1} parent=11 // pred_fallthru
          _
        // Predicated region
        $region25: #{tpu_custom_call.1} parent=11 // pred_check
          %p250 = pneg %p179
        $region26: #{tpu_custom_call.1} parent=11 // pred_check_branch
          %252 = sbr.rel (%p250) target = $region28
        $region27: #{tpu_custom_call.1} parent=11 // pred_region
          _
        $region28: #{tpu_custom_call.1} parent=11 // pred_fallthru
          _
        // Predicated region
        $region29: #{tpu_custom_call.1} parent=11 // pred_check
          %p253 = pneg %p200
        $region30: #{tpu_custom_call.1} parent=11 // pred_check_branch
          %255 = sbr.rel (%p253) target = $region32
        $region31: #{tpu_custom_call.1} parent=11 // pred_region
          _
        $region32: #{tpu_custom_call.1} parent=11 // pred_fallthru
          _
      $region12: #{tpu_custom_call.1} parent=5 // pred_fallthru
        _
      %p256 = scmp.lt.s32.totalorder %s17, 2
      // Predicated region
      $region33: #{tpu_custom_call.1} parent=5 // pred_check
        %p257 = pneg %p256
      $region34: #{tpu_custom_call.1} parent=5 // pred_check_branch
        %259 = sbr.rel (%p257) target = $region36
      $region35: #{tpu_custom_call.1} parent=5 // pred_region
        // Predicated region
        $region37: #{tpu_custom_call.1} parent=35 // pred_check
          %p260 = pneg %p58
        $region38: #{tpu_custom_call.1} parent=35 // pred_check_branch
          %262 = sbr.rel (%p260) target = $region40
        $region39: #{tpu_custom_call.1} parent=35 // pred_region
          %p263 = scmp.lt.s32.totalorder %s17, 1
          %s264 = scalar_select %p263, %s17, 1
          %s265 = smul.addr %s264, 8
          %s266 = smul.addr %s265, 4
          %s267 = scalar_lea.vmem %s1, %s266
        $region40: #{tpu_custom_call.1} parent=35 // pred_fallthru
          _
        // Predicated region
        $region41: #{tpu_custom_call.1} parent=35 // pred_check
          %p268 = pneg %p84
        $region42: #{tpu_custom_call.1} parent=35 // pred_check_branch
          %270 = sbr.rel (%p268) target = $region44
        $region43: #{tpu_custom_call.1} parent=35 // pred_region
          %p271 = scmp.lt.s32.totalorder %s17, 1
          %s272 = scalar_select %p271, %s17, 1
          %s273 = smul.addr %s272, 16
          %s274 = smul.addr %s273, 4
          %s275 = scalar_lea.vmem %s2, %s274
        $region44: #{tpu_custom_call.1} parent=35 // pred_fallthru
          _
        // Predicated region
        $region45: #{tpu_custom_call.1} parent=35 // pred_check
          %p276 = pneg %p110
        $region46: #{tpu_custom_call.1} parent=35 // pred_check_branch
          %278 = sbr.rel (%p276) target = $region48
        $region47: #{tpu_custom_call.1} parent=35 // pred_region
          %p279 = scmp.lt.s32.totalorder %s17, 1
          %s280 = scalar_select %p279, %s17, 1
          %s281 = smul.addr %s280, 12
          %s282 = smul.addr %s281, 8
          %s283 = scalar_lea.vmem %s3, %s282
        $region48: #{tpu_custom_call.1} parent=35 // pred_fallthru
          _
      $region36: #{tpu_custom_call.1} parent=5 // pred_fallthru
        _
      %p284 = scmp.le.s32.totalorder 1, %s17
      %p285 = scmp.lt.s32.totalorder %s17, 3
      %p286 = pnand %p284, %p285
      %p287 = pneg %p286
      // Predicated region
      $region49: #{tpu_custom_call.1} parent=5 // pred_check
        _
      $region50: #{tpu_custom_call.1} parent=5 // pred_check_branch
        %289 = sbr.rel (%p286) target = $region52
      $region51: #{tpu_custom_call.1} parent=5 // pred_region
        %s290 = ssub.s32 %s17, 1
        %p291 = pneg %p38
        %p292 = pneg %p35
        %p293 = scmp.lt.s32.totalorder %s22, 1
        %s294 = scalar_select %p293, %s22, 1
        %s295 = smul.addr %s294, 8
        %s296 = smul.addr %s295, 4
        %s297 = scalar_lea.vmem %s1, %s296
        %p298 = pneg %p64
        %p299 = pneg %p61
        %p300 = scmp.lt.s32.totalorder %s22, 1
        %s301 = scalar_select %p300, %s22, 1
        %s302 = smul.addr %s301, 16
        %s303 = smul.addr %s302, 4
        %s304 = scalar_lea.vmem %s2, %s303
        %p305 = pneg %p90
        %p306 = pneg %p87
        %p307 = scmp.lt.s32.totalorder %s22, 1
        %s308 = scalar_select %p307, %s22, 1
        %s309 = smul.addr %s308, 12
        %s310 = smul.addr %s309, 8
        %s311 = scalar_lea.vmem %s3, %s310
        %p312 = pneg %p116
        %p313 = pneg %p113
        %p314 = pneg %p137
        %p315 = pneg %p134
        %p316 = pneg %p158
        %p317 = pneg %p155
        %p318 = pneg %p179
        %p319 = pneg %p176
        %p320 = pneg %p200
        %p321 = pneg %p197
        %p322 = pneg %p226
        %p323 = pneg %p223
        %s324 = sand.u32 %s213, 1
        %s325 = scalar_lea.sflag [#allocation7], %s324
        %s326 = sand.u32 %s213, 1
        %s327 = smul.addr %s326, 96
        %s328 = scalar_lea.vmem [#allocation6], %s327
        %p329 = scmp.lt.s32.totalorder %s22, 1
        %s330 = scalar_select %p329, %s22, 1
        %s331 = smul.addr %s330, 8
        %s332 = smul.addr %s331, 4
        %s333 = scalar_lea.vmem %s1, %s332
        %p334 = scmp.lt.s32.totalorder %s22, 1
        %s335 = scalar_select %p334, %s22, 1
        %s336 = smul.addr %s335, 16
        %s337 = smul.addr %s336, 4
        %s338 = scalar_lea.vmem %s2, %s337
        %p339 = scmp.lt.s32.totalorder %s22, 1
        %s340 = scalar_select %p339, %s22, 1
        %s341 = smul.addr %s340, 12
        %s342 = smul.addr %s341, 8
        %s343 = scalar_lea.vmem %s3, %s342
        %v345 = vld [vmem:[%s0] sm:$0x7]
        %v346 = vld [vmem:[%s6] sm:$0xff]
        %v347 = vld [vmem:[%s6 + $0x8] sm:$0xff]
        %v348 = vld [vmem:[%s6 + $0x10] sm:$0xff]
        %v349 = vld [vmem:[%s6 + $0x18] sm:$0xff]
        %v350 = vld [vmem:[%s6 + $0x20] sm:$0xff]
        %v351 = vld [vmem:[%s6 + $0x28] sm:$0xff]
        %v352 = vld [vmem:[%s6 + $0x30] sm:$0xff]
        %v353 = vld [vmem:[%s6 + $0x38] sm:$0xff]
        %v354 = vld [vmem:[%s6 + $0x40] sm:$0xff]
        %v355 = vld [vmem:[%s6 + $0x48] sm:$0xff]
        %v356 = vld [vmem:[%s6 + $0x50] sm:$0xff]
        %v357 = vld [vmem:[%s6 + $0x58] sm:$0xff]
        %s358 = scalar_lea.vmem %s6, 96
        %v359 = vld [vmem:[%s358] sm:$0xff]
        %v360 = vld [vmem:[%s358 + $0x8] sm:$0xff]
        %v361 = vld [vmem:[%s358 + $0x10] sm:$0xff]
        %v362 = vld [vmem:[%s358 + $0x18] sm:$0xff]
        %v363 = vld [vmem:[%s358 + $0x20] sm:$0xff]
        %v364 = vld [vmem:[%s358 + $0x28] sm:$0xff]
        %v365 = vld [vmem:[%s358 + $0x30] sm:$0xff]
        %v366 = vld [vmem:[%s358 + $0x38] sm:$0xff]
        %v367 = vld [vmem:[%s358 + $0x40] sm:$0xff]
        %v368 = vld [vmem:[%s358 + $0x48] sm:$0xff]
        %v369 = vld [vmem:[%s358 + $0x50] sm:$0xff]
        %v370 = vld [vmem:[%s358 + $0x58] sm:$0xff]
        %v371 = vld [vmem:[%s7] sm:$0xff]
        %v372 = vld [vmem:[%s7 + $0x8] sm:$0xff]
        %v373 = vld [vmem:[%s7 + $0x10] sm:$0xff]
        %v374 = vld [vmem:[%s7 + $0x18] sm:$0xff]
        %v375 = vld [vmem:[%s7 + $0x20] sm:$0xff]
        %v376 = vld [vmem:[%s7 + $0x28] sm:$0xff]
        %v377 = vld [vmem:[%s7 + $0x30] sm:$0xff]
        %v378 = vld [vmem:[%s7 + $0x38] sm:$0xff]
        %v379 = vld [vmem:[%s7 + $0x40] sm:$0xff]
        %v380 = vld [vmem:[%s7 + $0x48] sm:$0xff]
        %v381 = vld [vmem:[%s7 + $0x50] sm:$0xff]
        %v382 = vld [vmem:[%s7 + $0x58] sm:$0xff]
        %s383 = scalar_lea.vmem %s7, 96
        %v384 = vld [vmem:[%s383] sm:$0xff]
        %v385 = vld [vmem:[%s383 + $0x8] sm:$0xff]
        %v386 = vld [vmem:[%s383 + $0x10] sm:$0xff]
        %v387 = vld [vmem:[%s383 + $0x18] sm:$0xff]
        %v388 = vld [vmem:[%s383 + $0x20] sm:$0xff]
        %v389 = vld [vmem:[%s383 + $0x28] sm:$0xff]
        %v390 = vld [vmem:[%s383 + $0x30] sm:$0xff]
        %v391 = vld [vmem:[%s383 + $0x38] sm:$0xff]
        %v392 = vld [vmem:[%s383 + $0x40] sm:$0xff]
        %v393 = vld [vmem:[%s383 + $0x48] sm:$0xff]
        %v394 = vld [vmem:[%s383 + $0x50] sm:$0xff]
        %v395 = vld [vmem:[%s383 + $0x58] sm:$0xff]
        %v396 = vld [vmem:[%s333] sm:$0xff]
        %v397 = vld [vmem:[%s333 + $0x8] sm:$0xf]
        %v398 = vld [vmem:[%s333 + $0x10] sm:$0xff]
        %v399 = vld [vmem:[%s333 + $0x18] sm:$0xf]
        %400 = vst [vmem:[#allocation2] sm:$0xff] %v396
        %401 = vst [vmem:[#allocation2 + $0x8] sm:$0xf] %v397
        %402 = vst [vmem:[#allocation2 + $0xc] sm:$0xff] %v398
        %403 = vst [vmem:[#allocation2 + $0x14] sm:$0xf] %v399
        %v404 = vld [vmem:[%s338] sm:$0xff]
        %v405 = vld [vmem:[%s338 + $0x8] sm:$0xf]
        %v406 = vld [vmem:[%s338 + $0x10] sm:$0xff]
        %v407 = vld [vmem:[%s338 + $0x18] sm:$0xf]
        %v408 = vld [vmem:[%s338 + $0x20] sm:$0xff]
        %v409 = vld [vmem:[%s338 + $0x28] sm:$0xf]
        %v410 = vld [vmem:[%s338 + $0x30] sm:$0xff]
        %v411 = vld [vmem:[%s338 + $0x38] sm:$0xf]
        %412 = vst [vmem:[#allocation3] sm:$0xff] %v404
        %413 = vst [vmem:[#allocation3 + $0x8] sm:$0xf] %v405
        %414 = vst [vmem:[#allocation3 + $0xc] sm:$0xff] %v406
        %415 = vst [vmem:[#allocation3 + $0x14] sm:$0xf] %v407
        %416 = vst [vmem:[#allocation3 + $0x18] sm:$0xff] %v408
        %417 = vst [vmem:[#allocation3 + $0x20] sm:$0xf] %v409
        %418 = vst [vmem:[#allocation3 + $0x24] sm:$0xff] %v410
        %419 = vst [vmem:[#allocation3 + $0x2c] sm:$0xf] %v411
        %v420 = vld [vmem:[%s333] sm:$0xff]
        %v421 = vld [vmem:[%s333 + $0x8] sm:$0xff]
        %v422 = vld [vmem:[%s333 + $0x10] sm:$0xff]
        %v423 = vld [vmem:[%s333 + $0x18] sm:$0xff]
        %428 = vrot.lane.b32.xlu0 %v420, 127
        %v429 = vpop.permute.xlu0 %428
        %430 = vrot.lane.b32.xlu0 %v421, 127
        %v431 = vpop.permute.xlu0 %430
        %432 = vrot.lane.b32.xlu0 %v422, 127
        %v433 = vpop.permute.xlu0 %432
        %434 = vrot.lane.b32.xlu0 %v423, 127
        %v435 = vpop.permute.xlu0 %434
        %v436 = vrot.slane %v429, 4
        %v437 = vrot.slane %v431, 4
        %v438 = vrot.slane %v433, 4
        %v439 = vrot.slane %v435, 4
        %vm440 = vcmask 1043456
        %v441 = vsel %vm440, %v436, %v437
        %vm442 = vcmask 1039360
        %v443 = vsel %vm442, %v429, %v441
        %v444 = vsel %vm442, %v431, %v437
        %v445 = vsel %vm440, %v438, %v439
        %v446 = vsel %vm442, %v433, %v445
        %v447 = vsel %vm442, %v435, %v439
        %452 = vst [vmem:[#allocation2 + $0x18] sm:$0xff] %v443
        %453 = vst [vmem:[#allocation2 + $0x20] sm:$0xf] %v444
        %454 = vst [vmem:[#allocation2 + $0x24] sm:$0xff] %v446
        %455 = vst [vmem:[#allocation2 + $0x2c] sm:$0xf] %v447
        %v456 = vld [vmem:[%s338] sm:$0xff]
        %v457 = vld [vmem:[%s338 + $0x8] sm:$0xff]
        %v458 = vld [vmem:[%s338 + $0x10] sm:$0xff]
        %v459 = vld [vmem:[%s338 + $0x18] sm:$0xff]
        %v460 = vld [vmem:[%s338 + $0x20] sm:$0xff]
        %v461 = vld [vmem:[%s338 + $0x28] sm:$0xff]
        %v462 = vld [vmem:[%s338 + $0x30] sm:$0xff]
        %v463 = vld [vmem:[%s338 + $0x38] sm:$0xff]
        %472 = vrot.lane.b32.xlu0 %v456, 127
        %v473 = vpop.permute.xlu0 %472
        %474 = vrot.lane.b32.xlu0 %v457, 127
        %v475 = vpop.permute.xlu0 %474
        %476 = vrot.lane.b32.xlu0 %v458, 127
        %v477 = vpop.permute.xlu0 %476
        %478 = vrot.lane.b32.xlu0 %v459, 127
        %v479 = vpop.permute.xlu0 %478
        %480 = vrot.lane.b32.xlu0 %v460, 127
        %v481 = vpop.permute.xlu0 %480
        %482 = vrot.lane.b32.xlu0 %v461, 127
        %v483 = vpop.permute.xlu0 %482
        %484 = vrot.lane.b32.xlu0 %v462, 127
        %v485 = vpop.permute.xlu0 %484
        %486 = vrot.lane.b32.xlu0 %v463, 127
        %v487 = vpop.permute.xlu0 %486
        %v488 = vrot.slane %v473, 4
        %v489 = vrot.slane %v475, 4
        %v490 = vrot.slane %v477, 4
        %v491 = vrot.slane %v479, 4
        %v492 = vrot.slane %v481, 4
        %v493 = vrot.slane %v483, 4
        %v494 = vrot.slane %v485, 4
        %v495 = vrot.slane %v487, 4
        %v496 = vsel %vm440, %v488, %v489
        %v497 = vsel %vm442, %v473, %v496
        %v498 = vsel %vm442, %v475, %v489
        %v499 = vsel %vm440, %v490, %v491
        %v500 = vsel %vm442, %v477, %v499
        %v501 = vsel %vm442, %v479, %v491
        %v502 = vsel %vm440, %v492, %v493
        %v503 = vsel %vm442, %v481, %v502
        %v504 = vsel %vm442, %v483, %v493
        %v505 = vsel %vm440, %v494, %v495
        %v506 = vsel %vm442, %v485, %v505
        %v507 = vsel %vm442, %v487, %v495
        %516 = vst [vmem:[#allocation3 + $0x30] sm:$0xff] %v497
        %517 = vst [vmem:[#allocation3 + $0x38] sm:$0xf] %v498
        %518 = vst [vmem:[#allocation3 + $0x3c] sm:$0xff] %v500
        %519 = vst [vmem:[#allocation3 + $0x44] sm:$0xf] %v501
        %520 = vst [vmem:[#allocation3 + $0x48] sm:$0xff] %v503
        %521 = vst [vmem:[#allocation3 + $0x50] sm:$0xf] %v504
        %522 = vst [vmem:[#allocation3 + $0x54] sm:$0xff] %v506
        %523 = vst [vmem:[#allocation3 + $0x5c] sm:$0xf] %v507
        %v524 = vld [vmem:[%s333] sm:$0xff]
        %v525 = vld [vmem:[%s333 + $0x8] sm:$0xff]
        %v526 = vld [vmem:[%s333 + $0x10] sm:$0xff]
        %v527 = vld [vmem:[%s333 + $0x18] sm:$0xff]
        %532 = vrot.lane.b32.xlu0 %v524, 126
        %v533 = vpop.permute.xlu0 %532
        %534 = vrot.lane.b32.xlu0 %v525, 126
        %v535 = vpop.permute.xlu0 %534
        %536 = vrot.lane.b32.xlu0 %v526, 126
        %v537 = vpop.permute.xlu0 %536
        %538 = vrot.lane.b32.xlu0 %v527, 126
        %v539 = vpop.permute.xlu0 %538
        %v540 = vrot.slane %v533, 4
        %v541 = vrot.slane %v535, 4
        %v542 = vrot.slane %v537, 4
        %v543 = vrot.slane %v539, 4
        %v544 = vsel %vm440, %v540, %v541
        %vm545 = vcmask 1031168
        %v546 = vsel %vm545, %v533, %v544
        %v547 = vsel %vm545, %v535, %v541
        %v548 = vsel %vm440, %v542, %v543
        %v549 = vsel %vm545, %v537, %v548
        %v550 = vsel %vm545, %v539, %v543
        %555 = vst [vmem:[#allocation2 + $0x30] sm:$0xff] %v546
        %556 = vst [vmem:[#allocation2 + $0x38] sm:$0xf] %v547
        %557 = vst [vmem:[#allocation2 + $0x3c] sm:$0xff] %v549
        %558 = vst [vmem:[#allocation2 + $0x44] sm:$0xf] %v550
        %v559 = vld [vmem:[%s338] sm:$0xff]
        %v560 = vld [vmem:[%s338 + $0x8] sm:$0xff]
        %v561 = vld [vmem:[%s338 + $0x10] sm:$0xff]
        %v562 = vld [vmem:[%s338 + $0x18] sm:$0xff]
        %v563 = vld [vmem:[%s338 + $0x20] sm:$0xff]
        %v564 = vld [vmem:[%s338 + $0x28] sm:$0xff]
        %v565 = vld [vmem:[%s338 + $0x30] sm:$0xff]
        %v566 = vld [vmem:[%s338 + $0x38] sm:$0xff]
        %575 = vrot.lane.b32.xlu0 %v559, 126
        %v576 = vpop.permute.xlu0 %575
        %577 = vrot.lane.b32.xlu0 %v560, 126
        %v578 = vpop.permute.xlu0 %577
        %579 = vrot.lane.b32.xlu0 %v561, 126
        %v580 = vpop.permute.xlu0 %579
        %581 = vrot.lane.b32.xlu0 %v562, 126
        %v582 = vpop.permute.xlu0 %581
        %583 = vrot.lane.b32.xlu0 %v563, 126
        %v584 = vpop.permute.xlu0 %583
        %585 = vrot.lane.b32.xlu0 %v564, 126
        %v586 = vpop.permute.xlu0 %585
        %587 = vrot.lane.b32.xlu0 %v565, 126
        %v588 = vpop.permute.xlu0 %587
        %589 = vrot.lane.b32.xlu0 %v566, 126
        %v590 = vpop.permute.xlu0 %589
        %v591 = vrot.slane %v576, 4
        %v592 = vrot.slane %v578, 4
        %v593 = vrot.slane %v580, 4
        %v594 = vrot.slane %v582, 4
        %v595 = vrot.slane %v584, 4
        %v596 = vrot.slane %v586, 4
        %v597 = vrot.slane %v588, 4
        %v598 = vrot.slane %v590, 4
        %v599 = vsel %vm440, %v591, %v592
        %v600 = vsel %vm545, %v576, %v599
        %v601 = vsel %vm545, %v578, %v592
        %v602 = vsel %vm440, %v593, %v594
        %v603 = vsel %vm545, %v580, %v602
        %v604 = vsel %vm545, %v582, %v594
        %v605 = vsel %vm440, %v595, %v596
        %v606 = vsel %vm545, %v584, %v605
        %v607 = vsel %vm545, %v586, %v596
        %v608 = vsel %vm440, %v597, %v598
        %v609 = vsel %vm545, %v588, %v608
        %v610 = vsel %vm545, %v590, %v598
        %619 = vst [vmem:[#allocation3 + $0x60] sm:$0xff] %v600
        %620 = vst [vmem:[#allocation3 + $0x68] sm:$0xf] %v601
        %621 = vst [vmem:[#allocation3 + $0x6c] sm:$0xff] %v603
        %622 = vst [vmem:[#allocation3 + $0x74] sm:$0xf] %v604
        %623 = vst [vmem:[#allocation3 + $0x78] sm:$0xff] %v606
        %624 = vst [vmem:[#allocation3 + $0x80] sm:$0xf] %v607
        %625 = vst [vmem:[#allocation3 + $0x84] sm:$0xff] %v609
        %626 = vst [vmem:[#allocation3 + $0x8c] sm:$0xf] %v610
        %v627 = vld [vmem:[%s333] sm:$0xff]
        %v628 = vld [vmem:[%s333 + $0x8] sm:$0xff]
        %v629 = vld [vmem:[%s333 + $0x10] sm:$0xff]
        %v630 = vld [vmem:[%s333 + $0x18] sm:$0xff]
        %635 = vrot.lane.b32.xlu0 %v627, 110
        %v636 = vpop.permute.xlu0 %635
        %637 = vrot.lane.b32.xlu0 %v628, 110
        %v638 = vpop.permute.xlu0 %637
        %639 = vrot.lane.b32.xlu0 %v629, 110
        %v640 = vpop.permute.xlu0 %639
        %641 = vrot.lane.b32.xlu0 %v630, 110
        %v642 = vpop.permute.xlu0 %641
        %v643 = vrot.slane %v636, 4
        %v644 = vrot.slane %v638, 4
        %v645 = vrot.slane %v640, 4
        %v646 = vrot.slane %v642, 4
        %v647 = vsel %vm440, %v643, %v644
        %vm648 = vcmask 900096
        %v649 = vsel %vm648, %v636, %v647
        %v650 = vsel %vm648, %v638, %v644
        %v651 = vsel %vm440, %v645, %v646
        %v652 = vsel %vm648, %v640, %v651
        %v653 = vsel %vm648, %v642, %v646
        %658 = vst [vmem:[#allocation2 + $0x48] sm:$0xff] %v649
        %659 = vst [vmem:[#allocation2 + $0x50] sm:$0xf] %v650
        %660 = vst [vmem:[#allocation2 + $0x54] sm:$0xff] %v652
        %661 = vst [vmem:[#allocation2 + $0x5c] sm:$0xf] %v653
        %v662 = vld [vmem:[%s338] sm:$0xff]
        %v663 = vld [vmem:[%s338 + $0x8] sm:$0xff]
        %v664 = vld [vmem:[%s338 + $0x10] sm:$0xff]
        %v665 = vld [vmem:[%s338 + $0x18] sm:$0xff]
        %v666 = vld [vmem:[%s338 + $0x20] sm:$0xff]
        %v667 = vld [vmem:[%s338 + $0x28] sm:$0xff]
        %v668 = vld [vmem:[%s338 + $0x30] sm:$0xff]
        %v669 = vld [vmem:[%s338 + $0x38] sm:$0xff]
        %678 = vrot.lane.b32.xlu0 %v662, 110
        %v679 = vpop.permute.xlu0 %678
        %680 = vrot.lane.b32.xlu0 %v663, 110
        %v681 = vpop.permute.xlu0 %680
        %682 = vrot.lane.b32.xlu0 %v664, 110
        %v683 = vpop.permute.xlu0 %682
        %684 = vrot.lane.b32.xlu0 %v665, 110
        %v685 = vpop.permute.xlu0 %684
        %686 = vrot.lane.b32.xlu0 %v666, 110
        %v687 = vpop.permute.xlu0 %686
        %688 = vrot.lane.b32.xlu0 %v667, 110
        %v689 = vpop.permute.xlu0 %688
        %690 = vrot.lane.b32.xlu0 %v668, 110
        %v691 = vpop.permute.xlu0 %690
        %692 = vrot.lane.b32.xlu0 %v669, 110
        %v693 = vpop.permute.xlu0 %692
        %v694 = vrot.slane %v679, 4
        %v695 = vrot.slane %v681, 4
        %v696 = vrot.slane %v683, 4
        %v697 = vrot.slane %v685, 4
        %v698 = vrot.slane %v687, 4
        %v699 = vrot.slane %v689, 4
        %v700 = vrot.slane %v691, 4
        %v701 = vrot.slane %v693, 4
        %v702 = vsel %vm440, %v694, %v695
        %v703 = vsel %vm648, %v679, %v702
        %v704 = vsel %vm648, %v681, %v695
        %v705 = vsel %vm440, %v696, %v697
        %v706 = vsel %vm648, %v683, %v705
        %v707 = vsel %vm648, %v685, %v697
        %v708 = vsel %vm440, %v698, %v699
        %v709 = vsel %vm648, %v687, %v708
        %v710 = vsel %vm648, %v689, %v699
        %v711 = vsel %vm440, %v700, %v701
        %v712 = vsel %vm648, %v691, %v711
        %v713 = vsel %vm648, %v693, %v701
        %722 = vst [vmem:[#allocation3 + $0x90] sm:$0xff] %v703
        %723 = vst [vmem:[#allocation3 + $0x98] sm:$0xf] %v704
        %724 = vst [vmem:[#allocation3 + $0x9c] sm:$0xff] %v706
        %725 = vst [vmem:[#allocation3 + $0xa4] sm:$0xf] %v707
        %726 = vst [vmem:[#allocation3 + $0xa8] sm:$0xff] %v709
        %727 = vst [vmem:[#allocation3 + $0xb0] sm:$0xf] %v710
        %728 = vst [vmem:[#allocation3 + $0xb4] sm:$0xff] %v712
        %729 = vst [vmem:[#allocation3 + $0xbc] sm:$0xf] %v713
        %v730 = vld [vmem:[%s333] sm:$0xff]
        %v731 = vld [vmem:[%s333 + $0x8] sm:$0xff]
        %v732 = vld [vmem:[%s333 + $0x10] sm:$0xff]
        %v733 = vld [vmem:[%s333 + $0x18] sm:$0xff]
        %738 = vrot.lane.b32.xlu0 %v730, 109
        %v739 = vpop.permute.xlu0 %738
        %740 = vrot.lane.b32.xlu0 %v731, 109
        %v741 = vpop.permute.xlu0 %740
        %742 = vrot.lane.b32.xlu0 %v732, 109
        %v743 = vpop.permute.xlu0 %742
        %744 = vrot.lane.b32.xlu0 %v733, 109
        %v745 = vpop.permute.xlu0 %744
        %v746 = vrot.slane %v739, 4
        %v747 = vrot.slane %v741, 4
        %v748 = vrot.slane %v743, 4
        %v749 = vrot.slane %v745, 4
        %v750 = vsel %vm440, %v746, %v747
        %vm751 = vcmask 891904
        %v752 = vsel %vm751, %v739, %v750
        %v753 = vsel %vm751, %v741, %v747
        %v754 = vsel %vm440, %v748, %v749
        %v755 = vsel %vm751, %v743, %v754
        %v756 = vsel %vm751, %v745, %v749
        %761 = vst [vmem:[#allocation2 + $0x60] sm:$0xff] %v752
        %762 = vst [vmem:[#allocation2 + $0x68] sm:$0xf] %v753
        %763 = vst [vmem:[#allocation2 + $0x6c] sm:$0xff] %v755
        %764 = vst [vmem:[#allocation2 + $0x74] sm:$0xf] %v756
        %v765 = vld [vmem:[%s338] sm:$0xff]
        %v766 = vld [vmem:[%s338 + $0x8] sm:$0xff]
        %v767 = vld [vmem:[%s338 + $0x10] sm:$0xff]
        %v768 = vld [vmem:[%s338 + $0x18] sm:$0xff]
        %v769 = vld [vmem:[%s338 + $0x20] sm:$0xff]
        %v770 = vld [vmem:[%s338 + $0x28] sm:$0xff]
        %v771 = vld [vmem:[%s338 + $0x30] sm:$0xff]
        %v772 = vld [vmem:[%s338 + $0x38] sm:$0xff]
        %781 = vrot.lane.b32.xlu0 %v765, 109
        %v782 = vpop.permute.xlu0 %781
        %783 = vrot.lane.b32.xlu0 %v766, 109
        %v784 = vpop.permute.xlu0 %783
        %785 = vrot.lane.b32.xlu0 %v767, 109
        %v786 = vpop.permute.xlu0 %785
        %787 = vrot.lane.b32.xlu0 %v768, 109
        %v788 = vpop.permute.xlu0 %787
        %789 = vrot.lane.b32.xlu0 %v769, 109
        %v790 = vpop.permute.xlu0 %789
        %791 = vrot.lane.b32.xlu0 %v770, 109
        %v792 = vpop.permute.xlu0 %791
        %793 = vrot.lane.b32.xlu0 %v771, 109
        %v794 = vpop.permute.xlu0 %793
        %795 = vrot.lane.b32.xlu0 %v772, 109
        %v796 = vpop.permute.xlu0 %795
        %v797 = vrot.slane %v782, 4
        %v798 = vrot.slane %v784, 4
        %v799 = vrot.slane %v786, 4
        %v800 = vrot.slane %v788, 4
        %v801 = vrot.slane %v790, 4
        %v802 = vrot.slane %v792, 4
        %v803 = vrot.slane %v794, 4
        %v804 = vrot.slane %v796, 4
        %v805 = vsel %vm440, %v797, %v798
        %v806 = vsel %vm751, %v782, %v805
        %v807 = vsel %vm751, %v784, %v798
        %v808 = vsel %vm440, %v799, %v800
        %v809 = vsel %vm751, %v786, %v808
        %v810 = vsel %vm751, %v788, %v800
        %v811 = vsel %vm440, %v801, %v802
        %v812 = vsel %vm751, %v790, %v811
        %v813 = vsel %vm751, %v792, %v802
        %v814 = vsel %vm440, %v803, %v804
        %v815 = vsel %vm751, %v794, %v814
        %v816 = vsel %vm751, %v796, %v804
        %825 = vst [vmem:[#allocation3 + $0xc0] sm:$0xff] %v806
        %826 = vst [vmem:[#allocation3 + $0xc8] sm:$0xf] %v807
        %827 = vst [vmem:[#allocation3 + $0xcc] sm:$0xff] %v809
        %828 = vst [vmem:[#allocation3 + $0xd4] sm:$0xf] %v810
        %829 = vst [vmem:[#allocation3 + $0xd8] sm:$0xff] %v812
        %830 = vst [vmem:[#allocation3 + $0xe0] sm:$0xf] %v813
        %831 = vst [vmem:[#allocation3 + $0xe4] sm:$0xff] %v815
        %832 = vst [vmem:[#allocation3 + $0xec] sm:$0xf] %v816
        %v833 = vld [vmem:[%s333] sm:$0xff]
        %v834 = vld [vmem:[%s333 + $0x8] sm:$0xff]
        %v835 = vld [vmem:[%s333 + $0x10] sm:$0xff]
        %v836 = vld [vmem:[%s333 + $0x18] sm:$0xff]
        %841 = vrot.lane.b32.xlu0 %v833, 108
        %v842 = vpop.permute.xlu0 %841
        %843 = vrot.lane.b32.xlu0 %v834, 108
        %v844 = vpop.permute.xlu0 %843
        %845 = vrot.lane.b32.xlu0 %v835, 108
        %v846 = vpop.permute.xlu0 %845
        %847 = vrot.lane.b32.xlu0 %v836, 108
        %v848 = vpop.permute.xlu0 %847
        %v849 = vrot.slane %v842, 4
        %v850 = vrot.slane %v844, 4
        %v851 = vrot.slane %v846, 4
        %v852 = vrot.slane %v848, 4
        %v853 = vsel %vm440, %v849, %v850
        %vm854 = vcmask 883712
        %v855 = vsel %vm854, %v842, %v853
        %v856 = vsel %vm854, %v844, %v850
        %v857 = vsel %vm440, %v851, %v852
        %v858 = vsel %vm854, %v846, %v857
        %v859 = vsel %vm854, %v848, %v852
        %864 = vst [vmem:[#allocation2 + $0x78] sm:$0xff] %v855
        %865 = vst [vmem:[#allocation2 + $0x80] sm:$0xf] %v856
        %866 = vst [vmem:[#allocation2 + $0x84] sm:$0xff] %v858
        %867 = vst [vmem:[#allocation2 + $0x8c] sm:$0xf] %v859
        %v868 = vld [vmem:[%s338] sm:$0xff]
        %v869 = vld [vmem:[%s338 + $0x8] sm:$0xff]
        %v870 = vld [vmem:[%s338 + $0x10] sm:$0xff]
        %v871 = vld [vmem:[%s338 + $0x18] sm:$0xff]
        %v872 = vld [vmem:[%s338 + $0x20] sm:$0xff]
        %v873 = vld [vmem:[%s338 + $0x28] sm:$0xff]
        %v874 = vld [vmem:[%s338 + $0x30] sm:$0xff]
        %v875 = vld [vmem:[%s338 + $0x38] sm:$0xff]
        %884 = vrot.lane.b32.xlu0 %v868, 108
        %v885 = vpop.permute.xlu0 %884
        %886 = vrot.lane.b32.xlu0 %v869, 108
        %v887 = vpop.permute.xlu0 %886
        %888 = vrot.lane.b32.xlu0 %v870, 108
        %v889 = vpop.permute.xlu0 %888
        %890 = vrot.lane.b32.xlu0 %v871, 108
        %v891 = vpop.permute.xlu0 %890
        %892 = vrot.lane.b32.xlu0 %v872, 108
        %v893 = vpop.permute.xlu0 %892
        %894 = vrot.lane.b32.xlu0 %v873, 108
        %v895 = vpop.permute.xlu0 %894
        %896 = vrot.lane.b32.xlu0 %v874, 108
        %v897 = vpop.permute.xlu0 %896
        %898 = vrot.lane.b32.xlu0 %v875, 108
        %v899 = vpop.permute.xlu0 %898
        %v900 = vrot.slane %v885, 4
        %v901 = vrot.slane %v887, 4
        %v902 = vrot.slane %v889, 4
        %v903 = vrot.slane %v891, 4
        %v904 = vrot.slane %v893, 4
        %v905 = vrot.slane %v895, 4
        %v906 = vrot.slane %v897, 4
        %v907 = vrot.slane %v899, 4
        %v908 = vsel %vm440, %v900, %v901
        %v909 = vsel %vm854, %v885, %v908
        %v910 = vsel %vm854, %v887, %v901
        %v911 = vsel %vm440, %v902, %v903
        %v912 = vsel %vm854, %v889, %v911
        %v913 = vsel %vm854, %v891, %v903
        %v914 = vsel %vm440, %v904, %v905
        %v915 = vsel %vm854, %v893, %v914
        %v916 = vsel %vm854, %v895, %v905
        %v917 = vsel %vm440, %v906, %v907
        %v918 = vsel %vm854, %v897, %v917
        %v919 = vsel %vm854, %v899, %v907
        %928 = vst [vmem:[#allocation3 + $0xf0] sm:$0xff] %v909
        %929 = vst [vmem:[#allocation3 + $0xf8] sm:$0xf] %v910
        %930 = vst [vmem:[#allocation3 + $0xfc] sm:$0xff] %v912
        %931 = vst [vmem:[#allocation3 + $0x104] sm:$0xf] %v913
        %932 = vst [vmem:[#allocation3 + $0x108] sm:$0xff] %v915
        %933 = vst [vmem:[#allocation3 + $0x110] sm:$0xf] %v916
        %934 = vst [vmem:[#allocation3 + $0x114] sm:$0xff] %v918
        %935 = vst [vmem:[#allocation3 + $0x11c] sm:$0xf] %v919
        %v936 = vld [vmem:[%s333] sm:$0xff]
        %v937 = vld [vmem:[%s333 + $0x8] sm:$0xff]
        %v938 = vld [vmem:[%s333 + $0x10] sm:$0xff]
        %v939 = vld [vmem:[%s333 + $0x18] sm:$0xff]
        %944 = vrot.lane.b32.xlu0 %v936, 92
        %v945 = vpop.permute.xlu0 %944
        %946 = vrot.lane.b32.xlu0 %v937, 92
        %v947 = vpop.permute.xlu0 %946
        %948 = vrot.lane.b32.xlu0 %v938, 92
        %v949 = vpop.permute.xlu0 %948
        %950 = vrot.lane.b32.xlu0 %v939, 92
        %v951 = vpop.permute.xlu0 %950
        %v952 = vrot.slane %v945, 4
        %v953 = vrot.slane %v947, 4
        %v954 = vrot.slane %v949, 4
        %v955 = vrot.slane %v951, 4
        %v956 = vsel %vm440, %v952, %v953
        %vm957 = vcmask 752640
        %v958 = vsel %vm957, %v945, %v956
        %v959 = vsel %vm957, %v947, %v953
        %v960 = vsel %vm440, %v954, %v955
        %v961 = vsel %vm957, %v949, %v960
        %v962 = vsel %vm957, %v951, %v955
        %967 = vst [vmem:[#allocation2 + $0x90] sm:$0xff] %v958
        %968 = vst [vmem:[#allocation2 + $0x98] sm:$0xf] %v959
        %969 = vst [vmem:[#allocation2 + $0x9c] sm:$0xff] %v961
        %970 = vst [vmem:[#allocation2 + $0xa4] sm:$0xf] %v962
        %v971 = vld [vmem:[%s338] sm:$0xff]
        %v972 = vld [vmem:[%s338 + $0x8] sm:$0xff]
        %v973 = vld [vmem:[%s338 + $0x10] sm:$0xff]
        %v974 = vld [vmem:[%s338 + $0x18] sm:$0xff]
        %v975 = vld [vmem:[%s338 + $0x20] sm:$0xff]
        %v976 = vld [vmem:[%s338 + $0x28] sm:$0xff]
        %v977 = vld [vmem:[%s338 + $0x30] sm:$0xff]
        %v978 = vld [vmem:[%s338 + $0x38] sm:$0xff]
        %987 = vrot.lane.b32.xlu0 %v971, 92
        %v988 = vpop.permute.xlu0 %987
        %989 = vrot.lane.b32.xlu0 %v972, 92
        %v990 = vpop.permute.xlu0 %989
        %991 = vrot.lane.b32.xlu0 %v973, 92
        %v992 = vpop.permute.xlu0 %991
        %993 = vrot.lane.b32.xlu0 %v974, 92
        %v994 = vpop.permute.xlu0 %993
        %995 = vrot.lane.b32.xlu0 %v975, 92
        %v996 = vpop.permute.xlu0 %995
        %997 = vrot.lane.b32.xlu0 %v976, 92
        %v998 = vpop.permute.xlu0 %997
        %999 = vrot.lane.b32.xlu0 %v977, 92
        %v1000 = vpop.permute.xlu0 %999
        %1001 = vrot.lane.b32.xlu0 %v978, 92
        %v1002 = vpop.permute.xlu0 %1001
        %v1003 = vrot.slane %v988, 4
        %v1004 = vrot.slane %v990, 4
        %v1005 = vrot.slane %v992, 4
        %v1006 = vrot.slane %v994, 4
        %v1007 = vrot.slane %v996, 4
        %v1008 = vrot.slane %v998, 4
        %v1009 = vrot.slane %v1000, 4
        %v1010 = vrot.slane %v1002, 4
        %v1011 = vsel %vm440, %v1003, %v1004
        %v1012 = vsel %vm957, %v988, %v1011
        %v1013 = vsel %vm957, %v990, %v1004
        %v1014 = vsel %vm440, %v1005, %v1006
        %v1015 = vsel %vm957, %v992, %v1014
        %v1016 = vsel %vm957, %v994, %v1006
        %v1017 = vsel %vm440, %v1007, %v1008
        %v1018 = vsel %vm957, %v996, %v1017
        %v1019 = vsel %vm957, %v998, %v1008
        %v1020 = vsel %vm440, %v1009, %v1010
        %v1021 = vsel %vm957, %v1000, %v1020
        %v1022 = vsel %vm957, %v1002, %v1010
        %1031 = vst [vmem:[#allocation3 + $0x120] sm:$0xff] %v1012
        %1032 = vst [vmem:[#allocation3 + $0x128] sm:$0xf] %v1013
        %1033 = vst [vmem:[#allocation3 + $0x12c] sm:$0xff] %v1015
        %1034 = vst [vmem:[#allocation3 + $0x134] sm:$0xf] %v1016
        %1035 = vst [vmem:[#allocation3 + $0x138] sm:$0xff] %v1018
        %1036 = vst [vmem:[#allocation3 + $0x140] sm:$0xf] %v1019
        %1037 = vst [vmem:[#allocation3 + $0x144] sm:$0xff] %v1021
        %1038 = vst [vmem:[#allocation3 + $0x14c] sm:$0xf] %v1022
        %v1039 = vld [vmem:[%s333] sm:$0xff]
        %v1040 = vld [vmem:[%s333 + $0x8] sm:$0xff]
        %v1041 = vld [vmem:[%s333 + $0x10] sm:$0xff]
        %v1042 = vld [vmem:[%s333 + $0x18] sm:$0xff]
        %1047 = vrot.lane.b32.xlu0 %v1039, 91
        %v1048 = vpop.permute.xlu0 %1047
        %1049 = vrot.lane.b32.xlu0 %v1040, 91
        %v1050 = vpop.permute.xlu0 %1049
        %1051 = vrot.lane.b32.xlu0 %v1041, 91
        %v1052 = vpop.permute.xlu0 %1051
        %1053 = vrot.lane.b32.xlu0 %v1042, 91
        %v1054 = vpop.permute.xlu0 %1053
        %v1055 = vrot.slane %v1048, 4
        %v1056 = vrot.slane %v1050, 4
        %v1057 = vrot.slane %v1052, 4
        %v1058 = vrot.slane %v1054, 4
        %v1059 = vsel %vm440, %v1055, %v1056
        %vm1060 = vcmask 744448
        %v1061 = vsel %vm1060, %v1048, %v1059
        %v1062 = vsel %vm1060, %v1050, %v1056
        %v1063 = vsel %vm440, %v1057, %v1058
        %v1064 = vsel %vm1060, %v1052, %v1063
        %v1065 = vsel %vm1060, %v1054, %v1058
        %1070 = vst [vmem:[#allocation2 + $0xa8] sm:$0xff] %v1061
        %1071 = vst [vmem:[#allocation2 + $0xb0] sm:$0xf] %v1062
        %1072 = vst [vmem:[#allocation2 + $0xb4] sm:$0xff] %v1064
        %1073 = vst [vmem:[#allocation2 + $0xbc] sm:$0xf] %v1065
        %v1074 = vld [vmem:[%s338] sm:$0xff]
        %v1075 = vld [vmem:[%s338 + $0x8] sm:$0xff]
        %v1076 = vld [vmem:[%s338 + $0x10] sm:$0xff]
        %v1077 = vld [vmem:[%s338 + $0x18] sm:$0xff]
        %v1078 = vld [vmem:[%s338 + $0x20] sm:$0xff]
        %v1079 = vld [vmem:[%s338 + $0x28] sm:$0xff]
        %v1080 = vld [vmem:[%s338 + $0x30] sm:$0xff]
        %v1081 = vld [vmem:[%s338 + $0x38] sm:$0xff]
        %1090 = vrot.lane.b32.xlu0 %v1074, 91
        %v1091 = vpop.permute.xlu0 %1090
        %1092 = vrot.lane.b32.xlu0 %v1075, 91
        %v1093 = vpop.permute.xlu0 %1092
        %1094 = vrot.lane.b32.xlu0 %v1076, 91
        %v1095 = vpop.permute.xlu0 %1094
        %1096 = vrot.lane.b32.xlu0 %v1077, 91
        %v1097 = vpop.permute.xlu0 %1096
        %1098 = vrot.lane.b32.xlu0 %v1078, 91
        %v1099 = vpop.permute.xlu0 %1098
        %1100 = vrot.lane.b32.xlu0 %v1079, 91
        %v1101 = vpop.permute.xlu0 %1100
        %1102 = vrot.lane.b32.xlu0 %v1080, 91
        %v1103 = vpop.permute.xlu0 %1102
        %1104 = vrot.lane.b32.xlu0 %v1081, 91
        %v1105 = vpop.permute.xlu0 %1104
        %v1106 = vrot.slane %v1091, 4
        %v1107 = vrot.slane %v1093, 4
        %v1108 = vrot.slane %v1095, 4
        %v1109 = vrot.slane %v1097, 4
        %v1110 = vrot.slane %v1099, 4
        %v1111 = vrot.slane %v1101, 4
        %v1112 = vrot.slane %v1103, 4
        %v1113 = vrot.slane %v1105, 4
        %v1114 = vsel %vm440, %v1106, %v1107
        %v1115 = vsel %vm1060, %v1091, %v1114
        %v1116 = vsel %vm1060, %v1093, %v1107
        %v1117 = vsel %vm440, %v1108, %v1109
        %v1118 = vsel %vm1060, %v1095, %v1117
        %v1119 = vsel %vm1060, %v1097, %v1109
        %v1120 = vsel %vm440, %v1110, %v1111
        %v1121 = vsel %vm1060, %v1099, %v1120
        %v1122 = vsel %vm1060, %v1101, %v1111
        %v1123 = vsel %vm440, %v1112, %v1113
        %v1124 = vsel %vm1060, %v1103, %v1123
        %v1125 = vsel %vm1060, %v1105, %v1113
        %1134 = vst [vmem:[#allocation3 + $0x150] sm:$0xff] %v1115
        %1135 = vst [vmem:[#allocation3 + $0x158] sm:$0xf] %v1116
        %1136 = vst [vmem:[#allocation3 + $0x15c] sm:$0xff] %v1118
        %1137 = vst [vmem:[#allocation3 + $0x164] sm:$0xf] %v1119
        %1138 = vst [vmem:[#allocation3 + $0x168] sm:$0xff] %v1121
        %1139 = vst [vmem:[#allocation3 + $0x170] sm:$0xf] %v1122
        %1140 = vst [vmem:[#allocation3 + $0x174] sm:$0xff] %v1124
        %1141 = vst [vmem:[#allocation3 + $0x17c] sm:$0xf] %v1125
        %v1142 = vld [vmem:[%s333] sm:$0xff]
        %v1143 = vld [vmem:[%s333 + $0x8] sm:$0xff]
        %v1144 = vld [vmem:[%s333 + $0x10] sm:$0xff]
        %v1145 = vld [vmem:[%s333 + $0x18] sm:$0xff]
        %1150 = vrot.lane.b32.xlu0 %v1142, 90
        %v1151 = vpop.permute.xlu0 %1150
        %1152 = vrot.lane.b32.xlu0 %v1143, 90
        %v1153 = vpop.permute.xlu0 %1152
        %1154 = vrot.lane.b32.xlu0 %v1144, 90
        %v1155 = vpop.permute.xlu0 %1154
        %1156 = vrot.lane.b32.xlu0 %v1145, 90
        %v1157 = vpop.permute.xlu0 %1156
        %v1158 = vrot.slane %v1151, 4
        %v1159 = vrot.slane %v1153, 4
        %v1160 = vrot.slane %v1155, 4
        %v1161 = vrot.slane %v1157, 4
        %v1162 = vsel %vm440, %v1158, %v1159
        %vm1163 = vcmask 736256
        %v1164 = vsel %vm1163, %v1151, %v1162
        %v1165 = vsel %vm1163, %v1153, %v1159
        %v1166 = vsel %vm440, %v1160, %v1161
        %v1167 = vsel %vm1163, %v1155, %v1166
        %v1168 = vsel %vm1163, %v1157, %v1161
        %1173 = vst [vmem:[#allocation2 + $0xc0] sm:$0xff] %v1164
        %1174 = vst [vmem:[#allocation2 + $0xc8] sm:$0xf] %v1165
        %1175 = vst [vmem:[#allocation2 + $0xcc] sm:$0xff] %v1167
        %1176 = vst [vmem:[#allocation2 + $0xd4] sm:$0xf] %v1168
        %v1177 = vld [vmem:[%s338] sm:$0xff]
        %v1178 = vld [vmem:[%s338 + $0x8] sm:$0xff]
        %v1179 = vld [vmem:[%s338 + $0x10] sm:$0xff]
        %v1180 = vld [vmem:[%s338 + $0x18] sm:$0xff]
        %v1181 = vld [vmem:[%s338 + $0x20] sm:$0xff]
        %v1182 = vld [vmem:[%s338 + $0x28] sm:$0xff]
        %v1183 = vld [vmem:[%s338 + $0x30] sm:$0xff]
        %v1184 = vld [vmem:[%s338 + $0x38] sm:$0xff]
        %1193 = vrot.lane.b32.xlu0 %v1177, 90
        %v1194 = vpop.permute.xlu0 %1193
        %1195 = vrot.lane.b32.xlu0 %v1178, 90
        %v1196 = vpop.permute.xlu0 %1195
        %1197 = vrot.lane.b32.xlu0 %v1179, 90
        %v1198 = vpop.permute.xlu0 %1197
        %1199 = vrot.lane.b32.xlu0 %v1180, 90
        %v1200 = vpop.permute.xlu0 %1199
        %1201 = vrot.lane.b32.xlu0 %v1181, 90
        %v1202 = vpop.permute.xlu0 %1201
        %1203 = vrot.lane.b32.xlu0 %v1182, 90
        %v1204 = vpop.permute.xlu0 %1203
        %1205 = vrot.lane.b32.xlu0 %v1183, 90
        %v1206 = vpop.permute.xlu0 %1205
        %1207 = vrot.lane.b32.xlu0 %v1184, 90
        %v1208 = vpop.permute.xlu0 %1207
        %v1209 = vrot.slane %v1194, 4
        %v1210 = vrot.slane %v1196, 4
        %v1211 = vrot.slane %v1198, 4
        %v1212 = vrot.slane %v1200, 4
        %v1213 = vrot.slane %v1202, 4
        %v1214 = vrot.slane %v1204, 4
        %v1215 = vrot.slane %v1206, 4
        %v1216 = vrot.slane %v1208, 4
        %v1217 = vsel %vm440, %v1209, %v1210
        %v1218 = vsel %vm1163, %v1194, %v1217
        %v1219 = vsel %vm1163, %v1196, %v1210
        %v1220 = vsel %vm440, %v1211, %v1212
        %v1221 = vsel %vm1163, %v1198, %v1220
        %v1222 = vsel %vm1163, %v1200, %v1212
        %v1223 = vsel %vm440, %v1213, %v1214
        %v1224 = vsel %vm1163, %v1202, %v1223
        %v1225 = vsel %vm1163, %v1204, %v1214
        %v1226 = vsel %vm440, %v1215, %v1216
        %v1227 = vsel %vm1163, %v1206, %v1226
        %v1228 = vsel %vm1163, %v1208, %v1216
        %1237 = vst [vmem:[#allocation3 + $0x180] sm:$0xff] %v1218
        %1238 = vst [vmem:[#allocation3 + $0x188] sm:$0xf] %v1219
        %1239 = vst [vmem:[#allocation3 + $0x18c] sm:$0xff] %v1221
        %1240 = vst [vmem:[#allocation3 + $0x194] sm:$0xf] %v1222
        %1241 = vst [vmem:[#allocation3 + $0x198] sm:$0xff] %v1224
        %1242 = vst [vmem:[#allocation3 + $0x1a0] sm:$0xf] %v1225
        %1243 = vst [vmem:[#allocation3 + $0x1a4] sm:$0xff] %v1227
        %1244 = vst [vmem:[#allocation3 + $0x1ac] sm:$0xf] %v1228
        %v1245 = vld [vmem:[%s4] sm:$0xff]
        %v1246 = vld [vmem:[%s4 + $0x8] sm:$0xff]
        %v1247 = vld [vmem:[%s4 + $0x10] sm:$0xff]
        %v1248 = vld [vmem:[%s4 + $0x18] sm:$0xff]
        %v1249 = vld [vmem:[%s4 + $0x20] sm:$0xff]
        %v1250 = vld [vmem:[%s4 + $0x28] sm:$0xff]
        %v1251 = vld [vmem:[%s4 + $0x30] sm:$0xff]
        %v1252 = vld [vmem:[%s4 + $0x38] sm:$0xff]
        %v1253 = vld [vmem:[%s4 + $0x40] sm:$0xff]
        %v1254 = vld [vmem:[%s4 + $0x48] sm:$0xff]
        %v1255 = vld [vmem:[%s4 + $0x50] sm:$0xff]
        %v1256 = vld [vmem:[%s4 + $0x58] sm:$0xff]
        %v1257 = vld [vmem:[#allocation2] sm:$0xff]
        %v1258 = vld [vmem:[#allocation2 + $0x8] sm:$0xf]
        %v1259 = vld [vmem:[#allocation2 + $0xc] sm:$0xff]
        %v1260 = vld [vmem:[#allocation2 + $0x14] sm:$0xf]
        %v1261 = vld [vmem:[#allocation2 + $0x18] sm:$0xff]
        %v1262 = vld [vmem:[#allocation2 + $0x20] sm:$0xf]
        %v1263 = vld [vmem:[#allocation2 + $0x24] sm:$0xff]
        %v1264 = vld [vmem:[#allocation2 + $0x2c] sm:$0xf]
        %v1265 = vld [vmem:[#allocation2 + $0x30] sm:$0xff]
        %v1266 = vld [vmem:[#allocation2 + $0x38] sm:$0xf]
        %v1267 = vld [vmem:[#allocation2 + $0x3c] sm:$0xff]
        %v1268 = vld [vmem:[#allocation2 + $0x44] sm:$0xf]
        %v1269 = vld [vmem:[#allocation2 + $0x48] sm:$0xff]
        %v1270 = vld [vmem:[#allocation2 + $0x50] sm:$0xf]
        %v1271 = vld [vmem:[#allocation2 + $0x54] sm:$0xff]
        %v1272 = vld [vmem:[#allocation2 + $0x5c] sm:$0xf]
        %v1273 = vld [vmem:[#allocation2 + $0x60] sm:$0xff]
        %v1274 = vld [vmem:[#allocation2 + $0x68] sm:$0xf]
        %v1275 = vld [vmem:[#allocation2 + $0x6c] sm:$0xff]
        %v1276 = vld [vmem:[#allocation2 + $0x74] sm:$0xf]
        %v1277 = vld [vmem:[#allocation2 + $0x78] sm:$0xff]
        %v1278 = vld [vmem:[#allocation2 + $0x80] sm:$0xf]
        %v1279 = vld [vmem:[#allocation2 + $0x84] sm:$0xff]
        %v1280 = vld [vmem:[#allocation2 + $0x8c] sm:$0xf]
        %v1281 = vld [vmem:[#allocation2 + $0x90] sm:$0xff]
        %v1282 = vld [vmem:[#allocation2 + $0x98] sm:$0xf]
        %v1283 = vld [vmem:[#allocation2 + $0x9c] sm:$0xff]
        %v1284 = vld [vmem:[#allocation2 + $0xa4] sm:$0xf]
        %v1285 = vld [vmem:[#allocation2 + $0xa8] sm:$0xff]
        %v1286 = vld [vmem:[#allocation2 + $0xb0] sm:$0xf]
        %v1287 = vld [vmem:[#allocation2 + $0xb4] sm:$0xff]
        %v1288 = vld [vmem:[#allocation2 + $0xbc] sm:$0xf]
        %v1289 = vld [vmem:[#allocation2 + $0xc0] sm:$0xff]
        %v1290 = vld [vmem:[#allocation2 + $0xc8] sm:$0xf]
        %v1291 = vld [vmem:[#allocation2 + $0xcc] sm:$0xff]
        %v1292 = vld [vmem:[#allocation2 + $0xd4] sm:$0xf]
        %v1305 = vunpack.c.l.b16 %v1245
        %v1306 = vunpack.c.h.b16 %v1245
        %v1307 = vunpack.c.l.b16 %v1246
        %v1308 = vunpack.c.h.b16 %v1246
        %v1309 = vunpack.c.l.b16 %v1247
        %v1310 = vunpack.c.h.b16 %v1247
        %v1311 = vunpack.c.l.b16 %v1248
        %v1312 = vunpack.c.h.b16 %v1248
        %v1313 = vunpack.c.l.b16 %v1249
        %v1314 = vunpack.c.h.b16 %v1249
        %v1315 = vunpack.c.l.b16 %v1250
        %v1316 = vunpack.c.h.b16 %v1250
        %v1317 = vunpack.c.l.b16 %v1251
        %v1318 = vunpack.c.h.b16 %v1251
        %v1319 = vunpack.c.l.b16 %v1252
        %v1320 = vunpack.c.h.b16 %v1252
        %v1321 = vunpack.c.l.b16 %v1253
        %v1322 = vunpack.c.h.b16 %v1253
        %v1323 = vunpack.c.l.b16 %v1254
        %v1324 = vunpack.c.h.b16 %v1254
        %v1325 = vunpack.c.l.b16 %v1255
        %v1326 = vunpack.c.h.b16 %v1255
        %v1327 = vunpack.c.l.b16 %v1256
        %v1328 = vunpack.c.h.b16 %v1256
        %v1329 = vpack.c.b16 %v1307, %v1305
        %v1330 = vpack.c.b16 %v1308, %v1306
        %v1331 = vpack.c.b16 %v1311, %v1309
        %v1332 = vpack.c.b16 %v1312, %v1310
        %v1333 = vpack.c.b16 %v1315, %v1313
        %v1334 = vpack.c.b16 %v1316, %v1314
        %v1335 = vpack.c.b16 %v1319, %v1317
        %v1336 = vpack.c.b16 %v1320, %v1318
        %v1337 = vpack.c.b16 %v1323, %v1321
        %v1338 = vpack.c.b16 %v1324, %v1322
        %v1339 = vpack.c.b16 %v1327, %v1325
        %v1340 = vpack.c.b16 %v1328, %v1326
        %v1383 = vunpack.c.l.b16 %v1257
        %v1384 = vunpack.c.h.b16 %v1257
        %v1385 = vunpack.c.l.b16 %v1258
        %v1386 = vunpack.c.l.b16 %v1259
        %v1387 = vunpack.c.h.b16 %v1259
        %v1388 = vunpack.c.l.b16 %v1260
        %v1389 = vunpack.c.l.b16 %v1261
        %v1390 = vunpack.c.h.b16 %v1261
        %v1391 = vunpack.c.l.b16 %v1262
        %v1392 = vunpack.c.l.b16 %v1263
        %v1393 = vunpack.c.h.b16 %v1263
        %v1394 = vunpack.c.l.b16 %v1264
        %v1395 = vunpack.c.l.b16 %v1265
        %v1396 = vunpack.c.h.b16 %v1265
        %v1397 = vunpack.c.l.b16 %v1266
        %v1398 = vunpack.c.l.b16 %v1267
        %v1399 = vunpack.c.h.b16 %v1267
        %v1400 = vunpack.c.l.b16 %v1268
        %v1401 = vunpack.c.l.b16 %v1269
        %v1402 = vunpack.c.h.b16 %v1269
        %v1403 = vunpack.c.l.b16 %v1270
        %v1404 = vunpack.c.l.b16 %v1271
        %v1405 = vunpack.c.h.b16 %v1271
        %v1406 = vunpack.c.l.b16 %v1272
        %v1407 = vunpack.c.l.b16 %v1273
        %v1408 = vunpack.c.h.b16 %v1273
        %v1409 = vunpack.c.l.b16 %v1274
        %v1410 = vunpack.c.l.b16 %v1275
        %v1411 = vunpack.c.h.b16 %v1275
        %v1412 = vunpack.c.l.b16 %v1276
        %v1413 = vunpack.c.l.b16 %v1277
        %v1414 = vunpack.c.h.b16 %v1277
        %v1415 = vunpack.c.l.b16 %v1278
        %v1416 = vunpack.c.l.b16 %v1279
        %v1417 = vunpack.c.h.b16 %v1279
        %v1418 = vunpack.c.l.b16 %v1280
        %v1419 = vunpack.c.l.b16 %v1281
        %v1420 = vunpack.c.h.b16 %v1281
        %v1421 = vunpack.c.l.b16 %v1282
        %v1422 = vunpack.c.l.b16 %v1283
        %v1423 = vunpack.c.h.b16 %v1283
        %v1424 = vunpack.c.l.b16 %v1284
        %v1425 = vunpack.c.l.b16 %v1285
        %v1426 = vunpack.c.h.b16 %v1285
        %v1427 = vunpack.c.l.b16 %v1286
        %v1428 = vunpack.c.l.b16 %v1287
        %v1429 = vunpack.c.h.b16 %v1287
        %v1430 = vunpack.c.l.b16 %v1288
        %v1431 = vunpack.c.l.b16 %v1289
        %v1432 = vunpack.c.h.b16 %v1289
        %v1433 = vunpack.c.l.b16 %v1290
        %v1434 = vunpack.c.l.b16 %v1291
        %v1435 = vunpack.c.h.b16 %v1291
        %v1436 = vunpack.c.l.b16 %v1292
        %v1437 = vpack.c.b16 %v1386, %v1383
        %v1438 = vpack.c.b16 %v1387, %v1384
        %v1439 = vpack.c.b16 %v1388, %v1385
        %v1440 = vpack.c.b16 %v1392, %v1389
        %v1441 = vpack.c.b16 %v1393, %v1390
        %v1442 = vpack.c.b16 %v1394, %v1391
        %v1443 = vpack.c.b16 %v1398, %v1395
        %v1444 = vpack.c.b16 %v1399, %v1396
        %v1445 = vpack.c.b16 %v1400, %v1397
        %v1446 = vpack.c.b16 %v1404, %v1401
        %v1447 = vpack.c.b16 %v1405, %v1402
        %v1448 = vpack.c.b16 %v1406, %v1403
        %v1449 = vpack.c.b16 %v1410, %v1407
        %v1450 = vpack.c.b16 %v1411, %v1408
        %v1451 = vpack.c.b16 %v1412, %v1409
        %v1452 = vpack.c.b16 %v1416, %v1413
        %v1453 = vpack.c.b16 %v1417, %v1414
        %v1454 = vpack.c.b16 %v1418, %v1415
        %v1455 = vpack.c.b16 %v1422, %v1419
        %v1456 = vpack.c.b16 %v1423, %v1420
        %v1457 = vpack.c.b16 %v1424, %v1421
        %v1458 = vpack.c.b16 %v1428, %v1425
        %v1459 = vpack.c.b16 %v1429, %v1426
        %v1460 = vpack.c.b16 %v1430, %v1427
        %v1461 = vpack.c.b16 %v1434, %v1431
        %v1462 = vpack.c.b16 %v1435, %v1432
        %v1463 = vpack.c.b16 %v1436, %v1433
        %vm1491 = vcmask 130048
        %v1493 = vsel %vm1491, %v1330, 0
        %v1496 = vsel %vm1491, %v1332, 0
        %v1499 = vsel %vm1491, %v1334, 0
        %v1502 = vsel %vm1491, %v1336, 0
        %v1505 = vsel %vm1491, %v1338, 0
        %v1508 = vsel %vm1491, %v1340, 0
        %1510 = vmatprep.subr.bf16.mxu0 %v1459
        %1511 = vmatpush1.bf16.msra.mxu0 %v1458
        %1512 = vmatprep.subr.bf16.mxu0 %v1456
        %1513 = vmatpush1.bf16.msra.mxu0 %v1455
        %1514 = vmatprep.subr.bf16.mxu0 %v1453
        %1515 = vmatpush1.bf16.msra.mxu0 %v1452
        %1516 = vmatprep.subr.bf16.mxu0 %v1450
        %1517 = vmatpush1.bf16.msra.mxu0 %v1449
        %1518 = vmatprep.subr.bf16.mxu0 %v1447
        %1519 = vmatpush1.bf16.msra.mxu0 %v1446
        %1520 = vmatprep.subr.bf16.mxu0 %v1444
        %1521 = vmatpush1.bf16.msra.mxu0 %v1443
        %1522 = vmatprep.subr.bf16.mxu0 %v1441
        %1523 = vmatpush1.bf16.msra.mxu0 %v1440
        %1524 = vmatprep.subr.bf16.mxu0 %v1438
        %1525 = vmatpush1.bf16.msra.mxu0 %v1437
        %1526 = vmatprep.subr.bf16.mxu0 0
        %1527 = vmatpush2.bf16.msra.mxu0 0
        %1528 = vmatprep.subr.bf16.mxu0 0
        %1529 = vmatpush2.bf16.msra.mxu0 0
        %1530 = vmatprep.subr.bf16.mxu0 0
        %1531 = vmatpush2.bf16.msra.mxu0 0
        %1532 = vmatprep.subr.bf16.mxu0 0
        %1533 = vmatpush2.bf16.msra.mxu0 0
        %1534 = vmatprep.subr.bf16.mxu0 0
        %1535 = vmatpush2.bf16.msra.mxu0 0
        %1536 = vmatprep.subr.bf16.mxu0 0
        %1537 = vmatpush2.bf16.msra.mxu0 0
        %1538 = vmatprep.subr.bf16.mxu0 0
        %1539 = vmatpush2.bf16.msra.mxu0 0
        %1540 = vmatprep.subr.bf16.mxu0 %v1462
        %1541 = vmatpush2.bf16.msra.mxu0 %v1461
        %1542 = vmatprep.mubr.bf16.mxu0 %v1493
        %1543 = vmatmul.mubr.bf16.gmra.mxu0 %v1329
        %v1544 = vpop.f32.mrf.mxu0
        %v1545 = vadd.f32 0.0, %v1544
        %v1546 = vpop.f32.mrf.mxu0
        %v1547 = vadd.f32 0.0, %v1546
        %v1548 = vpop.f32.mrf.mxu0
        %v1549 = vadd.f32 0.0, %v1548
        %v1550 = vpop.f32.mrf.mxu0
        %v1551 = vadd.f32 0.0, %v1550
        %1552 = vmatprep.mubr.bf16.mxu0 %v1496
        %1553 = vmatmul.mubr.bf16.gmra.mxu0 %v1331
        %v1554 = vpop.f32.mrf.mxu0
        %v1555 = vadd.f32 0.0, %v1554
        %v1556 = vpop.f32.mrf.mxu0
        %v1557 = vadd.f32 0.0, %v1556
        %v1558 = vpop.f32.mrf.mxu0
        %v1559 = vadd.f32 0.0, %v1558
        %v1560 = vpop.f32.mrf.mxu0
        %v1561 = vadd.f32 0.0, %v1560
        %1562 = vmatprep.mubr.bf16.mxu0 %v1499
        %1563 = vmatmul.mubr.bf16.gmra.mxu0 %v1333
        %v1564 = vpop.f32.mrf.mxu0
        %v1565 = vadd.f32 0.0, %v1564
        %v1566 = vpop.f32.mrf.mxu0
        %v1567 = vadd.f32 0.0, %v1566
        %v1568 = vpop.f32.mrf.mxu0
        %v1569 = vadd.f32 0.0, %v1568
        %v1570 = vpop.f32.mrf.mxu0
        %v1571 = vadd.f32 0.0, %v1570
        %1572 = vmatprep.mubr.bf16.mxu0 %v1502
        %1573 = vmatmul.mubr.bf16.gmra.mxu0 %v1335
        %v1574 = vpop.f32.mrf.mxu0
        %v1575 = vadd.f32 0.0, %v1574
        %v1576 = vpop.f32.mrf.mxu0
        %v1577 = vadd.f32 0.0, %v1576
        %v1578 = vpop.f32.mrf.mxu0
        %v1579 = vadd.f32 0.0, %v1578
        %v1580 = vpop.f32.mrf.mxu0
        %v1581 = vadd.f32 0.0, %v1580
        %1582 = vmatprep.mubr.bf16.mxu0 %v1505
        %1583 = vmatmul.mubr.bf16.gmra.mxu0 %v1337
        %v1584 = vpop.f32.mrf.mxu0
        %v1585 = vadd.f32 0.0, %v1584
        %v1586 = vpop.f32.mrf.mxu0
        %v1587 = vadd.f32 0.0, %v1586
        %v1588 = vpop.f32.mrf.mxu0
        %v1589 = vadd.f32 0.0, %v1588
        %v1590 = vpop.f32.mrf.mxu0
        %v1591 = vadd.f32 0.0, %v1590
        %1592 = vmatprep.mubr.bf16.mxu0 %v1508
        %1593 = vmatmul.mubr.bf16.gmra.mxu0 %v1339
        %v1594 = vpop.f32.mrf.mxu0
        %v1595 = vadd.f32 0.0, %v1594
        %v1596 = vpop.f32.mrf.mxu0
        %v1597 = vadd.f32 0.0, %v1596
        %v1598 = vpop.f32.mrf.mxu0
        %v1599 = vadd.f32 0.0, %v1598
        %v1600 = vpop.f32.mrf.mxu0
        %v1601 = vadd.f32 0.0, %v1600
        %1602 = vdwg.mxu0
        %1603 = vmatprep.subr.bf16.mxu0 0
        %1604 = vmatpush1.bf16.msra.mxu0 %v1460
        %1605 = vmatprep.subr.bf16.mxu0 0
        %1606 = vmatpush1.bf16.msra.mxu0 %v1457
        %1607 = vmatprep.subr.bf16.mxu0 0
        %1608 = vmatpush1.bf16.msra.mxu0 %v1454
        %1609 = vmatprep.subr.bf16.mxu0 0
        %1610 = vmatpush1.bf16.msra.mxu0 %v1451
        %1611 = vmatprep.subr.bf16.mxu0 0
        %1612 = vmatpush1.bf16.msra.mxu0 %v1448
        %1613 = vmatprep.subr.bf16.mxu0 0
        %1614 = vmatpush1.bf16.msra.mxu0 %v1445
        %1615 = vmatprep.subr.bf16.mxu0 0
        %1616 = vmatpush1.bf16.msra.mxu0 %v1442
        %1617 = vmatprep.subr.bf16.mxu0 0
        %1618 = vmatpush1.bf16.msra.mxu0 %v1439
        %1619 = vmatprep.subr.bf16.mxu0 0
        %1620 = vmatpush2.bf16.msra.mxu0 0
        %1621 = vmatprep.subr.bf16.mxu0 0
        %1622 = vmatpush2.bf16.msra.mxu0 0
        %1623 = vmatprep.subr.bf16.mxu0 0
        %1624 = vmatpush2.bf16.msra.mxu0 0
        %1625 = vmatprep.subr.bf16.mxu0 0
        %1626 = vmatpush2.bf16.msra.mxu0 0
        %1627 = vmatprep.subr.bf16.mxu0 0
        %1628 = vmatpush2.bf16.msra.mxu0 0
        %1629 = vmatprep.subr.bf16.mxu0 0
        %1630 = vmatpush2.bf16.msra.mxu0 0
        %1631 = vmatprep.subr.bf16.mxu0 0
        %1632 = vmatpush2.bf16.msra.mxu0 0
        %1633 = vmatprep.subr.bf16.mxu0 0
        %1634 = vmatpush2.bf16.msra.mxu0 %v1463
        %1635 = vmatprep.mubr.bf16.mxu0 %v1493
        %1636 = vmatmul.mubr.bf16.gmra.mxu0 %v1329
        %v1637 = vpop.f32.mrf.mxu0
        %v1638 = vadd.f32 0.0, %v1637
        %v1639 = vpop.f32.mrf.mxu0
        %v1640 = vpop.f32.mrf.mxu0
        %v1641 = vadd.f32 0.0, %v1640
        %v1642 = vpop.f32.mrf.mxu0
        %1643 = vmatprep.mubr.bf16.mxu0 %v1496
        %1644 = vmatmul.mubr.bf16.gmra.mxu0 %v1331
        %v1645 = vpop.f32.mrf.mxu0
        %v1646 = vadd.f32 0.0, %v1645
        %v1647 = vpop.f32.mrf.mxu0
        %v1648 = vpop.f32.mrf.mxu0
        %v1649 = vadd.f32 0.0, %v1648
        %v1650 = vpop.f32.mrf.mxu0
        %1651 = vmatprep.mubr.bf16.mxu0 %v1499
        %1652 = vmatmul.mubr.bf16.gmra.mxu0 %v1333
        %v1653 = vpop.f32.mrf.mxu0
        %v1654 = vadd.f32 0.0, %v1653
        %v1655 = vpop.f32.mrf.mxu0
        %v1656 = vpop.f32.mrf.mxu0
        %v1657 = vadd.f32 0.0, %v1656
        %v1658 = vpop.f32.mrf.mxu0
        %1659 = vmatprep.mubr.bf16.mxu0 %v1502
        %1660 = vmatmul.mubr.bf16.gmra.mxu0 %v1335
        %v1661 = vpop.f32.mrf.mxu0
        %v1662 = vadd.f32 0.0, %v1661
        %v1663 = vpop.f32.mrf.mxu0
        %v1664 = vpop.f32.mrf.mxu0
        %v1665 = vadd.f32 0.0, %v1664
        %v1666 = vpop.f32.mrf.mxu0
        %1667 = vmatprep.mubr.bf16.mxu0 %v1505
        %1668 = vmatmul.mubr.bf16.gmra.mxu0 %v1337
        %v1669 = vpop.f32.mrf.mxu0
        %v1670 = vadd.f32 0.0, %v1669
        %v1671 = vpop.f32.mrf.mxu0
        %v1672 = vpop.f32.mrf.mxu0
        %v1673 = vadd.f32 0.0, %v1672
        %v1674 = vpop.f32.mrf.mxu0
        %1675 = vmatprep.mubr.bf16.mxu0 %v1508
        %1676 = vmatmul.mubr.bf16.gmra.mxu0 %v1339
        %v1677 = vpop.f32.mrf.mxu0
        %v1678 = vadd.f32 0.0, %v1677
        %v1679 = vpop.f32.mrf.mxu0
        %v1680 = vpop.f32.mrf.mxu0
        %v1681 = vadd.f32 0.0, %v1680
        %v1682 = vpop.f32.mrf.mxu0
        %1683 = vdwg.mxu0
        %1684 = vst [vmem:[#allocation4] sm:$0xff] %v1545
        %1685 = vst [vmem:[#allocation4 + $0x8] sm:$0xff] %v1547
        %1686 = vst [vmem:[#allocation4 + $0x10] sm:$0xff] %v1638
        %1687 = vst [vmem:[#allocation4 + $0x18] sm:$0xff] %v1549
        %1688 = vst [vmem:[#allocation4 + $0x20] sm:$0xff] %v1551
        %1689 = vst [vmem:[#allocation4 + $0x28] sm:$0xff] %v1641
        %1690 = vst [vmem:[#allocation4 + $0x30] sm:$0xff] %v1555
        %1691 = vst [vmem:[#allocation4 + $0x38] sm:$0xff] %v1557
        %1692 = vst [vmem:[#allocation4 + $0x40] sm:$0xff] %v1646
        %1693 = vst [vmem:[#allocation4 + $0x48] sm:$0xff] %v1559
        %1694 = vst [vmem:[#allocation4 + $0x50] sm:$0xff] %v1561
        %1695 = vst [vmem:[#allocation4 + $0x58] sm:$0xff] %v1649
        %1696 = vst [vmem:[#allocation4 + $0x60] sm:$0xff] %v1565
        %1697 = vst [vmem:[#allocation4 + $0x68] sm:$0xff] %v1567
        %1698 = vst [vmem:[#allocation4 + $0x70] sm:$0xff] %v1654
        %1699 = vst [vmem:[#allocation4 + $0x78] sm:$0xff] %v1569
        %1700 = vst [vmem:[#allocation4 + $0x80] sm:$0xff] %v1571
        %1701 = vst [vmem:[#allocation4 + $0x88] sm:$0xff] %v1657
        %1702 = vst [vmem:[#allocation4 + $0x90] sm:$0xff] %v1575
        %1703 = vst [vmem:[#allocation4 + $0x98] sm:$0xff] %v1577
        %1704 = vst [vmem:[#allocation4 + $0xa0] sm:$0xff] %v1662
        %1705 = vst [vmem:[#allocation4 + $0xa8] sm:$0xff] %v1579
        %1706 = vst [vmem:[#allocation4 + $0xb0] sm:$0xff] %v1581
        %1707 = vst [vmem:[#allocation4 + $0xb8] sm:$0xff] %v1665
        %1708 = vst [vmem:[#allocation4 + $0xc0] sm:$0xff] %v1585
        %1709 = vst [vmem:[#allocation4 + $0xc8] sm:$0xff] %v1587
        %1710 = vst [vmem:[#allocation4 + $0xd0] sm:$0xff] %v1670
        %1711 = vst [vmem:[#allocation4 + $0xd8] sm:$0xff] %v1589
        %1712 = vst [vmem:[#allocation4 + $0xe0] sm:$0xff] %v1591
        %1713 = vst [vmem:[#allocation4 + $0xe8] sm:$0xff] %v1673
        %1714 = vst [vmem:[#allocation4 + $0xf0] sm:$0xff] %v1595
        %1715 = vst [vmem:[#allocation4 + $0xf8] sm:$0xff] %v1597
        %1716 = vst [vmem:[#allocation4 + $0x100] sm:$0xff] %v1678
        %1717 = vst [vmem:[#allocation4 + $0x108] sm:$0xff] %v1599
        %1718 = vst [vmem:[#allocation4 + $0x110] sm:$0xff] %v1601
        %1719 = vst [vmem:[#allocation4 + $0x118] sm:$0xff] %v1681
        %v1720 = vld [vmem:[%s5] sm:$0xff]
        %v1721 = vld [vmem:[%s5 + $0x8] sm:$0xf]
        %v1722 = vld [vmem:[%s5 + $0xc] sm:$0xff]
        %v1723 = vld [vmem:[%s5 + $0x14] sm:$0xf]
        %v1724 = vld [vmem:[%s5 + $0x18] sm:$0xff]
        %v1725 = vld [vmem:[%s5 + $0x20] sm:$0xf]
        %v1726 = vld [vmem:[%s5 + $0x24] sm:$0xff]
        %v1727 = vld [vmem:[%s5 + $0x2c] sm:$0xf]
        %v1728 = vld [vmem:[%s5 + $0x30] sm:$0xff]
        %v1729 = vld [vmem:[%s5 + $0x38] sm:$0xf]
        %v1730 = vld [vmem:[%s5 + $0x3c] sm:$0xff]
        %v1731 = vld [vmem:[%s5 + $0x44] sm:$0xf]
        %v1732 = vld [vmem:[%s5 + $0x48] sm:$0xff]
        %v1733 = vld [vmem:[%s5 + $0x50] sm:$0xf]
        %v1734 = vld [vmem:[%s5 + $0x54] sm:$0xff]
        %v1735 = vld [vmem:[%s5 + $0x5c] sm:$0xf]
        %v1736 = vld [vmem:[%s5 + $0x60] sm:$0xff]
        %v1737 = vld [vmem:[%s5 + $0x68] sm:$0xf]
        %v1738 = vld [vmem:[%s5 + $0x6c] sm:$0xff]
        %v1739 = vld [vmem:[%s5 + $0x74] sm:$0xf]
        %v1740 = vld [vmem:[%s5 + $0x78] sm:$0xff]
        %v1741 = vld [vmem:[%s5 + $0x80] sm:$0xf]
        %v1742 = vld [vmem:[%s5 + $0x84] sm:$0xff]
        %v1743 = vld [vmem:[%s5 + $0x8c] sm:$0xf]
        %v1744 = vld [vmem:[#allocation3] sm:$0xff]
        %v1745 = vld [vmem:[#allocation3 + $0x8] sm:$0xf]
        %v1746 = vld [vmem:[#allocation3 + $0xc] sm:$0xff]
        %v1747 = vld [vmem:[#allocation3 + $0x14] sm:$0xf]
        %v1748 = vld [vmem:[#allocation3 + $0x18] sm:$0xff]
        %v1749 = vld [vmem:[#allocation3 + $0x20] sm:$0xf]
        %v1750 = vld [vmem:[#allocation3 + $0x24] sm:$0xff]
        %v1751 = vld [vmem:[#allocation3 + $0x2c] sm:$0xf]
        %v1752 = vld [vmem:[#allocation3 + $0x30] sm:$0xff]
        %v1753 = vld [vmem:[#allocation3 + $0x38] sm:$0xf]
        %v1754 = vld [vmem:[#allocation3 + $0x3c] sm:$0xff]
        %v1755 = vld [vmem:[#allocation3 + $0x44] sm:$0xf]
        %v1756 = vld [vmem:[#allocation3 + $0x48] sm:$0xff]
        %v1757 = vld [vmem:[#allocation3 + $0x50] sm:$0xf]
        %v1758 = vld [vmem:[#allocation3 + $0x54] sm:$0xff]
        %v1759 = vld [vmem:[#allocation3 + $0x5c] sm:$0xf]
        %v1760 = vld [vmem:[#allocation3 + $0x60] sm:$0xff]
        %v1761 = vld [vmem:[#allocation3 + $0x68] sm:$0xf]
        %v1762 = vld [vmem:[#allocation3 + $0x6c] sm:$0xff]
        %v1763 = vld [vmem:[#allocation3 + $0x74] sm:$0xf]
        %v1764 = vld [vmem:[#allocation3 + $0x78] sm:$0xff]
        %v1765 = vld [vmem:[#allocation3 + $0x80] sm:$0xf]
        %v1766 = vld [vmem:[#allocation3 + $0x84] sm:$0xff]
        %v1767 = vld [vmem:[#allocation3 + $0x8c] sm:$0xf]
        %v1768 = vld [vmem:[#allocation3 + $0x90] sm:$0xff]
        %v1769 = vld [vmem:[#allocation3 + $0x98] sm:$0xf]
        %v1770 = vld [vmem:[#allocation3 + $0x9c] sm:$0xff]
        %v1771 = vld [vmem:[#allocation3 + $0xa4] sm:$0xf]
        %v1772 = vld [vmem:[#allocation3 + $0xa8] sm:$0xff]
        %v1773 = vld [vmem:[#allocation3 + $0xb0] sm:$0xf]
        %v1774 = vld [vmem:[#allocation3 + $0xb4] sm:$0xff]
        %v1775 = vld [vmem:[#allocation3 + $0xbc] sm:$0xf]
        %v1776 = vld [vmem:[#allocation3 + $0xc0] sm:$0xff]
        %v1777 = vld [vmem:[#allocation3 + $0xc8] sm:$0xf]
        %v1778 = vld [vmem:[#allocation3 + $0xcc] sm:$0xff]
        %v1779 = vld [vmem:[#allocation3 + $0xd4] sm:$0xf]
        %v1780 = vld [vmem:[#allocation3 + $0xd8] sm:$0xff]
        %v1781 = vld [vmem:[#allocation3 + $0xe0] sm:$0xf]
        %v1782 = vld [vmem:[#allocation3 + $0xe4] sm:$0xff]
        %v1783 = vld [vmem:[#allocation3 + $0xec] sm:$0xf]
        %v1784 = vld [vmem:[#allocation3 + $0xf0] sm:$0xff]
        %v1785 = vld [vmem:[#allocation3 + $0xf8] sm:$0xf]
        %v1786 = vld [vmem:[#allocation3 + $0xfc] sm:$0xff]
        %v1787 = vld [vmem:[#allocation3 + $0x104] sm:$0xf]
        %v1788 = vld [vmem:[#allocation3 + $0x108] sm:$0xff]
        %v1789 = vld [vmem:[#allocation3 + $0x110] sm:$0xf]
        %v1790 = vld [vmem:[#allocation3 + $0x114] sm:$0xff]
        %v1791 = vld [vmem:[#allocation3 + $0x11c] sm:$0xf]
        %v1792 = vld [vmem:[#allocation3 + $0x120] sm:$0xff]
        %v1793 = vld [vmem:[#allocation3 + $0x128] sm:$0xf]
        %v1794 = vld [vmem:[#allocation3 + $0x12c] sm:$0xff]
        %v1795 = vld [vmem:[#allocation3 + $0x134] sm:$0xf]
        %v1796 = vld [vmem:[#allocation3 + $0x138] sm:$0xff]
        %v1797 = vld [vmem:[#allocation3 + $0x140] sm:$0xf]
        %v1798 = vld [vmem:[#allocation3 + $0x144] sm:$0xff]
        %v1799 = vld [vmem:[#allocation3 + $0x14c] sm:$0xf]
        %v1800 = vld [vmem:[#allocation3 + $0x150] sm:$0xff]
        %v1801 = vld [vmem:[#allocation3 + $0x158] sm:$0xf]
        %v1802 = vld [vmem:[#allocation3 + $0x15c] sm:$0xff]
        %v1803 = vld [vmem:[#allocation3 + $0x164] sm:$0xf]
        %v1804 = vld [vmem:[#allocation3 + $0x168] sm:$0xff]
        %v1805 = vld [vmem:[#allocation3 + $0x170] sm:$0xf]
        %v1806 = vld [vmem:[#allocation3 + $0x174] sm:$0xff]
        %v1807 = vld [vmem:[#allocation3 + $0x17c] sm:$0xf]
        %v1808 = vld [vmem:[#allocation3 + $0x180] sm:$0xff]
        %v1809 = vld [vmem:[#allocation3 + $0x188] sm:$0xf]
        %v1810 = vld [vmem:[#allocation3 + $0x18c] sm:$0xff]
        %v1811 = vld [vmem:[#allocation3 + $0x194] sm:$0xf]
        %v1812 = vld [vmem:[#allocation3 + $0x198] sm:$0xff]
        %v1813 = vld [vmem:[#allocation3 + $0x1a0] sm:$0xf]
        %v1814 = vld [vmem:[#allocation3 + $0x1a4] sm:$0xff]
        %v1815 = vld [vmem:[#allocation3 + $0x1ac] sm:$0xf]
        %v1840 = vunpack.c.l.b16 %v1720
        %v1841 = vunpack.c.h.b16 %v1720
        %v1842 = vunpack.c.l.b16 %v1721
        %v1843 = vunpack.c.l.b16 %v1722
        %v1844 = vunpack.c.h.b16 %v1722
        %v1845 = vunpack.c.l.b16 %v1723
        %v1846 = vunpack.c.l.b16 %v1724
        %v1847 = vunpack.c.h.b16 %v1724
        %v1848 = vunpack.c.l.b16 %v1725
        %v1849 = vunpack.c.l.b16 %v1726
        %v1850 = vunpack.c.h.b16 %v1726
        %v1851 = vunpack.c.l.b16 %v1727
        %v1852 = vunpack.c.l.b16 %v1728
        %v1853 = vunpack.c.h.b16 %v1728
        %v1854 = vunpack.c.l.b16 %v1729
        %v1855 = vunpack.c.l.b16 %v1730
        %v1856 = vunpack.c.h.b16 %v1730
        %v1857 = vunpack.c.l.b16 %v1731
        %v1858 = vunpack.c.l.b16 %v1732
        %v1859 = vunpack.c.h.b16 %v1732
        %v1860 = vunpack.c.l.b16 %v1733
        %v1861 = vunpack.c.l.b16 %v1734
        %v1862 = vunpack.c.h.b16 %v1734
        %v1863 = vunpack.c.l.b16 %v1735
        %v1864 = vunpack.c.l.b16 %v1736
        %v1865 = vunpack.c.h.b16 %v1736
        %v1866 = vunpack.c.l.b16 %v1737
        %v1867 = vunpack.c.l.b16 %v1738
        %v1868 = vunpack.c.h.b16 %v1738
        %v1869 = vunpack.c.l.b16 %v1739
        %v1870 = vunpack.c.l.b16 %v1740
        %v1871 = vunpack.c.h.b16 %v1740
        %v1872 = vunpack.c.l.b16 %v1741
        %v1873 = vunpack.c.l.b16 %v1742
        %v1874 = vunpack.c.h.b16 %v1742
        %v1875 = vunpack.c.l.b16 %v1743
        %v1876 = vpack.c.b16 %v1843, %v1840
        %v1877 = vpack.c.b16 %v1844, %v1841
        %v1878 = vpack.c.b16 %v1845, %v1842
        %v1879 = vpack.c.b16 %v1849, %v1846
        %v1880 = vpack.c.b16 %v1850, %v1847
        %v1881 = vpack.c.b16 %v1851, %v1848
        %v1882 = vpack.c.b16 %v1855, %v1852
        %v1883 = vpack.c.b16 %v1856, %v1853
        %v1884 = vpack.c.b16 %v1857, %v1854
        %v1885 = vpack.c.b16 %v1861, %v1858
        %v1886 = vpack.c.b16 %v1862, %v1859
        %v1887 = vpack.c.b16 %v1863, %v1860
        %v1888 = vpack.c.b16 %v1867, %v1864
        %v1889 = vpack.c.b16 %v1868, %v1865
        %v1890 = vpack.c.b16 %v1869, %v1866
        %v1891 = vpack.c.b16 %v1873, %v1870
        %v1892 = vpack.c.b16 %v1874, %v1871
        %v1893 = vpack.c.b16 %v1875, %v1872
        %v1978 = vunpack.c.l.b16 %v1744
        %v1979 = vunpack.c.h.b16 %v1744
        %v1980 = vunpack.c.l.b16 %v1745
        %v1981 = vunpack.c.l.b16 %v1746
        %v1982 = vunpack.c.h.b16 %v1746
        %v1983 = vunpack.c.l.b16 %v1747
        %v1984 = vunpack.c.l.b16 %v1748
        %v1985 = vunpack.c.h.b16 %v1748
        %v1986 = vunpack.c.l.b16 %v1749
        %v1987 = vunpack.c.l.b16 %v1750
        %v1988 = vunpack.c.h.b16 %v1750
        %v1989 = vunpack.c.l.b16 %v1751
        %v1990 = vunpack.c.l.b16 %v1752
        %v1991 = vunpack.c.h.b16 %v1752
        %v1992 = vunpack.c.l.b16 %v1753
        %v1993 = vunpack.c.l.b16 %v1754
        %v1994 = vunpack.c.h.b16 %v1754
        %v1995 = vunpack.c.l.b16 %v1755
        %v1996 = vunpack.c.l.b16 %v1756
        %v1997 = vunpack.c.h.b16 %v1756
        %v1998 = vunpack.c.l.b16 %v1757
        %v1999 = vunpack.c.l.b16 %v1758
        %v2000 = vunpack.c.h.b16 %v1758
        %v2001 = vunpack.c.l.b16 %v1759
        %v2002 = vunpack.c.l.b16 %v1760
        %v2003 = vunpack.c.h.b16 %v1760
        %v2004 = vunpack.c.l.b16 %v1761
        %v2005 = vunpack.c.l.b16 %v1762
        %v2006 = vunpack.c.h.b16 %v1762
        %v2007 = vunpack.c.l.b16 %v1763
        %v2008 = vunpack.c.l.b16 %v1764
        %v2009 = vunpack.c.h.b16 %v1764
        %v2010 = vunpack.c.l.b16 %v1765
        %v2011 = vunpack.c.l.b16 %v1766
        %v2012 = vunpack.c.h.b16 %v1766
        %v2013 = vunpack.c.l.b16 %v1767
        %v2014 = vunpack.c.l.b16 %v1768
        %v2015 = vunpack.c.h.b16 %v1768
        %v2016 = vunpack.c.l.b16 %v1769
        %v2017 = vunpack.c.l.b16 %v1770
        %v2018 = vunpack.c.h.b16 %v1770
        %v2019 = vunpack.c.l.b16 %v1771
        %v2020 = vunpack.c.l.b16 %v1772
        %v2021 = vunpack.c.h.b16 %v1772
        %v2022 = vunpack.c.l.b16 %v1773
        %v2023 = vunpack.c.l.b16 %v1774
        %v2024 = vunpack.c.h.b16 %v1774
        %v2025 = vunpack.c.l.b16 %v1775
        %v2026 = vunpack.c.l.b16 %v1776
        %v2027 = vunpack.c.h.b16 %v1776
        %v2028 = vunpack.c.l.b16 %v1777
        %v2029 = vunpack.c.l.b16 %v1778
        %v2030 = vunpack.c.h.b16 %v1778
        %v2031 = vunpack.c.l.b16 %v1779
        %v2032 = vunpack.c.l.b16 %v1780
        %v2033 = vunpack.c.h.b16 %v1780
        %v2034 = vunpack.c.l.b16 %v1781
        %v2035 = vunpack.c.l.b16 %v1782
        %v2036 = vunpack.c.h.b16 %v1782
        %v2037 = vunpack.c.l.b16 %v1783
        %v2038 = vunpack.c.l.b16 %v1784
        %v2039 = vunpack.c.h.b16 %v1784
        %v2040 = vunpack.c.l.b16 %v1785
        %v2041 = vunpack.c.l.b16 %v1786
        %v2042 = vunpack.c.h.b16 %v1786
        %v2043 = vunpack.c.l.b16 %v1787
        %v2044 = vunpack.c.l.b16 %v1788
        %v2045 = vunpack.c.h.b16 %v1788
        %v2046 = vunpack.c.l.b16 %v1789
        %v2047 = vunpack.c.l.b16 %v1790
        %v2048 = vunpack.c.h.b16 %v1790
        %v2049 = vunpack.c.l.b16 %v1791
        %v2050 = vunpack.c.l.b16 %v1792
        %v2051 = vunpack.c.h.b16 %v1792
        %v2052 = vunpack.c.l.b16 %v1793
        %v2053 = vunpack.c.l.b16 %v1794
        %v2054 = vunpack.c.h.b16 %v1794
        %v2055 = vunpack.c.l.b16 %v1795
        %v2056 = vunpack.c.l.b16 %v1796
        %v2057 = vunpack.c.h.b16 %v1796
        %v2058 = vunpack.c.l.b16 %v1797
        %v2059 = vunpack.c.l.b16 %v1798
        %v2060 = vunpack.c.h.b16 %v1798
        %v2061 = vunpack.c.l.b16 %v1799
        %v2062 = vunpack.c.l.b16 %v1800
        %v2063 = vunpack.c.h.b16 %v1800
        %v2064 = vunpack.c.l.b16 %v1801
        %v2065 = vunpack.c.l.b16 %v1802
        %v2066 = vunpack.c.h.b16 %v1802
        %v2067 = vunpack.c.l.b16 %v1803
        %v2068 = vunpack.c.l.b16 %v1804
        %v2069 = vunpack.c.h.b16 %v1804
        %v2070 = vunpack.c.l.b16 %v1805
        %v2071 = vunpack.c.l.b16 %v1806
        %v2072 = vunpack.c.h.b16 %v1806
        %v2073 = vunpack.c.l.b16 %v1807
        %v2074 = vunpack.c.l.b16 %v1808
        %v2075 = vunpack.c.h.b16 %v1808
        %v2076 = vunpack.c.l.b16 %v1809
        %v2077 = vunpack.c.l.b16 %v1810
        %v2078 = vunpack.c.h.b16 %v1810
        %v2079 = vunpack.c.l.b16 %v1811
        %v2080 = vunpack.c.l.b16 %v1812
        %v2081 = vunpack.c.h.b16 %v1812
        %v2082 = vunpack.c.l.b16 %v1813
        %v2083 = vunpack.c.l.b16 %v1814
        %v2084 = vunpack.c.h.b16 %v1814
        %v2085 = vunpack.c.l.b16 %v1815
        %v2086 = vpack.c.b16 %v1981, %v1978
        %v2087 = vpack.c.b16 %v1982, %v1979
        %v2088 = vpack.c.b16 %v1983, %v1980
        %v2089 = vpack.c.b16 %v1987, %v1984
        %v2090 = vpack.c.b16 %v1988, %v1985
        %v2091 = vpack.c.b16 %v1989, %v1986
        %v2092 = vpack.c.b16 %v1993, %v1990
        %v2093 = vpack.c.b16 %v1994, %v1991
        %v2094 = vpack.c.b16 %v1995, %v1992
        %v2095 = vpack.c.b16 %v1999, %v1996
        %v2096 = vpack.c.b16 %v2000, %v1997
        %v2097 = vpack.c.b16 %v2001, %v1998
        %v2098 = vpack.c.b16 %v2005, %v2002
        %v2099 = vpack.c.b16 %v2006, %v2003
        %v2100 = vpack.c.b16 %v2007, %v2004
        %v2101 = vpack.c.b16 %v2011, %v2008
        %v2102 = vpack.c.b16 %v2012, %v2009
        %v2103 = vpack.c.b16 %v2013, %v2010
        %v2104 = vpack.c.b16 %v2017, %v2014
        %v2105 = vpack.c.b16 %v2018, %v2015
        %v2106 = vpack.c.b16 %v2019, %v2016
        %v2107 = vpack.c.b16 %v2023, %v2020
        %v2108 = vpack.c.b16 %v2024, %v2021
        %v2109 = vpack.c.b16 %v2025, %v2022
        %v2110 = vpack.c.b16 %v2029, %v2026
        %v2111 = vpack.c.b16 %v2030, %v2027
        %v2112 = vpack.c.b16 %v2031, %v2028
        %v2113 = vpack.c.b16 %v2035, %v2032
        %v2114 = vpack.c.b16 %v2036, %v2033
        %v2115 = vpack.c.b16 %v2037, %v2034
        %v2116 = vpack.c.b16 %v2041, %v2038
        %v2117 = vpack.c.b16 %v2042, %v2039
        %v2118 = vpack.c.b16 %v2043, %v2040
        %v2119 = vpack.c.b16 %v2047, %v2044
        %v2120 = vpack.c.b16 %v2048, %v2045
        %v2121 = vpack.c.b16 %v2049, %v2046
        %v2122 = vpack.c.b16 %v2053, %v2050
        %v2123 = vpack.c.b16 %v2054, %v2051
        %v2124 = vpack.c.b16 %v2055, %v2052
        %v2125 = vpack.c.b16 %v2059, %v2056
        %v2126 = vpack.c.b16 %v2060, %v2057
        %v2127 = vpack.c.b16 %v2061, %v2058
        %v2128 = vpack.c.b16 %v2065, %v2062
        %v2129 = vpack.c.b16 %v2066, %v2063
        %v2130 = vpack.c.b16 %v2067, %v2064
        %v2131 = vpack.c.b16 %v2071, %v2068
        %v2132 = vpack.c.b16 %v2072, %v2069
        %v2133 = vpack.c.b16 %v2073, %v2070
        %v2134 = vpack.c.b16 %v2077, %v2074
        %v2135 = vpack.c.b16 %v2078, %v2075
        %v2136 = vpack.c.b16 %v2079, %v2076
        %v2137 = vpack.c.b16 %v2083, %v2080
        %v2138 = vpack.c.b16 %v2084, %v2081
        %v2139 = vpack.c.b16 %v2085, %v2082
        %vm2194 = vcmask 261120
        %v2196 = vsel %vm2194, %v1878, 0
        %v2199 = vsel %vm2194, %v1881, 0
        %v2202 = vsel %vm2194, %v1884, 0
        %v2205 = vsel %vm2194, %v1887, 0
        %v2208 = vsel %vm2194, %v1890, 0
        %v2211 = vsel %vm2194, %v1893, 0
        %2213 = vmatprep.subr.bf16.mxu0 %v2108
        %2214 = vmatpush1.bf16.msra.mxu0 %v2107
        %2215 = vmatprep.subr.bf16.mxu0 %v2105
        %2216 = vmatpush1.bf16.msra.mxu0 %v2104
        %2217 = vmatprep.subr.bf16.mxu0 %v2102
        %2218 = vmatpush1.bf16.msra.mxu0 %v2101
        %2219 = vmatprep.subr.bf16.mxu0 %v2099
        %2220 = vmatpush1.bf16.msra.mxu0 %v2098
        %2221 = vmatprep.subr.bf16.mxu0 %v2096
        %2222 = vmatpush1.bf16.msra.mxu0 %v2095
        %2223 = vmatprep.subr.bf16.mxu0 %v2093
        %2224 = vmatpush1.bf16.msra.mxu0 %v2092
        %2225 = vmatprep.subr.bf16.mxu0 %v2090
        %2226 = vmatpush1.bf16.msra.mxu0 %v2089
        %2227 = vmatprep.subr.bf16.mxu0 %v2087
        %2228 = vmatpush1.bf16.msra.mxu0 %v2086
        %2229 = vmatprep.subr.bf16.mxu0 %v2132
        %2230 = vmatpush2.bf16.msra.mxu0 %v2131
        %2231 = vmatprep.subr.bf16.mxu0 %v2129
        %2232 = vmatpush2.bf16.msra.mxu0 %v2128
        %2233 = vmatprep.subr.bf16.mxu0 %v2126
        %2234 = vmatpush2.bf16.msra.mxu0 %v2125
        %2235 = vmatprep.subr.bf16.mxu0 %v2123
        %2236 = vmatpush2.bf16.msra.mxu0 %v2122
        %2237 = vmatprep.subr.bf16.mxu0 %v2120
        %2238 = vmatpush2.bf16.msra.mxu0 %v2119
        %2239 = vmatprep.subr.bf16.mxu0 %v2117
        %2240 = vmatpush2.bf16.msra.mxu0 %v2116
        %2241 = vmatprep.subr.bf16.mxu0 %v2114
        %2242 = vmatpush2.bf16.msra.mxu0 %v2113
        %2243 = vmatprep.subr.bf16.mxu0 %v2111
        %2244 = vmatpush2.bf16.msra.mxu0 %v2110
        %2245 = vmatprep.mubr.bf16.mxu0 %v1877
        %2246 = vmatmul.mubr.bf16.gmra.mxu0 %v1876
        %v2247 = vpop.f32.mrf.mxu0
        %v2248 = vadd.f32 0.0, %v2247
        %v2249 = vpop.f32.mrf.mxu0
        %v2250 = vadd.f32 0.0, %v2249
        %v2251 = vpop.f32.mrf.mxu0
        %v2252 = vadd.f32 0.0, %v2251
        %v2253 = vpop.f32.mrf.mxu0
        %v2254 = vadd.f32 0.0, %v2253
        %2255 = vmatprep.mubr.bf16.mxu0 %v1880
        %2256 = vmatmul.mubr.bf16.gmra.mxu0 %v1879
        %v2257 = vpop.f32.mrf.mxu0
        %v2258 = vadd.f32 0.0, %v2257
        %v2259 = vpop.f32.mrf.mxu0
        %v2260 = vadd.f32 0.0, %v2259
        %v2261 = vpop.f32.mrf.mxu0
        %v2262 = vadd.f32 0.0, %v2261
        %v2263 = vpop.f32.mrf.mxu0
        %v2264 = vadd.f32 0.0, %v2263
        %2265 = vmatprep.mubr.bf16.mxu0 %v1883
        %2266 = vmatmul.mubr.bf16.gmra.mxu0 %v1882
        %v2267 = vpop.f32.mrf.mxu0
        %v2268 = vadd.f32 0.0, %v2267
        %v2269 = vpop.f32.mrf.mxu0
        %v2270 = vadd.f32 0.0, %v2269
        %v2271 = vpop.f32.mrf.mxu0
        %v2272 = vadd.f32 0.0, %v2271
        %v2273 = vpop.f32.mrf.mxu0
        %v2274 = vadd.f32 0.0, %v2273
        %2275 = vmatprep.mubr.bf16.mxu0 %v1886
        %2276 = vmatmul.mubr.bf16.gmra.mxu0 %v1885
        %v2277 = vpop.f32.mrf.mxu0
        %v2278 = vadd.f32 0.0, %v2277
        %v2279 = vpop.f32.mrf.mxu0
        %v2280 = vadd.f32 0.0, %v2279
        %v2281 = vpop.f32.mrf.mxu0
        %v2282 = vadd.f32 0.0, %v2281
        %v2283 = vpop.f32.mrf.mxu0
        %v2284 = vadd.f32 0.0, %v2283
        %2285 = vmatprep.mubr.bf16.mxu0 %v1889
        %2286 = vmatmul.mubr.bf16.gmra.mxu0 %v1888
        %v2287 = vpop.f32.mrf.mxu0
        %v2288 = vadd.f32 0.0, %v2287
        %v2289 = vpop.f32.mrf.mxu0
        %v2290 = vadd.f32 0.0, %v2289
        %v2291 = vpop.f32.mrf.mxu0
        %v2292 = vadd.f32 0.0, %v2291
        %v2293 = vpop.f32.mrf.mxu0
        %v2294 = vadd.f32 0.0, %v2293
        %2295 = vmatprep.mubr.bf16.mxu0 %v1892
        %2296 = vmatmul.mubr.bf16.gmra.mxu0 %v1891
        %v2297 = vpop.f32.mrf.mxu0
        %v2298 = vadd.f32 0.0, %v2297
        %v2299 = vpop.f32.mrf.mxu0
        %v2300 = vadd.f32 0.0, %v2299
        %v2301 = vpop.f32.mrf.mxu0
        %v2302 = vadd.f32 0.0, %v2301
        %v2303 = vpop.f32.mrf.mxu0
        %v2304 = vadd.f32 0.0, %v2303
        %2305 = vdwg.mxu0
        %2306 = vmatprep.subr.bf16.mxu0 0
        %2307 = vmatpush1.bf16.msra.mxu0 0
        %2308 = vmatprep.subr.bf16.mxu0 0
        %2309 = vmatpush1.bf16.msra.mxu0 0
        %2310 = vmatprep.subr.bf16.mxu0 0
        %2311 = vmatpush1.bf16.msra.mxu0 0
        %2312 = vmatprep.subr.bf16.mxu0 0
        %2313 = vmatpush1.bf16.msra.mxu0 0
        %2314 = vmatprep.subr.bf16.mxu0 0
        %2315 = vmatpush1.bf16.msra.mxu0 0
        %2316 = vmatprep.subr.bf16.mxu0 0
        %2317 = vmatpush1.bf16.msra.mxu0 0
        %2318 = vmatprep.subr.bf16.mxu0 %v2138
        %2319 = vmatpush1.bf16.msra.mxu0 %v2137
        %2320 = vmatprep.subr.bf16.mxu0 %v2135
        %2321 = vmatpush1.bf16.msra.mxu0 %v2134
        %2322 = vmatprep.subr.bf16.mxu0 0
        %2323 = vmatpush2.bf16.msra.mxu0 0
        %2324 = vmatprep.subr.bf16.mxu0 0
        %2325 = vmatpush2.bf16.msra.mxu0 0
        %2326 = vmatprep.subr.bf16.mxu0 0
        %2327 = vmatpush2.bf16.msra.mxu0 0
        %2328 = vmatprep.subr.bf16.mxu0 0
        %2329 = vmatpush2.bf16.msra.mxu0 0
        %2330 = vmatprep.subr.bf16.mxu0 0
        %2331 = vmatpush2.bf16.msra.mxu0 0
        %2332 = vmatprep.subr.bf16.mxu0 0
        %2333 = vmatpush2.bf16.msra.mxu0 0
        %2334 = vmatprep.subr.bf16.mxu0 0
        %2335 = vmatpush2.bf16.msra.mxu0 0
        %2336 = vmatprep.subr.bf16.mxu0 0
        %2337 = vmatpush2.bf16.msra.mxu0 0
        %2338 = vmatprep.mubr.bf16.mxu0 0
        %2339 = vmatmul.mubr.bf16.gmra.mxu0 %v2196
        %v2340 = vpop.f32.mrf.mxu0
        %v2341 = vadd.f32 %v2248, %v2340
        %v2342 = vpop.f32.mrf.mxu0
        %v2343 = vadd.f32 %v2250, %v2342
        %v2344 = vpop.f32.mrf.mxu0
        %v2345 = vadd.f32 %v2252, %v2344
        %v2346 = vpop.f32.mrf.mxu0
        %v2347 = vadd.f32 %v2254, %v2346
        %2348 = vmatprep.mubr.bf16.mxu0 0
        %2349 = vmatmul.mubr.bf16.gmra.mxu0 %v2199
        %v2350 = vpop.f32.mrf.mxu0
        %v2351 = vadd.f32 %v2258, %v2350
        %v2352 = vpop.f32.mrf.mxu0
        %v2353 = vadd.f32 %v2260, %v2352
        %v2354 = vpop.f32.mrf.mxu0
        %v2355 = vadd.f32 %v2262, %v2354
        %v2356 = vpop.f32.mrf.mxu0
        %v2357 = vadd.f32 %v2264, %v2356
        %2358 = vmatprep.mubr.bf16.mxu0 0
        %2359 = vmatmul.mubr.bf16.gmra.mxu0 %v2202
        %v2360 = vpop.f32.mrf.mxu0
        %v2361 = vadd.f32 %v2268, %v2360
        %v2362 = vpop.f32.mrf.mxu0
        %v2363 = vadd.f32 %v2270, %v2362
        %v2364 = vpop.f32.mrf.mxu0
        %v2365 = vadd.f32 %v2272, %v2364
        %v2366 = vpop.f32.mrf.mxu0
        %v2367 = vadd.f32 %v2274, %v2366
        %2368 = vmatprep.mubr.bf16.mxu0 0
        %2369 = vmatmul.mubr.bf16.gmra.mxu0 %v2205
        %v2370 = vpop.f32.mrf.mxu0
        %v2371 = vadd.f32 %v2278, %v2370
        %v2372 = vpop.f32.mrf.mxu0
        %v2373 = vadd.f32 %v2280, %v2372
        %v2374 = vpop.f32.mrf.mxu0
        %v2375 = vadd.f32 %v2282, %v2374
        %v2376 = vpop.f32.mrf.mxu0
        %v2377 = vadd.f32 %v2284, %v2376
        %2378 = vmatprep.mubr.bf16.mxu0 0
        %2379 = vmatmul.mubr.bf16.gmra.mxu0 %v2208
        %v2380 = vpop.f32.mrf.mxu0
        %v2381 = vadd.f32 %v2288, %v2380
        %v2382 = vpop.f32.mrf.mxu0
        %v2383 = vadd.f32 %v2290, %v2382
        %v2384 = vpop.f32.mrf.mxu0
        %v2385 = vadd.f32 %v2292, %v2384
        %v2386 = vpop.f32.mrf.mxu0
        %v2387 = vadd.f32 %v2294, %v2386
        %2388 = vmatprep.mubr.bf16.mxu0 0
        %2389 = vmatmul.mubr.bf16.gmra.mxu0 %v2211
        %v2390 = vpop.f32.mrf.mxu0
        %v2391 = vadd.f32 %v2298, %v2390
        %v2392 = vpop.f32.mrf.mxu0
        %v2393 = vadd.f32 %v2300, %v2392
        %v2394 = vpop.f32.mrf.mxu0
        %v2395 = vadd.f32 %v2302, %v2394
        %v2396 = vpop.f32.mrf.mxu0
        %v2397 = vadd.f32 %v2304, %v2396
        %2398 = vdwg.mxu0
        %2399 = vmatprep.subr.bf16.mxu0 0
        %2400 = vmatpush1.bf16.msra.mxu0 %v2109
        %2401 = vmatprep.subr.bf16.mxu0 0
        %2402 = vmatpush1.bf16.msra.mxu0 %v2106
        %2403 = vmatprep.subr.bf16.mxu0 0
        %2404 = vmatpush1.bf16.msra.mxu0 %v2103
        %2405 = vmatprep.subr.bf16.mxu0 0
        %2406 = vmatpush1.bf16.msra.mxu0 %v2100
        %2407 = vmatprep.subr.bf16.mxu0 0
        %2408 = vmatpush1.bf16.msra.mxu0 %v2097
        %2409 = vmatprep.subr.bf16.mxu0 0
        %2410 = vmatpush1.bf16.msra.mxu0 %v2094
        %2411 = vmatprep.subr.bf16.mxu0 0
        %2412 = vmatpush1.bf16.msra.mxu0 %v2091
        %2413 = vmatprep.subr.bf16.mxu0 0
        %2414 = vmatpush1.bf16.msra.mxu0 %v2088
        %2415 = vmatprep.subr.bf16.mxu0 0
        %2416 = vmatpush2.bf16.msra.mxu0 %v2133
        %2417 = vmatprep.subr.bf16.mxu0 0
        %2418 = vmatpush2.bf16.msra.mxu0 %v2130
        %2419 = vmatprep.subr.bf16.mxu0 0
        %2420 = vmatpush2.bf16.msra.mxu0 %v2127
        %2421 = vmatprep.subr.bf16.mxu0 0
        %2422 = vmatpush2.bf16.msra.mxu0 %v2124
        %2423 = vmatprep.subr.bf16.mxu0 0
        %2424 = vmatpush2.bf16.msra.mxu0 %v2121
        %2425 = vmatprep.subr.bf16.mxu0 0
        %2426 = vmatpush2.bf16.msra.mxu0 %v2118
        %2427 = vmatprep.subr.bf16.mxu0 0
        %2428 = vmatpush2.bf16.msra.mxu0 %v2115
        %2429 = vmatprep.subr.bf16.mxu0 0
        %2430 = vmatpush2.bf16.msra.mxu0 %v2112
        %2431 = vmatprep.mubr.bf16.mxu0 %v1877
        %2432 = vmatmul.mubr.bf16.gmra.mxu0 %v1876
        %v2433 = vpop.f32.mrf.mxu0
        %v2434 = vadd.f32 0.0, %v2433
        %v2435 = vpop.f32.mrf.mxu0
        %v2436 = vpop.f32.mrf.mxu0
        %v2437 = vadd.f32 0.0, %v2436
        %v2438 = vpop.f32.mrf.mxu0
        %2439 = vmatprep.mubr.bf16.mxu0 %v1880
        %2440 = vmatmul.mubr.bf16.gmra.mxu0 %v1879
        %v2441 = vpop.f32.mrf.mxu0
        %v2442 = vadd.f32 0.0, %v2441
        %v2443 = vpop.f32.mrf.mxu0
        %v2444 = vpop.f32.mrf.mxu0
        %v2445 = vadd.f32 0.0, %v2444
        %v2446 = vpop.f32.mrf.mxu0
        %2447 = vmatprep.mubr.bf16.mxu0 %v1883
        %2448 = vmatmul.mubr.bf16.gmra.mxu0 %v1882
        %v2449 = vpop.f32.mrf.mxu0
        %v2450 = vadd.f32 0.0, %v2449
        %v2451 = vpop.f32.mrf.mxu0
        %v2452 = vpop.f32.mrf.mxu0
        %v2453 = vadd.f32 0.0, %v2452
        %v2454 = vpop.f32.mrf.mxu0
        %2455 = vmatprep.mubr.bf16.mxu0 %v1886
        %2456 = vmatmul.mubr.bf16.gmra.mxu0 %v1885
        %v2457 = vpop.f32.mrf.mxu0
        %v2458 = vadd.f32 0.0, %v2457
        %v2459 = vpop.f32.mrf.mxu0
        %v2460 = vpop.f32.mrf.mxu0
        %v2461 = vadd.f32 0.0, %v2460
        %v2462 = vpop.f32.mrf.mxu0
        %2463 = vmatprep.mubr.bf16.mxu0 %v1889
        %2464 = vmatmul.mubr.bf16.gmra.mxu0 %v1888
        %v2465 = vpop.f32.mrf.mxu0
        %v2466 = vadd.f32 0.0, %v2465
        %v2467 = vpop.f32.mrf.mxu0
        %v2468 = vpop.f32.mrf.mxu0
        %v2469 = vadd.f32 0.0, %v2468
        %v2470 = vpop.f32.mrf.mxu0
        %2471 = vmatprep.mubr.bf16.mxu0 %v1892
        %2472 = vmatmul.mubr.bf16.gmra.mxu0 %v1891
        %v2473 = vpop.f32.mrf.mxu0
        %v2474 = vadd.f32 0.0, %v2473
        %v2475 = vpop.f32.mrf.mxu0
        %v2476 = vpop.f32.mrf.mxu0
        %v2477 = vadd.f32 0.0, %v2476
        %v2478 = vpop.f32.mrf.mxu0
        %2479 = vdwg.mxu0
        %2480 = vmatprep.subr.bf16.mxu0 0
        %2481 = vmatpush1.bf16.msra.mxu0 0
        %2482 = vmatprep.subr.bf16.mxu0 0
        %2483 = vmatpush1.bf16.msra.mxu0 0
        %2484 = vmatprep.subr.bf16.mxu0 0
        %2485 = vmatpush1.bf16.msra.mxu0 0
        %2486 = vmatprep.subr.bf16.mxu0 0
        %2487 = vmatpush1.bf16.msra.mxu0 0
        %2488 = vmatprep.subr.bf16.mxu0 0
        %2489 = vmatpush1.bf16.msra.mxu0 0
        %2490 = vmatprep.subr.bf16.mxu0 0
        %2491 = vmatpush1.bf16.msra.mxu0 0
        %2492 = vmatprep.subr.bf16.mxu0 0
        %2493 = vmatpush1.bf16.msra.mxu0 %v2139
        %2494 = vmatprep.subr.bf16.mxu0 0
        %2495 = vmatpush1.bf16.msra.mxu0 %v2136
        %2496 = vmatprep.subr.bf16.mxu0 0
        %2497 = vmatpush2.bf16.msra.mxu0 0
        %2498 = vmatprep.subr.bf16.mxu0 0
        %2499 = vmatpush2.bf16.msra.mxu0 0
        %2500 = vmatprep.subr.bf16.mxu0 0
        %2501 = vmatpush2.bf16.msra.mxu0 0
        %2502 = vmatprep.subr.bf16.mxu0 0
        %2503 = vmatpush2.bf16.msra.mxu0 0
        %2504 = vmatprep.subr.bf16.mxu0 0
        %2505 = vmatpush2.bf16.msra.mxu0 0
        %2506 = vmatprep.subr.bf16.mxu0 0
        %2507 = vmatpush2.bf16.msra.mxu0 0
        %2508 = vmatprep.subr.bf16.mxu0 0
        %2509 = vmatpush2.bf16.msra.mxu0 0
        %2510 = vmatprep.subr.bf16.mxu0 0
        %2511 = vmatpush2.bf16.msra.mxu0 0
        %2512 = vmatprep.mubr.bf16.mxu0 0
        %2513 = vmatmul.mubr.bf16.gmra.mxu0 %v2196
        %v2514 = vpop.f32.mrf.mxu0
        %v2515 = vadd.f32 %v2434, %v2514
        %v2516 = vpop.f32.mrf.mxu0
        %v2517 = vpop.f32.mrf.mxu0
        %v2518 = vadd.f32 %v2437, %v2517
        %v2519 = vpop.f32.mrf.mxu0
        %2520 = vmatprep.mubr.bf16.mxu0 0
        %2521 = vmatmul.mubr.bf16.gmra.mxu0 %v2199
        %v2522 = vpop.f32.mrf.mxu0
        %v2523 = vadd.f32 %v2442, %v2522
        %v2524 = vpop.f32.mrf.mxu0
        %v2525 = vpop.f32.mrf.mxu0
        %v2526 = vadd.f32 %v2445, %v2525
        %v2527 = vpop.f32.mrf.mxu0
        %2528 = vmatprep.mubr.bf16.mxu0 0
        %2529 = vmatmul.mubr.bf16.gmra.mxu0 %v2202
        %v2530 = vpop.f32.mrf.mxu0
        %v2531 = vadd.f32 %v2450, %v2530
        %v2532 = vpop.f32.mrf.mxu0
        %v2533 = vpop.f32.mrf.mxu0
        %v2534 = vadd.f32 %v2453, %v2533
        %v2535 = vpop.f32.mrf.mxu0
        %2536 = vmatprep.mubr.bf16.mxu0 0
        %2537 = vmatmul.mubr.bf16.gmra.mxu0 %v2205
        %v2538 = vpop.f32.mrf.mxu0
        %v2539 = vadd.f32 %v2458, %v2538
        %v2540 = vpop.f32.mrf.mxu0
        %v2541 = vpop.f32.mrf.mxu0
        %v2542 = vadd.f32 %v2461, %v2541
        %v2543 = vpop.f32.mrf.mxu0
        %2544 = vmatprep.mubr.bf16.mxu0 0
        %2545 = vmatmul.mubr.bf16.gmra.mxu0 %v2208
        %v2546 = vpop.f32.mrf.mxu0
        %v2547 = vadd.f32 %v2466, %v2546
        %v2548 = vpop.f32.mrf.mxu0
        %v2549 = vpop.f32.mrf.mxu0
        %v2550 = vadd.f32 %v2469, %v2549
        %v2551 = vpop.f32.mrf.mxu0
        %2552 = vmatprep.mubr.bf16.mxu0 0
        %2553 = vmatmul.mubr.bf16.gmra.mxu0 %v2211
        %v2554 = vpop.f32.mrf.mxu0
        %v2555 = vadd.f32 %v2474, %v2554
        %v2556 = vpop.f32.mrf.mxu0
        %v2557 = vpop.f32.mrf.mxu0
        %v2558 = vadd.f32 %v2477, %v2557
        %v2559 = vpop.f32.mrf.mxu0
        %2560 = vdwg.mxu0
        %2561 = vst [vmem:[#allocation5] sm:$0xff] %v2341
        %2562 = vst [vmem:[#allocation5 + $0x8] sm:$0xff] %v2343
        %2563 = vst [vmem:[#allocation5 + $0x10] sm:$0xff] %v2515
        %2564 = vst [vmem:[#allocation5 + $0x18] sm:$0xff] %v2345
        %2565 = vst [vmem:[#allocation5 + $0x20] sm:$0xff] %v2347
        %2566 = vst [vmem:[#allocation5 + $0x28] sm:$0xff] %v2518
        %2567 = vst [vmem:[#allocation5 + $0x30] sm:$0xff] %v2351
        %2568 = vst [vmem:[#allocation5 + $0x38] sm:$0xff] %v2353
        %2569 = vst [vmem:[#allocation5 + $0x40] sm:$0xff] %v2523
        %2570 = vst [vmem:[#allocation5 + $0x48] sm:$0xff] %v2355
        %2571 = vst [vmem:[#allocation5 + $0x50] sm:$0xff] %v2357
        %2572 = vst [vmem:[#allocation5 + $0x58] sm:$0xff] %v2526
        %2573 = vst [vmem:[#allocation5 + $0x60] sm:$0xff] %v2361
        %2574 = vst [vmem:[#allocation5 + $0x68] sm:$0xff] %v2363
        %2575 = vst [vmem:[#allocation5 + $0x70] sm:$0xff] %v2531
        %2576 = vst [vmem:[#allocation5 + $0x78] sm:$0xff] %v2365
        %2577 = vst [vmem:[#allocation5 + $0x80] sm:$0xff] %v2367
        %2578 = vst [vmem:[#allocation5 + $0x88] sm:$0xff] %v2534
        %2579 = vst [vmem:[#allocation5 + $0x90] sm:$0xff] %v2371
        %2580 = vst [vmem:[#allocation5 + $0x98] sm:$0xff] %v2373
        %2581 = vst [vmem:[#allocation5 + $0xa0] sm:$0xff] %v2539
        %2582 = vst [vmem:[#allocation5 + $0xa8] sm:$0xff] %v2375
        %2583 = vst [vmem:[#allocation5 + $0xb0] sm:$0xff] %v2377
        %2584 = vst [vmem:[#allocation5 + $0xb8] sm:$0xff] %v2542
        %2585 = vst [vmem:[#allocation5 + $0xc0] sm:$0xff] %v2381
        %2586 = vst [vmem:[#allocation5 + $0xc8] sm:$0xff] %v2383
        %2587 = vst [vmem:[#allocation5 + $0xd0] sm:$0xff] %v2547
        %2588 = vst [vmem:[#allocation5 + $0xd8] sm:$0xff] %v2385
        %2589 = vst [vmem:[#allocation5 + $0xe0] sm:$0xff] %v2387
        %2590 = vst [vmem:[#allocation5 + $0xe8] sm:$0xff] %v2550
        %2591 = vst [vmem:[#allocation5 + $0xf0] sm:$0xff] %v2391
        %2592 = vst [vmem:[#allocation5 + $0xf8] sm:$0xff] %v2393
        %2593 = vst [vmem:[#allocation5 + $0x100] sm:$0xff] %v2555
        %2594 = vst [vmem:[#allocation5 + $0x108] sm:$0xff] %v2395
        %2595 = vst [vmem:[#allocation5 + $0x110] sm:$0xff] %v2397
        %2596 = vst [vmem:[#allocation5 + $0x118] sm:$0xff] %v2558
        %v2597 = vld [vmem:[#allocation4] sm:$0xff]
        %v2598 = vld [vmem:[#allocation4 + $0x8] sm:$0xff]
        %v2599 = vld [vmem:[#allocation4 + $0x10] sm:$0xff]
        %v2600 = vld [vmem:[#allocation4 + $0x18] sm:$0xff]
        %v2601 = vld [vmem:[#allocation4 + $0x20] sm:$0xff]
        %v2602 = vld [vmem:[#allocation4 + $0x28] sm:$0xff]
        %v2603 = vld [vmem:[#allocation4 + $0x30] sm:$0xff]
        %v2604 = vld [vmem:[#allocation4 + $0x38] sm:$0xff]
        %v2605 = vld [vmem:[#allocation4 + $0x40] sm:$0xff]
        %v2606 = vld [vmem:[#allocation4 + $0x48] sm:$0xff]
        %v2607 = vld [vmem:[#allocation4 + $0x50] sm:$0xff]
        %v2608 = vld [vmem:[#allocation4 + $0x58] sm:$0xff]
        %v2609 = vld [vmem:[#allocation4 + $0x60] sm:$0xff]
        %v2610 = vld [vmem:[#allocation4 + $0x68] sm:$0xff]
        %v2611 = vld [vmem:[#allocation4 + $0x70] sm:$0xff]
        %v2612 = vld [vmem:[#allocation4 + $0x78] sm:$0xff]
        %v2613 = vld [vmem:[#allocation4 + $0x80] sm:$0xff]
        %v2614 = vld [vmem:[#allocation4 + $0x88] sm:$0xff]
        %v2615 = vld [vmem:[#allocation4 + $0x90] sm:$0xff]
        %v2616 = vld [vmem:[#allocation4 + $0x98] sm:$0xff]
        %v2617 = vld [vmem:[#allocation4 + $0xa0] sm:$0xff]
        %v2618 = vld [vmem:[#allocation4 + $0xa8] sm:$0xff]
        %v2619 = vld [vmem:[#allocation4 + $0xb0] sm:$0xff]
        %v2620 = vld [vmem:[#allocation4 + $0xb8] sm:$0xff]
        %v2622 = vlaneseq
        %v2623 = vshrl.u32 %v2622, 7
        %v2624 = vsub.s32 0, %v2623
        %v2625 = vrot.slane %v345, %v2624
        %v2626 = vlaneseq
        %v2627 = vshrl.u32 %v2626, 7
        %v2628 = vsub.s32 1, %v2627
        %v2629 = vrot.slane %v345, %v2628
        %v2630 = vlaneseq
        %v2631 = vshrl.u32 %v2630, 7
        %v2632 = vsub.s32 2, %v2631
        %v2633 = vrot.slane %v345, %v2632
        %v2637 = vmul.f32 %v2597, %v2625
        %v2638 = vmul.f32 %v2598, %v2629
        %v2639 = vmul.f32 %v2599, %v2633
        %v2640 = vmul.f32 %v2600, %v2625
        %v2641 = vmul.f32 %v2601, %v2629
        %v2642 = vmul.f32 %v2602, %v2633
        %v2643 = vmul.f32 %v2603, %v2625
        %v2644 = vmul.f32 %v2604, %v2629
        %v2645 = vmul.f32 %v2605, %v2633
        %v2646 = vmul.f32 %v2606, %v2625
        %v2647 = vmul.f32 %v2607, %v2629
        %v2648 = vmul.f32 %v2608, %v2633
        %v2649 = vmul.f32 %v2609, %v2625
        %v2650 = vmul.f32 %v2610, %v2629
        %v2651 = vmul.f32 %v2611, %v2633
        %v2652 = vmul.f32 %v2612, %v2625
        %v2653 = vmul.f32 %v2613, %v2629
        %v2654 = vmul.f32 %v2614, %v2633
        %v2655 = vmul.f32 %v2615, %v2625
        %v2656 = vmul.f32 %v2616, %v2629
        %v2657 = vmul.f32 %v2617, %v2633
        %v2658 = vmul.f32 %v2618, %v2625
        %v2659 = vmul.f32 %v2619, %v2629
        %v2660 = vmul.f32 %v2620, %v2633
        %v2661 = vadd.f32 %v2637, %v2638
        %v2662 = vadd.f32 %v2661, %v2639
        %v2663 = vadd.f32 %v2662, %v2640
        %v2664 = vadd.f32 %v2663, %v2641
        %v2665 = vadd.f32 %v2664, %v2642
        %v2666 = vadd.f32 %v2665, %v2643
        %v2667 = vadd.f32 %v2666, %v2644
        %v2668 = vadd.f32 %v2667, %v2645
        %v2669 = vadd.f32 %v2668, %v2646
        %v2670 = vadd.f32 %v2669, %v2647
        %v2671 = vadd.f32 %v2670, %v2648
        %v2672 = vadd.f32 %v2671, %v2649
        %v2673 = vadd.f32 %v2672, %v2650
        %v2674 = vadd.f32 %v2673, %v2651
        %v2675 = vadd.f32 %v2674, %v2652
        %v2676 = vadd.f32 %v2675, %v2653
        %v2677 = vadd.f32 %v2676, %v2654
        %v2678 = vadd.f32 %v2677, %v2655
        %v2679 = vadd.f32 %v2678, %v2656
        %v2680 = vadd.f32 %v2679, %v2657
        %v2681 = vadd.f32 %v2680, %v2658
        %v2682 = vadd.f32 %v2681, %v2659
        %v2683 = vadd.f32 %v2682, %v2660
        %2684 = vadd.xlane.f32.xlu0 %v2683
        %v2685 = vpop.xlane.xlu0 %2684
        %v2686 = vrot.slane %v2685, 4
        %v2687 = vadd.f32 %v2685, %v2686
        %v2688 = vrot.slane %v2687, 2
        %v2689 = vadd.f32 %v2687, %v2688
        %v2690 = vrot.slane %v2689, 1
        %v2691 = vadd.f32 %v2689, %v2690
        %s2692 = vtos %v2691
        %v2693 = vrcp.pop 16384.0
        %s2694 = vtos %v2693
        %s2695 = smul.f32 %s2692, %s2694
        %v2696 = vstv %s2695
        %v2697 = vsub.f32 %v2597, %v2696
        %v2698 = vsub.f32 %v2598, %v2696
        %v2699 = vsub.f32 %v2599, %v2696
        %v2700 = vsub.f32 %v2600, %v2696
        %v2701 = vsub.f32 %v2601, %v2696
        %v2702 = vsub.f32 %v2602, %v2696
        %v2703 = vsub.f32 %v2603, %v2696
        %v2704 = vsub.f32 %v2604, %v2696
        %v2705 = vsub.f32 %v2605, %v2696
        %v2706 = vsub.f32 %v2606, %v2696
        %v2707 = vsub.f32 %v2607, %v2696
        %v2708 = vsub.f32 %v2608, %v2696
        %v2709 = vsub.f32 %v2609, %v2696
        %v2710 = vsub.f32 %v2610, %v2696
        %v2711 = vsub.f32 %v2611, %v2696
        %v2712 = vsub.f32 %v2612, %v2696
        %v2713 = vsub.f32 %v2613, %v2696
        %v2714 = vsub.f32 %v2614, %v2696
        %v2715 = vsub.f32 %v2615, %v2696
        %v2716 = vsub.f32 %v2616, %v2696
        %v2717 = vsub.f32 %v2617, %v2696
        %v2718 = vsub.f32 %v2618, %v2696
        %v2719 = vsub.f32 %v2619, %v2696
        %v2720 = vsub.f32 %v2620, %v2696
        %v2721 = vmul.f32 %v2697, %v2625
        %v2722 = vmul.f32 %v2698, %v2629
        %v2723 = vmul.f32 %v2699, %v2633
        %v2724 = vmul.f32 %v2700, %v2625
        %v2725 = vmul.f32 %v2701, %v2629
        %v2726 = vmul.f32 %v2702, %v2633
        %v2727 = vmul.f32 %v2703, %v2625
        %v2728 = vmul.f32 %v2704, %v2629
        %v2729 = vmul.f32 %v2705, %v2633
        %v2730 = vmul.f32 %v2706, %v2625
        %v2731 = vmul.f32 %v2707, %v2629
        %v2732 = vmul.f32 %v2708, %v2633
        %v2733 = vmul.f32 %v2709, %v2625
        %v2734 = vmul.f32 %v2710, %v2629
        %v2735 = vmul.f32 %v2711, %v2633
        %v2736 = vmul.f32 %v2712, %v2625
        %v2737 = vmul.f32 %v2713, %v2629
        %v2738 = vmul.f32 %v2714, %v2633
        %v2739 = vmul.f32 %v2715, %v2625
        %v2740 = vmul.f32 %v2716, %v2629
        %v2741 = vmul.f32 %v2717, %v2633
        %v2742 = vmul.f32 %v2718, %v2625
        %v2743 = vmul.f32 %v2719, %v2629
        %v2744 = vmul.f32 %v2720, %v2633
        %v2745 = vmul.f32 %v2721, %v2721
        %v2746 = vmul.f32 %v2722, %v2722
        %v2747 = vmul.f32 %v2723, %v2723
        %v2748 = vmul.f32 %v2724, %v2724
        %v2749 = vmul.f32 %v2725, %v2725
        %v2750 = vmul.f32 %v2726, %v2726
        %v2751 = vmul.f32 %v2727, %v2727
        %v2752 = vmul.f32 %v2728, %v2728
        %v2753 = vmul.f32 %v2729, %v2729
        %v2754 = vmul.f32 %v2730, %v2730
        %v2755 = vmul.f32 %v2731, %v2731
        %v2756 = vmul.f32 %v2732, %v2732
        %v2757 = vmul.f32 %v2733, %v2733
        %v2758 = vmul.f32 %v2734, %v2734
        %v2759 = vmul.f32 %v2735, %v2735
        %v2760 = vmul.f32 %v2736, %v2736
        %v2761 = vmul.f32 %v2737, %v2737
        %v2762 = vmul.f32 %v2738, %v2738
        %v2763 = vmul.f32 %v2739, %v2739
        %v2764 = vmul.f32 %v2740, %v2740
        %v2765 = vmul.f32 %v2741, %v2741
        %v2766 = vmul.f32 %v2742, %v2742
        %v2767 = vmul.f32 %v2743, %v2743
        %v2768 = vmul.f32 %v2744, %v2744
        %v2769 = vadd.f32 %v2745, %v2746
        %v2770 = vadd.f32 %v2769, %v2747
        %v2771 = vadd.f32 %v2770, %v2748
        %v2772 = vadd.f32 %v2771, %v2749
        %v2773 = vadd.f32 %v2772, %v2750
        %v2774 = vadd.f32 %v2773, %v2751
        %v2775 = vadd.f32 %v2774, %v2752
        %v2776 = vadd.f32 %v2775, %v2753
        %v2777 = vadd.f32 %v2776, %v2754
        %v2778 = vadd.f32 %v2777, %v2755
        %v2779 = vadd.f32 %v2778, %v2756
        %v2780 = vadd.f32 %v2779, %v2757
        %v2781 = vadd.f32 %v2780, %v2758
        %v2782 = vadd.f32 %v2781, %v2759
        %v2783 = vadd.f32 %v2782, %v2760
        %v2784 = vadd.f32 %v2783, %v2761
        %v2785 = vadd.f32 %v2784, %v2762
        %v2786 = vadd.f32 %v2785, %v2763
        %v2787 = vadd.f32 %v2786, %v2764
        %v2788 = vadd.f32 %v2787, %v2765
        %v2789 = vadd.f32 %v2788, %v2766
        %v2790 = vadd.f32 %v2789, %v2767
        %v2791 = vadd.f32 %v2790, %v2768
        %2792 = vadd.xlane.f32.xlu0 %v2791
        %v2793 = vpop.xlane.xlu0 %2792
        %v2794 = vrot.slane %v2793, 4
        %v2795 = vadd.f32 %v2793, %v2794
        %v2796 = vrot.slane %v2795, 2
        %v2797 = vadd.f32 %v2795, %v2796
        %v2798 = vrot.slane %v2797, 1
        %v2799 = vadd.f32 %v2797, %v2798
        %s2800 = vtos %v2799
        %v2801 = vrcp.pop 16384.0
        %s2802 = vtos %v2801
        %s2803 = smul.f32 %s2800, %s2802
        %s2804 = sadd.f32 %s2803, 1e-05
        %v2805 = vstv %s2804
        %v2806 = vrsqrt.pop %v2805
        %s2807 = vtos %v2806
        %v2808 = vstv %s2807
        %v2809 = vmul.f32 %v346, %v2808
        %v2810 = vmul.f32 %v347, %v2808
        %v2811 = vmul.f32 %v348, %v2808
        %v2812 = vmul.f32 %v349, %v2808
        %v2813 = vmul.f32 %v350, %v2808
        %v2814 = vmul.f32 %v351, %v2808
        %v2815 = vmul.f32 %v352, %v2808
        %v2816 = vmul.f32 %v353, %v2808
        %v2817 = vmul.f32 %v2696, %v2809
        %v2818 = vmul.f32 %v2696, %v2810
        %v2819 = vmul.f32 %v2696, %v2811
        %v2820 = vmul.f32 %v2696, %v2812
        %v2821 = vmul.f32 %v2696, %v2813
        %v2822 = vmul.f32 %v2696, %v2814
        %v2823 = vmul.f32 %v2696, %v2815
        %v2824 = vmul.f32 %v2696, %v2816
        %v2825 = vsub.f32 %v359, %v2817
        %v2826 = vsub.f32 %v360, %v2818
        %v2827 = vsub.f32 %v361, %v2819
        %v2828 = vsub.f32 %v362, %v2820
        %v2829 = vsub.f32 %v363, %v2821
        %v2830 = vsub.f32 %v364, %v2822
        %v2831 = vsub.f32 %v365, %v2823
        %v2832 = vsub.f32 %v366, %v2824
        %v2833 = vld [vmem:[#allocation5] sm:$0xff]
        %v2834 = vld [vmem:[#allocation5 + $0x8] sm:$0xff]
        %v2835 = vld [vmem:[#allocation5 + $0x10] sm:$0xff]
        %v2836 = vld [vmem:[#allocation5 + $0x18] sm:$0xff]
        %v2837 = vld [vmem:[#allocation5 + $0x20] sm:$0xff]
        %v2838 = vld [vmem:[#allocation5 + $0x28] sm:$0xff]
        %v2839 = vld [vmem:[#allocation5 + $0x30] sm:$0xff]
        %v2840 = vld [vmem:[#allocation5 + $0x38] sm:$0xff]
        %v2841 = vld [vmem:[#allocation5 + $0x40] sm:$0xff]
        %v2842 = vld [vmem:[#allocation5 + $0x48] sm:$0xff]
        %v2843 = vld [vmem:[#allocation5 + $0x50] sm:$0xff]
        %v2844 = vld [vmem:[#allocation5 + $0x58] sm:$0xff]
        %v2845 = vld [vmem:[#allocation5 + $0x60] sm:$0xff]
        %v2846 = vld [vmem:[#allocation5 + $0x68] sm:$0xff]
        %v2847 = vld [vmem:[#allocation5 + $0x70] sm:$0xff]
        %v2848 = vld [vmem:[#allocation5 + $0x78] sm:$0xff]
        %v2849 = vld [vmem:[#allocation5 + $0x80] sm:$0xff]
        %v2850 = vld [vmem:[#allocation5 + $0x88] sm:$0xff]
        %v2851 = vld [vmem:[#allocation5 + $0x90] sm:$0xff]
        %v2852 = vld [vmem:[#allocation5 + $0x98] sm:$0xff]
        %v2853 = vld [vmem:[#allocation5 + $0xa0] sm:$0xff]
        %v2854 = vld [vmem:[#allocation5 + $0xa8] sm:$0xff]
        %v2855 = vld [vmem:[#allocation5 + $0xb0] sm:$0xff]
        %v2856 = vld [vmem:[#allocation5 + $0xb8] sm:$0xff]
        %v2857 = vmul.f32 %v2833, %v2625
        %v2858 = vmul.f32 %v2834, %v2629
        %v2859 = vmul.f32 %v2835, %v2633
        %v2860 = vmul.f32 %v2836, %v2625
        %v2861 = vmul.f32 %v2837, %v2629
        %v2862 = vmul.f32 %v2838, %v2633
        %v2863 = vmul.f32 %v2839, %v2625
        %v2864 = vmul.f32 %v2840, %v2629
        %v2865 = vmul.f32 %v2841, %v2633
        %v2866 = vmul.f32 %v2842, %v2625
        %v2867 = vmul.f32 %v2843, %v2629
        %v2868 = vmul.f32 %v2844, %v2633
        %v2869 = vmul.f32 %v2845, %v2625
        %v2870 = vmul.f32 %v2846, %v2629
        %v2871 = vmul.f32 %v2847, %v2633
        %v2872 = vmul.f32 %v2848, %v2625
        %v2873 = vmul.f32 %v2849, %v2629
        %v2874 = vmul.f32 %v2850, %v2633
        %v2875 = vmul.f32 %v2851, %v2625
        %v2876 = vmul.f32 %v2852, %v2629
        %v2877 = vmul.f32 %v2853, %v2633
        %v2878 = vmul.f32 %v2854, %v2625
        %v2879 = vmul.f32 %v2855, %v2629
        %v2880 = vmul.f32 %v2856, %v2633
        %v2881 = vadd.f32 %v2857, %v2858
        %v2882 = vadd.f32 %v2881, %v2859
        %v2883 = vadd.f32 %v2882, %v2860
        %v2884 = vadd.f32 %v2883, %v2861
        %v2885 = vadd.f32 %v2884, %v2862
        %v2886 = vadd.f32 %v2885, %v2863
        %v2887 = vadd.f32 %v2886, %v2864
        %v2888 = vadd.f32 %v2887, %v2865
        %v2889 = vadd.f32 %v2888, %v2866
        %v2890 = vadd.f32 %v2889, %v2867
        %v2891 = vadd.f32 %v2890, %v2868
        %v2892 = vadd.f32 %v2891, %v2869
        %v2893 = vadd.f32 %v2892, %v2870
        %v2894 = vadd.f32 %v2893, %v2871
        %v2895 = vadd.f32 %v2894, %v2872
        %v2896 = vadd.f32 %v2895, %v2873
        %v2897 = vadd.f32 %v2896, %v2874
        %v2898 = vadd.f32 %v2897, %v2875
        %v2899 = vadd.f32 %v2898, %v2876
        %v2900 = vadd.f32 %v2899, %v2877
        %v2901 = vadd.f32 %v2900, %v2878
        %v2902 = vadd.f32 %v2901, %v2879
        %v2903 = vadd.f32 %v2902, %v2880
        %2904 = vadd.xlane.f32.xlu0 %v2903
        %v2905 = vpop.xlane.xlu0 %2904
        %v2906 = vrot.slane %v2905, 4
        %v2907 = vadd.f32 %v2905, %v2906
        %v2908 = vrot.slane %v2907, 2
        %v2909 = vadd.f32 %v2907, %v2908
        %v2910 = vrot.slane %v2909, 1
        %v2911 = vadd.f32 %v2909, %v2910
        %s2912 = vtos %v2911
        %v2913 = vrcp.pop 16384.0
        %s2914 = vtos %v2913
        %s2915 = smul.f32 %s2912, %s2914
        %v2916 = vstv %s2915
        %v2917 = vsub.f32 %v2833, %v2916
        %v2918 = vsub.f32 %v2834, %v2916
        %v2919 = vsub.f32 %v2835, %v2916
        %v2920 = vsub.f32 %v2836, %v2916
        %v2921 = vsub.f32 %v2837, %v2916
        %v2922 = vsub.f32 %v2838, %v2916
        %v2923 = vsub.f32 %v2839, %v2916
        %v2924 = vsub.f32 %v2840, %v2916
        %v2925 = vsub.f32 %v2841, %v2916
        %v2926 = vsub.f32 %v2842, %v2916
        %v2927 = vsub.f32 %v2843, %v2916
        %v2928 = vsub.f32 %v2844, %v2916
        %v2929 = vsub.f32 %v2845, %v2916
        %v2930 = vsub.f32 %v2846, %v2916
        %v2931 = vsub.f32 %v2847, %v2916
        %v2932 = vsub.f32 %v2848, %v2916
        %v2933 = vsub.f32 %v2849, %v2916
        %v2934 = vsub.f32 %v2850, %v2916
        %v2935 = vsub.f32 %v2851, %v2916
        %v2936 = vsub.f32 %v2852, %v2916
        %v2937 = vsub.f32 %v2853, %v2916
        %v2938 = vsub.f32 %v2854, %v2916
        %v2939 = vsub.f32 %v2855, %v2916
        %v2940 = vsub.f32 %v2856, %v2916
        %v2941 = vmul.f32 %v2917, %v2625
        %v2942 = vmul.f32 %v2918, %v2629
        %v2943 = vmul.f32 %v2919, %v2633
        %v2944 = vmul.f32 %v2920, %v2625
        %v2945 = vmul.f32 %v2921, %v2629
        %v2946 = vmul.f32 %v2922, %v2633
        %v2947 = vmul.f32 %v2923, %v2625
        %v2948 = vmul.f32 %v2924, %v2629
        %v2949 = vmul.f32 %v2925, %v2633
        %v2950 = vmul.f32 %v2926, %v2625
        %v2951 = vmul.f32 %v2927, %v2629
        %v2952 = vmul.f32 %v2928, %v2633
        %v2953 = vmul.f32 %v2929, %v2625
        %v2954 = vmul.f32 %v2930, %v2629
        %v2955 = vmul.f32 %v2931, %v2633
        %v2956 = vmul.f32 %v2932, %v2625
        %v2957 = vmul.f32 %v2933, %v2629
        %v2958 = vmul.f32 %v2934, %v2633
        %v2959 = vmul.f32 %v2935, %v2625
        %v2960 = vmul.f32 %v2936, %v2629
        %v2961 = vmul.f32 %v2937, %v2633
        %v2962 = vmul.f32 %v2938, %v2625
        %v2963 = vmul.f32 %v2939, %v2629
        %v2964 = vmul.f32 %v2940, %v2633
        %v2965 = vmul.f32 %v2941, %v2941
        %v2966 = vmul.f32 %v2942, %v2942
        %v2967 = vmul.f32 %v2943, %v2943
        %v2968 = vmul.f32 %v2944, %v2944
        %v2969 = vmul.f32 %v2945, %v2945
        %v2970 = vmul.f32 %v2946, %v2946
        %v2971 = vmul.f32 %v2947, %v2947
        %v2972 = vmul.f32 %v2948, %v2948
        %v2973 = vmul.f32 %v2949, %v2949
        %v2974 = vmul.f32 %v2950, %v2950
        %v2975 = vmul.f32 %v2951, %v2951
        %v2976 = vmul.f32 %v2952, %v2952
        %v2977 = vmul.f32 %v2953, %v2953
        %v2978 = vmul.f32 %v2954, %v2954
        %v2979 = vmul.f32 %v2955, %v2955
        %v2980 = vmul.f32 %v2956, %v2956
        %v2981 = vmul.f32 %v2957, %v2957
        %v2982 = vmul.f32 %v2958, %v2958
        %v2983 = vmul.f32 %v2959, %v2959
        %v2984 = vmul.f32 %v2960, %v2960
        %v2985 = vmul.f32 %v2961, %v2961
        %v2986 = vmul.f32 %v2962, %v2962
        %v2987 = vmul.f32 %v2963, %v2963
        %v2988 = vmul.f32 %v2964, %v2964
        %v2989 = vadd.f32 %v2965, %v2966
        %v2990 = vadd.f32 %v2989, %v2967
        %v2991 = vadd.f32 %v2990, %v2968
        %v2992 = vadd.f32 %v2991, %v2969
        %v2993 = vadd.f32 %v2992, %v2970
        %v2994 = vadd.f32 %v2993, %v2971
        %v2995 = vadd.f32 %v2994, %v2972
        %v2996 = vadd.f32 %v2995, %v2973
        %v2997 = vadd.f32 %v2996, %v2974
        %v2998 = vadd.f32 %v2997, %v2975
        %v2999 = vadd.f32 %v2998, %v2976
        %v3000 = vadd.f32 %v2999, %v2977
        %v3001 = vadd.f32 %v3000, %v2978
        %v3002 = vadd.f32 %v3001, %v2979
        %v3003 = vadd.f32 %v3002, %v2980
        %v3004 = vadd.f32 %v3003, %v2981
        %v3005 = vadd.f32 %v3004, %v2982
        %v3006 = vadd.f32 %v3005, %v2983
        %v3007 = vadd.f32 %v3006, %v2984
        %v3008 = vadd.f32 %v3007, %v2985
        %v3009 = vadd.f32 %v3008, %v2986
        %v3010 = vadd.f32 %v3009, %v2987
        %v3011 = vadd.f32 %v3010, %v2988
        %3012 = vadd.xlane.f32.xlu0 %v3011
        %v3013 = vpop.xlane.xlu0 %3012
        %v3014 = vrot.slane %v3013, 4
        %v3015 = vadd.f32 %v3013, %v3014
        %v3016 = vrot.slane %v3015, 2
        %v3017 = vadd.f32 %v3015, %v3016
        %v3018 = vrot.slane %v3017, 1
        %v3019 = vadd.f32 %v3017, %v3018
        %s3020 = vtos %v3019
        %v3021 = vrcp.pop 16384.0
        %s3022 = vtos %v3021
        %s3023 = smul.f32 %s3020, %s3022
        %s3024 = sadd.f32 %s3023, 1e-05
        %v3025 = vstv %s3024
        %v3026 = vrsqrt.pop %v3025
        %s3027 = vtos %v3026
        %v3028 = vstv %s3027
        %v3029 = vmul.f32 %v371, %v3028
        %v3030 = vmul.f32 %v372, %v3028
        %v3031 = vmul.f32 %v373, %v3028
        %v3032 = vmul.f32 %v374, %v3028
        %v3033 = vmul.f32 %v375, %v3028
        %v3034 = vmul.f32 %v376, %v3028
        %v3035 = vmul.f32 %v377, %v3028
        %v3036 = vmul.f32 %v378, %v3028
        %v3037 = vmul.f32 %v2916, %v3029
        %v3038 = vmul.f32 %v2916, %v3030
        %v3039 = vmul.f32 %v2916, %v3031
        %v3040 = vmul.f32 %v2916, %v3032
        %v3041 = vmul.f32 %v2916, %v3033
        %v3042 = vmul.f32 %v2916, %v3034
        %v3043 = vmul.f32 %v2916, %v3035
        %v3044 = vmul.f32 %v2916, %v3036
        %v3045 = vsub.f32 %v384, %v3037
        %v3046 = vsub.f32 %v385, %v3038
        %v3047 = vsub.f32 %v386, %v3039
        %v3048 = vsub.f32 %v387, %v3040
        %v3049 = vsub.f32 %v388, %v3041
        %v3050 = vsub.f32 %v389, %v3042
        %v3051 = vsub.f32 %v390, %v3043
        %v3052 = vsub.f32 %v391, %v3044
        %v3053 = vld [vmem:[#allocation4 + $0xc0] sm:$0xff]
        %v3054 = vld [vmem:[#allocation4 + $0xc8] sm:$0xff]
        %v3055 = vld [vmem:[#allocation4 + $0xd0] sm:$0xff]
        %v3056 = vld [vmem:[#allocation4 + $0xd8] sm:$0xff]
        %v3057 = vld [vmem:[#allocation4 + $0xe0] sm:$0xff]
        %v3058 = vld [vmem:[#allocation4 + $0xe8] sm:$0xff]
        %v3059 = vld [vmem:[#allocation4 + $0xf0] sm:$0xff]
        %v3060 = vld [vmem:[#allocation4 + $0xf8] sm:$0xff]
        %v3061 = vld [vmem:[#allocation4 + $0x100] sm:$0xff]
        %v3062 = vld [vmem:[#allocation4 + $0x108] sm:$0xff]
        %v3063 = vld [vmem:[#allocation4 + $0x110] sm:$0xff]
        %v3064 = vld [vmem:[#allocation4 + $0x118] sm:$0xff]
        %v3065 = vmul.f32 %v3053, %v2625
        %v3066 = vmul.f32 %v3054, %v2629
        %v3067 = vmul.f32 %v3055, %v2633
        %v3068 = vmul.f32 %v3056, %v2625
        %v3069 = vmul.f32 %v3057, %v2629
        %v3070 = vmul.f32 %v3058, %v2633
        %v3071 = vmul.f32 %v3059, %v2625
        %v3072 = vmul.f32 %v3060, %v2629
        %v3073 = vmul.f32 %v3061, %v2633
        %v3074 = vmul.f32 %v3062, %v2625
        %v3075 = vmul.f32 %v3063, %v2629
        %v3076 = vmul.f32 %v3064, %v2633
        %v3077 = vadd.f32 %v3065, %v3066
        %v3078 = vadd.f32 %v3077, %v3067
        %v3079 = vadd.f32 %v3078, %v3068
        %v3080 = vadd.f32 %v3079, %v3069
        %v3081 = vadd.f32 %v3080, %v3070
        %v3082 = vadd.f32 %v3081, %v3071
        %v3083 = vadd.f32 %v3082, %v3072
        %v3084 = vadd.f32 %v3083, %v3073
        %v3085 = vadd.f32 %v3084, %v3074
        %v3086 = vadd.f32 %v3085, %v3075
        %v3087 = vadd.f32 %v3086, %v3076
        %3088 = vadd.xlane.f32.xlu0 %v3087
        %v3089 = vpop.xlane.xlu0 %3088
        %v3090 = vrot.slane %v3089, 4
        %v3091 = vadd.f32 %v3089, %v3090
        %v3092 = vrot.slane %v3091, 2
        %v3093 = vadd.f32 %v3091, %v3092
        %v3094 = vrot.slane %v3093, 1
        %v3095 = vadd.f32 %v3093, %v3094
        %s3096 = vtos %v3095
        %v3097 = vrcp.pop 8192.0
        %s3098 = vtos %v3097
        %s3099 = smul.f32 %s3096, %s3098
        %v3100 = vstv %s3099
        %v3101 = vsub.f32 %v3053, %v3100
        %v3102 = vsub.f32 %v3054, %v3100
        %v3103 = vsub.f32 %v3055, %v3100
        %v3104 = vsub.f32 %v3056, %v3100
        %v3105 = vsub.f32 %v3057, %v3100
        %v3106 = vsub.f32 %v3058, %v3100
        %v3107 = vsub.f32 %v3059, %v3100
        %v3108 = vsub.f32 %v3060, %v3100
        %v3109 = vsub.f32 %v3061, %v3100
        %v3110 = vsub.f32 %v3062, %v3100
        %v3111 = vsub.f32 %v3063, %v3100
        %v3112 = vsub.f32 %v3064, %v3100
        %v3113 = vmul.f32 %v3101, %v2625
        %v3114 = vmul.f32 %v3102, %v2629
        %v3115 = vmul.f32 %v3103, %v2633
        %v3116 = vmul.f32 %v3104, %v2625
        %v3117 = vmul.f32 %v3105, %v2629
        %v3118 = vmul.f32 %v3106, %v2633
        %v3119 = vmul.f32 %v3107, %v2625
        %v3120 = vmul.f32 %v3108, %v2629
        %v3121 = vmul.f32 %v3109, %v2633
        %v3122 = vmul.f32 %v3110, %v2625
        %v3123 = vmul.f32 %v3111, %v2629
        %v3124 = vmul.f32 %v3112, %v2633
        %v3125 = vmul.f32 %v3113, %v3113
        %v3126 = vmul.f32 %v3114, %v3114
        %v3127 = vmul.f32 %v3115, %v3115
        %v3128 = vmul.f32 %v3116, %v3116
        %v3129 = vmul.f32 %v3117, %v3117
        %v3130 = vmul.f32 %v3118, %v3118
        %v3131 = vmul.f32 %v3119, %v3119
        %v3132 = vmul.f32 %v3120, %v3120
        %v3133 = vmul.f32 %v3121, %v3121
        %v3134 = vmul.f32 %v3122, %v3122
        %v3135 = vmul.f32 %v3123, %v3123
        %v3136 = vmul.f32 %v3124, %v3124
        %v3137 = vadd.f32 %v3125, %v3126
        %v3138 = vadd.f32 %v3137, %v3127
        %v3139 = vadd.f32 %v3138, %v3128
        %v3140 = vadd.f32 %v3139, %v3129
        %v3141 = vadd.f32 %v3140, %v3130
        %v3142 = vadd.f32 %v3141, %v3131
        %v3143 = vadd.f32 %v3142, %v3132
        %v3144 = vadd.f32 %v3143, %v3133
        %v3145 = vadd.f32 %v3144, %v3134
        %v3146 = vadd.f32 %v3145, %v3135
        %v3147 = vadd.f32 %v3146, %v3136
        %3148 = vadd.xlane.f32.xlu0 %v3147
        %v3149 = vpop.xlane.xlu0 %3148
        %v3150 = vrot.slane %v3149, 4
        %v3151 = vadd.f32 %v3149, %v3150
        %v3152 = vrot.slane %v3151, 2
        %v3153 = vadd.f32 %v3151, %v3152
        %v3154 = vrot.slane %v3153, 1
        %v3155 = vadd.f32 %v3153, %v3154
        %s3156 = vtos %v3155
        %v3157 = vrcp.pop 8192.0
        %s3158 = vtos %v3157
        %s3159 = smul.f32 %s3156, %s3158
        %s3160 = sadd.f32 %s3159, 1e-05
        %v3161 = vstv %s3160
        %v3162 = vrsqrt.pop %v3161
        %s3163 = vtos %v3162
        %v3164 = vstv %s3163
        %v3165 = vmul.f32 %v354, %v3164
        %v3166 = vmul.f32 %v355, %v3164
        %v3167 = vmul.f32 %v356, %v3164
        %v3168 = vmul.f32 %v357, %v3164
        %v3169 = vmul.f32 %v3100, %v3165
        %v3170 = vmul.f32 %v3100, %v3166
        %v3171 = vmul.f32 %v3100, %v3167
        %v3172 = vmul.f32 %v3100, %v3168
        %v3173 = vsub.f32 %v367, %v3169
        %v3174 = vsub.f32 %v368, %v3170
        %v3175 = vsub.f32 %v369, %v3171
        %v3176 = vsub.f32 %v370, %v3172
        %v3177 = vld [vmem:[#allocation5 + $0xc0] sm:$0xff]
        %v3178 = vld [vmem:[#allocation5 + $0xc8] sm:$0xff]
        %v3179 = vld [vmem:[#allocation5 + $0xd0] sm:$0xff]
        %v3180 = vld [vmem:[#allocation5 + $0xd8] sm:$0xff]
        %v3181 = vld [vmem:[#allocation5 + $0xe0] sm:$0xff]
        %v3182 = vld [vmem:[#allocation5 + $0xe8] sm:$0xff]
        %v3183 = vld [vmem:[#allocation5 + $0xf0] sm:$0xff]
        %v3184 = vld [vmem:[#allocation5 + $0xf8] sm:$0xff]
        %v3185 = vld [vmem:[#allocation5 + $0x100] sm:$0xff]
        %v3186 = vld [vmem:[#allocation5 + $0x108] sm:$0xff]
        %v3187 = vld [vmem:[#allocation5 + $0x110] sm:$0xff]
        %v3188 = vld [vmem:[#allocation5 + $0x118] sm:$0xff]
        %v3189 = vmul.f32 %v3177, %v2625
        %v3190 = vmul.f32 %v3178, %v2629
        %v3191 = vmul.f32 %v3179, %v2633
        %v3192 = vmul.f32 %v3180, %v2625
        %v3193 = vmul.f32 %v3181, %v2629
        %v3194 = vmul.f32 %v3182, %v2633
        %v3195 = vmul.f32 %v3183, %v2625
        %v3196 = vmul.f32 %v3184, %v2629
        %v3197 = vmul.f32 %v3185, %v2633
        %v3198 = vmul.f32 %v3186, %v2625
        %v3199 = vmul.f32 %v3187, %v2629
        %v3200 = vmul.f32 %v3188, %v2633
        %v3201 = vadd.f32 %v3189, %v3190
        %v3202 = vadd.f32 %v3201, %v3191
        %v3203 = vadd.f32 %v3202, %v3192
        %v3204 = vadd.f32 %v3203, %v3193
        %v3205 = vadd.f32 %v3204, %v3194
        %v3206 = vadd.f32 %v3205, %v3195
        %v3207 = vadd.f32 %v3206, %v3196
        %v3208 = vadd.f32 %v3207, %v3197
        %v3209 = vadd.f32 %v3208, %v3198
        %v3210 = vadd.f32 %v3209, %v3199
        %v3211 = vadd.f32 %v3210, %v3200
        %3212 = vadd.xlane.f32.xlu0 %v3211
        %v3213 = vpop.xlane.xlu0 %3212
        %v3214 = vrot.slane %v3213, 4
        %v3215 = vadd.f32 %v3213, %v3214
        %v3216 = vrot.slane %v3215, 2
        %v3217 = vadd.f32 %v3215, %v3216
        %v3218 = vrot.slane %v3217, 1
        %v3219 = vadd.f32 %v3217, %v3218
        %s3220 = vtos %v3219
        %v3221 = vrcp.pop 8192.0
        %s3222 = vtos %v3221
        %s3223 = smul.f32 %s3220, %s3222
        %v3224 = vstv %s3223
        %v3225 = vsub.f32 %v3177, %v3224
        %v3226 = vsub.f32 %v3178, %v3224
        %v3227 = vsub.f32 %v3179, %v3224
        %v3228 = vsub.f32 %v3180, %v3224
        %v3229 = vsub.f32 %v3181, %v3224
        %v3230 = vsub.f32 %v3182, %v3224
        %v3231 = vsub.f32 %v3183, %v3224
        %v3232 = vsub.f32 %v3184, %v3224
        %v3233 = vsub.f32 %v3185, %v3224
        %v3234 = vsub.f32 %v3186, %v3224
        %v3235 = vsub.f32 %v3187, %v3224
        %v3236 = vsub.f32 %v3188, %v3224
        %v3237 = vmul.f32 %v3225, %v2625
        %v3238 = vmul.f32 %v3226, %v2629
        %v3239 = vmul.f32 %v3227, %v2633
        %v3240 = vmul.f32 %v3228, %v2625
        %v3241 = vmul.f32 %v3229, %v2629
        %v3242 = vmul.f32 %v3230, %v2633
        %v3243 = vmul.f32 %v3231, %v2625
        %v3244 = vmul.f32 %v3232, %v2629
        %v3245 = vmul.f32 %v3233, %v2633
        %v3246 = vmul.f32 %v3234, %v2625
        %v3247 = vmul.f32 %v3235, %v2629
        %v3248 = vmul.f32 %v3236, %v2633
        %v3249 = vmul.f32 %v3237, %v3237
        %v3250 = vmul.f32 %v3238, %v3238
        %v3251 = vmul.f32 %v3239, %v3239
        %v3252 = vmul.f32 %v3240, %v3240
        %v3253 = vmul.f32 %v3241, %v3241
        %v3254 = vmul.f32 %v3242, %v3242
        %v3255 = vmul.f32 %v3243, %v3243
        %v3256 = vmul.f32 %v3244, %v3244
        %v3257 = vmul.f32 %v3245, %v3245
        %v3258 = vmul.f32 %v3246, %v3246
        %v3259 = vmul.f32 %v3247, %v3247
        %v3260 = vmul.f32 %v3248, %v3248
        %v3261 = vadd.f32 %v3249, %v3250
        %v3262 = vadd.f32 %v3261, %v3251
        %v3263 = vadd.f32 %v3262, %v3252
        %v3264 = vadd.f32 %v3263, %v3253
        %v3265 = vadd.f32 %v3264, %v3254
        %v3266 = vadd.f32 %v3265, %v3255
        %v3267 = vadd.f32 %v3266, %v3256
        %v3268 = vadd.f32 %v3267, %v3257
        %v3269 = vadd.f32 %v3268, %v3258
        %v3270 = vadd.f32 %v3269, %v3259
        %v3271 = vadd.f32 %v3270, %v3260
        %3272 = vadd.xlane.f32.xlu0 %v3271
        %v3273 = vpop.xlane.xlu0 %3272
        %v3274 = vrot.slane %v3273, 4
        %v3275 = vadd.f32 %v3273, %v3274
        %v3276 = vrot.slane %v3275, 2
        %v3277 = vadd.f32 %v3275, %v3276
        %v3278 = vrot.slane %v3277, 1
        %v3279 = vadd.f32 %v3277, %v3278
        %s3280 = vtos %v3279
        %v3281 = vrcp.pop 8192.0
        %s3282 = vtos %v3281
        %s3283 = smul.f32 %s3280, %s3282
        %s3284 = sadd.f32 %s3283, 1e-05
        %v3285 = vstv %s3284
        %v3286 = vrsqrt.pop %v3285
        %s3287 = vtos %v3286
        %v3288 = vstv %s3287
        %v3289 = vmul.f32 %v379, %v3288
        %v3290 = vmul.f32 %v380, %v3288
        %v3291 = vmul.f32 %v381, %v3288
        %v3292 = vmul.f32 %v382, %v3288
        %v3293 = vmul.f32 %v3224, %v3289
        %v3294 = vmul.f32 %v3224, %v3290
        %v3295 = vmul.f32 %v3224, %v3291
        %v3296 = vmul.f32 %v3224, %v3292
        %v3297 = vsub.f32 %v392, %v3293
        %v3298 = vsub.f32 %v393, %v3294
        %v3299 = vsub.f32 %v394, %v3295
        %v3300 = vsub.f32 %v395, %v3296
        %v3301 = vadd.f32 %v2825, %v3045
        %v3302 = vadd.f32 %v2826, %v3046
        %v3303 = vadd.f32 %v2827, %v3047
        %v3304 = vadd.f32 %v2828, %v3048
        %v3305 = vadd.f32 %v2829, %v3049
        %v3306 = vadd.f32 %v2830, %v3050
        %v3307 = vadd.f32 %v2831, %v3051
        %v3308 = vadd.f32 %v2832, %v3052
        loop: start=0, step=1, limit=3
        $region53: #{tpu_custom_call.1} parent=51 // loop_pre_header
          _
        $region54: #{tpu_custom_call.1} parent=51 // loop_header
          %s3310 = sphi 0, %s3314
          %p3311 = scmp.ge.s32.totalorder %s3310, 3
        $region55: #{tpu_custom_call.1} parent=51 // loop_header_branch
          %3313 = sbr.rel (%p3311) target = $region59
        $region56: #{tpu_custom_call.1} parent=51 // loop_body
          %s3315 = smul.u32 %s3310, 128
          %s3316 = sshra.s32 %s3315, 7
          %s3317 = sand.u32 %s3315, 127
          %s3318 = smul.addr %s3316, 8
          %s3319 = scalar_lea.vmem [#allocation4], %s3318
          %v3320 = vld [vmem:[%s3319] sm:$0xff]
          %v3321 = vld [vmem:[%s3319 + $0x18] sm:$0xff]
          %v3322 = vld [vmem:[%s3319 + $0x30] sm:$0xff]
          %v3323 = vld [vmem:[%s3319 + $0x48] sm:$0xff]
          %v3324 = vld [vmem:[%s3319 + $0x60] sm:$0xff]
          %v3325 = vld [vmem:[%s3319 + $0x78] sm:$0xff]
          %v3326 = vld [vmem:[%s3319 + $0x90] sm:$0xff]
          %v3327 = vld [vmem:[%s3319 + $0xa8] sm:$0xff]
          %3329 = vset.pattern.permute.xlu0 0
          %3330 = vperm.xlu0 %3329, %v2809
          %v3331 = vpop.permute.xlu0 %3330
          %3334 = vset.pattern.permute.xlu0 0
          %3335 = vperm.xlu0 %3334, %v2810
          %v3336 = vpop.permute.xlu0 %3335
          %3339 = vset.pattern.permute.xlu0 0
          %3340 = vperm.xlu0 %3339, %v2811
          %v3341 = vpop.permute.xlu0 %3340
          %3344 = vset.pattern.permute.xlu0 0
          %3345 = vperm.xlu0 %3344, %v2812
          %v3346 = vpop.permute.xlu0 %3345
          %3349 = vset.pattern.permute.xlu0 0
          %3350 = vperm.xlu0 %3349, %v2813
          %v3351 = vpop.permute.xlu0 %3350
          %3354 = vset.pattern.permute.xlu0 0
          %3355 = vperm.xlu0 %3354, %v2814
          %v3356 = vpop.permute.xlu0 %3355
          %3359 = vset.pattern.permute.xlu0 0
          %3360 = vperm.xlu0 %3359, %v2815
          %v3361 = vpop.permute.xlu0 %3360
          %3364 = vset.pattern.permute.xlu0 0
          %3365 = vperm.xlu0 %3364, %v2816
          %v3366 = vpop.permute.xlu0 %3365
          %v3368 = vmul.f32 %v3320, %v3331
          %v3369 = vmul.f32 %v3321, %v3336
          %v3370 = vmul.f32 %v3322, %v3341
          %v3371 = vmul.f32 %v3323, %v3346
          %v3372 = vmul.f32 %v3324, %v3351
          %v3373 = vmul.f32 %v3325, %v3356
          %v3374 = vmul.f32 %v3326, %v3361
          %v3375 = vmul.f32 %v3327, %v3366
          %s3376 = smul.addr %s3316, 8
          %s3377 = scalar_lea.vmem [#allocation5], %s3376
          %v3378 = vld [vmem:[%s3377] sm:$0xff]
          %v3379 = vld [vmem:[%s3377 + $0x18] sm:$0xff]
          %v3380 = vld [vmem:[%s3377 + $0x30] sm:$0xff]
          %v3381 = vld [vmem:[%s3377 + $0x48] sm:$0xff]
          %v3382 = vld [vmem:[%s3377 + $0x60] sm:$0xff]
          %v3383 = vld [vmem:[%s3377 + $0x78] sm:$0xff]
          %v3384 = vld [vmem:[%s3377 + $0x90] sm:$0xff]
          %v3385 = vld [vmem:[%s3377 + $0xa8] sm:$0xff]
          %3387 = vset.pattern.permute.xlu0 0
          %3388 = vperm.xlu0 %3387, %v3029
          %v3389 = vpop.permute.xlu0 %3388
          %3392 = vset.pattern.permute.xlu0 0
          %3393 = vperm.xlu0 %3392, %v3030
          %v3394 = vpop.permute.xlu0 %3393
          %3397 = vset.pattern.permute.xlu0 0
          %3398 = vperm.xlu0 %3397, %v3031
          %v3399 = vpop.permute.xlu0 %3398
          %3402 = vset.pattern.permute.xlu0 0
          %3403 = vperm.xlu0 %3402, %v3032
          %v3404 = vpop.permute.xlu0 %3403
          %3407 = vset.pattern.permute.xlu0 0
          %3408 = vperm.xlu0 %3407, %v3033
          %v3409 = vpop.permute.xlu0 %3408
          %3412 = vset.pattern.permute.xlu0 0
          %3413 = vperm.xlu0 %3412, %v3034
          %v3414 = vpop.permute.xlu0 %3413
          %3417 = vset.pattern.permute.xlu0 0
          %3418 = vperm.xlu0 %3417, %v3035
          %v3419 = vpop.permute.xlu0 %3418
          %3422 = vset.pattern.permute.xlu0 0
          %3423 = vperm.xlu0 %3422, %v3036
          %v3424 = vpop.permute.xlu0 %3423
          %v3426 = vmul.f32 %v3378, %v3389
          %v3427 = vmul.f32 %v3379, %v3394
          %v3428 = vmul.f32 %v3380, %v3399
          %v3429 = vmul.f32 %v3381, %v3404
          %v3430 = vmul.f32 %v3382, %v3409
          %v3431 = vmul.f32 %v3383, %v3414
          %v3432 = vmul.f32 %v3384, %v3419
          %v3433 = vmul.f32 %v3385, %v3424
          %v3434 = vadd.f32 %v3368, %v3426
          %v3435 = vadd.f32 %v3369, %v3427
          %v3436 = vadd.f32 %v3370, %v3428
          %v3437 = vadd.f32 %v3371, %v3429
          %v3438 = vadd.f32 %v3372, %v3430
          %v3439 = vadd.f32 %v3373, %v3431
          %v3440 = vadd.f32 %v3374, %v3432
          %v3441 = vadd.f32 %v3375, %v3433
          %3443 = vset.pattern.permute.xlu0 0
          %3444 = vperm.xlu0 %3443, %v3301
          %v3445 = vpop.permute.xlu0 %3444
          %3448 = vset.pattern.permute.xlu0 0
          %3449 = vperm.xlu0 %3448, %v3302
          %v3450 = vpop.permute.xlu0 %3449
          %3453 = vset.pattern.permute.xlu0 0
          %3454 = vperm.xlu0 %3453, %v3303
          %v3455 = vpop.permute.xlu0 %3454
          %3458 = vset.pattern.permute.xlu0 0
          %3459 = vperm.xlu0 %3458, %v3304
          %v3460 = vpop.permute.xlu0 %3459
          %3463 = vset.pattern.permute.xlu0 0
          %3464 = vperm.xlu0 %3463, %v3305
          %v3465 = vpop.permute.xlu0 %3464
          %3468 = vset.pattern.permute.xlu0 0
          %3469 = vperm.xlu0 %3468, %v3306
          %v3470 = vpop.permute.xlu0 %3469
          %3473 = vset.pattern.permute.xlu0 0
          %3474 = vperm.xlu0 %3473, %v3307
          %v3475 = vpop.permute.xlu0 %3474
          %3478 = vset.pattern.permute.xlu0 0
          %3479 = vperm.xlu0 %3478, %v3308
          %v3480 = vpop.permute.xlu0 %3479
          %v3482 = vadd.f32 %v3434, %v3445
          %v3483 = vadd.f32 %v3435, %v3450
          %v3484 = vadd.f32 %v3436, %v3455
          %v3485 = vadd.f32 %v3437, %v3460
          %v3486 = vadd.f32 %v3438, %v3465
          %v3487 = vadd.f32 %v3439, %v3470
          %v3488 = vadd.f32 %v3440, %v3475
          %v3489 = vadd.f32 %v3441, %v3480
          %v3490 = vld [vmem:[%s3319 + $0xc0] sm:$0xff]
          %v3491 = vld [vmem:[%s3319 + $0xd8] sm:$0xff]
          %v3492 = vld [vmem:[%s3319 + $0xf0] sm:$0xff]
          %v3493 = vld [vmem:[%s3319 + $0x108] sm:$0xff]
          %3495 = vset.pattern.permute.xlu0 0
          %3496 = vperm.xlu0 %3495, %v3165
          %v3497 = vpop.permute.xlu0 %3496
          %3500 = vset.pattern.permute.xlu0 0
          %3501 = vperm.xlu0 %3500, %v3166
          %v3502 = vpop.permute.xlu0 %3501
          %3505 = vset.pattern.permute.xlu0 0
          %3506 = vperm.xlu0 %3505, %v3167
          %v3507 = vpop.permute.xlu0 %3506
          %3510 = vset.pattern.permute.xlu0 0
          %3511 = vperm.xlu0 %3510, %v3168
          %v3512 = vpop.permute.xlu0 %3511
          %v3514 = vmul.f32 %v3490, %v3497
          %v3515 = vmul.f32 %v3491, %v3502
          %v3516 = vmul.f32 %v3492, %v3507
          %v3517 = vmul.f32 %v3493, %v3512
          %3519 = vset.pattern.permute.xlu0 0
          %3520 = vperm.xlu0 %3519, %v3173
          %v3521 = vpop.permute.xlu0 %3520
          %3524 = vset.pattern.permute.xlu0 0
          %3525 = vperm.xlu0 %3524, %v3174
          %v3526 = vpop.permute.xlu0 %3525
          %3529 = vset.pattern.permute.xlu0 0
          %3530 = vperm.xlu0 %3529, %v3175
          %v3531 = vpop.permute.xlu0 %3530
          %3534 = vset.pattern.permute.xlu0 0
          %3535 = vperm.xlu0 %3534, %v3176
          %v3536 = vpop.permute.xlu0 %3535
          %v3538 = vadd.f32 %v3514, %v3521
          %v3539 = vadd.f32 %v3515, %v3526
          %v3540 = vadd.f32 %v3516, %v3531
          %v3541 = vadd.f32 %v3517, %v3536
          %v3542 = vld [vmem:[%s3377 + $0xc0] sm:$0xff]
          %v3543 = vld [vmem:[%s3377 + $0xd8] sm:$0xff]
          %v3544 = vld [vmem:[%s3377 + $0xf0] sm:$0xff]
          %v3545 = vld [vmem:[%s3377 + $0x108] sm:$0xff]
          %3547 = vset.pattern.permute.xlu0 0
          %3548 = vperm.xlu0 %3547, %v3289
          %v3549 = vpop.permute.xlu0 %3548
          %3552 = vset.pattern.permute.xlu0 0
          %3553 = vperm.xlu0 %3552, %v3290
          %v3554 = vpop.permute.xlu0 %3553
          %3557 = vset.pattern.permute.xlu0 0
          %3558 = vperm.xlu0 %3557, %v3291
          %v3559 = vpop.permute.xlu0 %3558
          %3562 = vset.pattern.permute.xlu0 0
          %3563 = vperm.xlu0 %3562, %v3292
          %v3564 = vpop.permute.xlu0 %3563
          %v3566 = vmul.f32 %v3542, %v3549
          %v3567 = vmul.f32 %v3543, %v3554
          %v3568 = vmul.f32 %v3544, %v3559
          %v3569 = vmul.f32 %v3545, %v3564
          %3571 = vset.pattern.permute.xlu0 0
          %3572 = vperm.xlu0 %3571, %v3297
          %v3573 = vpop.permute.xlu0 %3572
          %3576 = vset.pattern.permute.xlu0 0
          %3577 = vperm.xlu0 %3576, %v3298
          %v3578 = vpop.permute.xlu0 %3577
          %3581 = vset.pattern.permute.xlu0 0
          %3582 = vperm.xlu0 %3581, %v3299
          %v3583 = vpop.permute.xlu0 %3582
          %3586 = vset.pattern.permute.xlu0 0
          %3587 = vperm.xlu0 %3586, %v3300
          %v3588 = vpop.permute.xlu0 %3587
          %v3590 = vadd.f32 %v3566, %v3573
          %v3591 = vadd.f32 %v3567, %v3578
          %v3592 = vadd.f32 %v3568, %v3583
          %v3593 = vadd.f32 %v3569, %v3588
          %v3594 = vmul.f32 %v3486, 0.5
          %v3595 = vmul.f32 %v3487, 0.5
          %v3596 = vmul.f32 %v3488, 0.5
          %v3597 = vmul.f32 %v3489, 0.5
          %v3598 = vtanh.pop %v3594
          %v3599 = vtanh.pop %v3595
          %v3600 = vtanh.pop %v3596
          %v3601 = vtanh.pop %v3597
          %v3602 = vmul.f32 %v3598, 0.5
          %v3603 = vmul.f32 %v3599, 0.5
          %v3604 = vmul.f32 %v3600, 0.5
          %v3605 = vmul.f32 %v3601, 0.5
          %v3606 = vadd.f32 %v3602, 0.5
          %v3607 = vadd.f32 %v3603, 0.5
          %v3608 = vadd.f32 %v3604, 0.5
          %v3609 = vadd.f32 %v3605, 0.5
          %v3610 = vmul.f32 %v3606, %v3590
          %v3611 = vmul.f32 %v3607, %v3591
          %v3612 = vmul.f32 %v3608, %v3592
          %v3613 = vmul.f32 %v3609, %v3593
          %v3614 = vadd.f32 %v3538, %v3610
          %v3615 = vadd.f32 %v3539, %v3611
          %v3616 = vadd.f32 %v3540, %v3612
          %v3617 = vadd.f32 %v3541, %v3613
          %v3618 = vtanh.pop %v3614
          %v3619 = vtanh.pop %v3615
          %v3620 = vtanh.pop %v3616
          %v3621 = vtanh.pop %v3617
          %v3622 = vmul.f32 %v3482, 0.5
          %v3623 = vmul.f32 %v3483, 0.5
          %v3624 = vmul.f32 %v3484, 0.5
          %v3625 = vmul.f32 %v3485, 0.5
          %v3626 = vtanh.pop %v3622
          %v3627 = vtanh.pop %v3623
          %v3628 = vtanh.pop %v3624
          %v3629 = vtanh.pop %v3625
          %v3630 = vmul.f32 %v3626, 0.5
          %v3631 = vmul.f32 %v3627, 0.5
          %v3632 = vmul.f32 %v3628, 0.5
          %v3633 = vmul.f32 %v3629, 0.5
          %v3634 = vadd.f32 %v3630, 0.5
          %v3635 = vadd.f32 %v3631, 0.5
          %v3636 = vadd.f32 %v3632, 0.5
          %v3637 = vadd.f32 %v3633, 0.5
          %s3638 = smul.addr %s3316, 8
          %s3639 = scalar_lea.vmem %s343, %s3638
          %v3640 = vld [vmem:[%s3639] sm:$0xff]
          %v3641 = vld [vmem:[%s3639 + $0x18] sm:$0xff]
          %v3642 = vld [vmem:[%s3639 + $0x30] sm:$0xff]
          %v3643 = vld [vmem:[%s3639 + $0x48] sm:$0xff]
          %v3644 = vsub.f32 1.0, %v3634
          %v3645 = vsub.f32 1.0, %v3635
          %v3646 = vsub.f32 1.0, %v3636
          %v3647 = vsub.f32 1.0, %v3637
          %v3648 = vmul.f32 %v3644, %v3640
          %v3649 = vmul.f32 %v3645, %v3641
          %v3650 = vmul.f32 %v3646, %v3642
          %v3651 = vmul.f32 %v3647, %v3643
          %v3652 = vmul.f32 %v3634, %v3618
          %v3653 = vmul.f32 %v3635, %v3619
          %v3654 = vmul.f32 %v3636, %v3620
          %v3655 = vmul.f32 %v3637, %v3621
          %v3656 = vadd.f32 %v3648, %v3652
          %v3657 = vadd.f32 %v3649, %v3653
          %v3658 = vadd.f32 %v3650, %v3654
          %v3659 = vadd.f32 %v3651, %v3655
          %s3660 = smul.addr %s3316, 8
          %s3661 = scalar_lea.vmem %s328, %s3660 [#allocation6]
          %3662 = vst [vmem:[%s3661] sm:$0xff] %v3656
          %3663 = vst [vmem:[%s3661 + $0x18] sm:$0xff] %v3657
          %3664 = vst [vmem:[%s3661 + $0x30] sm:$0xff] %v3658
          %3665 = vst [vmem:[%s3661 + $0x48] sm:$0xff] %v3659
        $region57: #{tpu_custom_call.1} parent=51 // loop_footer
          %s3314 = sadd.s32 1, %s3310
        $region58: #{tpu_custom_call.1} parent=51 // loop_footer_branch
          %3309 = sbr.rel target = $region54
        $region59: #{tpu_custom_call.1} parent=51 // loop_exit
          _
        %s3666 = sand.u32 %s213, 1
        %s3667 = scalar_lea.sflag [#allocation7], %s3666
        %s3668 = sand.u32 %s213, 1
        %s3669 = smul.addr %s3668, 96
        %s3670 = scalar_lea.vmem [#allocation6], %s3669
        // Predicated region
        $region60: #{tpu_custom_call.1} parent=51 // pred_check
          %p3671 = pneg %p223
        $region61: #{tpu_custom_call.1} parent=51 // pred_check_branch
          %3673 = sbr.rel (%p3671) target = $region63
        $region62: #{tpu_custom_call.1} parent=51 // pred_region
          %s3675 = ssub.s32 1536, 1536
          %3676 = vsyncadd %s3667, %s3675
          %s3677 = smul.addr %s22, 12
          %s3678 = smul.addr %s3677, 128
          %s3679 = scalar_lea.hbm %s8, %s3678
          %s3680 = sshll.u32 %s3670, 4
          %s3681 = int_to_ptr.vmem [resolvable:$true] %s3680
          %3686 = dma.vmem_to_hbm [thread:$0]  %s3681, 1536, %s3679, %s3667, 384, 384, 24
        $region63: #{tpu_custom_call.1} parent=51 // pred_fallthru
          _
      $region52: #{tpu_custom_call.1} parent=5 // pred_fallthru
        _
      %p3687 = scmp.le.s32.totalorder 2, %s17
      // Predicated region
      $region64: #{tpu_custom_call.1} parent=5 // pred_check
        %p3688 = pneg %p3687
      $region65: #{tpu_custom_call.1} parent=5 // pred_check_branch
        %3690 = sbr.rel (%p3688) target = $region67
      $region66: #{tpu_custom_call.1} parent=5 // pred_region
        %s3691 = ssub.s32 %s17, 2
        // Predicated region
        $region68: #{tpu_custom_call.1} parent=66 // pred_check
          %p3692 = pneg %p229
        $region69: #{tpu_custom_call.1} parent=66 // pred_check_branch
          %3694 = sbr.rel (%p3692) target = $region71
        $region70: #{tpu_custom_call.1} parent=66 // pred_region
          %s3695 = sand.u32 %s214, 1
          %s3696 = scalar_lea.sflag [#allocation7], %s3695
          %s3697 = sand.u32 %s214, 1
          %s3698 = smul.addr %s3697, 96
          %s3699 = scalar_lea.vmem [#allocation6], %s3698
          %3700 = dma.done %s3696, 1536
        $region71: #{tpu_custom_call.1} parent=66 // pred_fallthru
          _
      $region67: #{tpu_custom_call.1} parent=5 // pred_fallthru
        _
    $region6: #{tpu_custom_call.1} parent=1 // loop_footer
      %s21 = sadd.s32 1, %s17
    $region7: #{tpu_custom_call.1} parent=1 // loop_footer_branch
      %16 = sbr.rel target = $region3
    $region8: #{tpu_custom_call.1} parent=1 // loop_exit
      _
    %3701 = vsyncpa [#allocation7], 1
    %s3702 = scalar_lea.sflag [#allocation7], 1
    %3703 = vsyncpa %s3702, 1

</llo_original>
